<compile_context>
chip_gen: v6e
topology: v6e:2x2x1
jax: 0.10.0
libtpu: 0.0.40
codegen_flags: <defaults>
</compile_context>

<pallas_src>
import numpy as np
import jax
import jax.numpy as jnp
from jax import lax
from jax.experimental import pallas as pl
from jax.experimental.pallas import tpu as pltpu


# ----------------------------------------------------------------------------
# Fused Pallas kernel
# ----------------------------------------------------------------------------
def _build_detector_kernel(T, Bp, H, num_layers):
    """Builds the fused kernel for static (T, Bp, H, num_layers)."""
    H2, H4, H6, H8 = 2 * H, 4 * H, 6 * H, 8 * H
    n = T * Bp

    def kernel(*refs):
        ids_ref, table0_ref = refs[0], refs[1]
        whh_refs = [refs[2]]
        wih_refs, b_refs = [None], [None]
        p = 3
        for _ in range(1, num_layers):
            wih_refs.append(refs[p])
            b_refs.append(refs[p + 1])
            whh_refs.append(refs[p + 2])
            p += 3
        wout_ref, bout_ref = refs[p], refs[p + 1]
        out_ref = refs[p + 2]
        seq_scr = refs[p + 3]   # (n, 2H): inter-layer activations [h_f | h_b]
        xp_scr = refs[p + 4]    # (n, 8H): hoisted input projection, both dirs

        # Lane mask selecting the forward-direction gate columns
        # (H-blocks 0,2,4,6 of the fused 8H gate layout). Hoisted once.
        col = lax.broadcasted_iota(jnp.int32, (Bp, H8), 1)
        fwd_mask = (col % (2 * H)) < H

        # ---- Layer 0 input projection: embedding folded into the table ----
        # TODO(synk): for large vocabularies replace the one-hot matmul with a
        # scalar-prefetch / DMA gather of the fused (V, 8H) table.
        V = table0_ref.shape[0]
        ids = ids_ref[...]                                       # (n, 1) int32
        vpos = lax.broadcasted_iota(jnp.int32, (n, V), 1)
        onehot = (vpos == ids).astype(jnp.float32)               # (n, V)
        xp_scr[...] = jnp.dot(onehot, table0_ref[...],
                              preferred_element_type=jnp.float32)  # (n, 8H)

        for l in range(num_layers):
            if l > 0:
                # Hoisted input projection for BOTH directions: reads the
                # previous layer's seq scratch, then the time loop below may
                # safely overwrite it.
                xp_scr[...] = (jnp.dot(seq_scr[...], wih_refs[l][...],
                                       preferred_element_type=jnp.float32)
                               + b_refs[l][...])

            whh = whh_refs[l][...]                     # (2H, 8H) block-diagonal
            h = jnp.zeros((Bp, H2), jnp.float32)       # [h_f | h_b]
            c = jnp.zeros((Bp, H2), jnp.float32)       # [c_f | c_b]

            def step(xp_t, xp_tb, h, c):
                # fwd gate columns take time t's projection, bwd columns take
                # time (T-1-t)'s; single fused recurrent matmul.
                gates = (jnp.where(fwd_mask, xp_t, xp_tb)
                         + jnp.dot(h, whh, preferred_element_type=jnp.float32))
                sg = jax.nn.sigmoid(gates[:, 0:H6])    # [i_f,i_b,f_f,f_b,o_f,o_b]
                g = jnp.tanh(gates[:, H6:H8])          # [g_f | g_b]
                c_new = sg[:, H2:H4] * c + sg[:, 0:H2] * g
                h_new = sg[:, H4:H6] * jnp.tanh(c_new)
                return h_new, c_new

            if T <= 32:
                # Fully unrolled static time loop: h/c stay in vregs.
                for t in range(T):
                    tb = T - 1 - t
                    h, c = step(xp_scr[t * Bp:(t + 1) * Bp, :],
                                xp_scr[tb * Bp:(tb + 1) * Bp, :], h, c)
                    seq_scr[t * Bp:(t + 1) * Bp, 0:H] = h[:, 0:H]
                    seq_scr[tb * Bp:(tb + 1) * Bp, H:H2] = h[:, H:H2]
            else:
                # Large-T path: bounded vreg pressure / compile time.
                def body(t, carry):
                    h_i, c_i = carry
                    tb = T - 1 - t
                    rf = pl.multiple_of(t * Bp, Bp)
                    rb = pl.multiple_of(tb * Bp, Bp)
                    h_i, c_i = step(xp_scr[pl.ds(rf, Bp), :],
                                    xp_scr[pl.ds(rb, Bp), :], h_i, c_i)
                    seq_scr[pl.ds(rf, Bp), 0:H] = h_i[:, 0:H]
                    seq_scr[pl.ds(rb, Bp), H:H2] = h_i[:, H:H2]
                    return h_i, c_i
                h, c = lax.fori_loop(0, T, body, (h, c), unroll=2)

        # Final linear (lane-padded to 128 output columns) + sigmoid.
        logits = (jnp.dot(seq_scr[...], wout_ref[...],
                          preferred_element_type=jnp.float32) + bout_ref[...])
        out_ref[...] = jax.nn.sigmoid(logits).astype(out_ref.dtype)

    return kernel


# ----------------------------------------------------------------------------
# Parameter construction (raw PyTorch layout) and packing for the kernel
# ----------------------------------------------------------------------------
def init_raw_params(key, input_dim, output_dim, embedding_dim, num_layers,
                    hidden_size):
    """Raw parameters in PyTorch layout & gate order (i, f, g, o)."""
    H = hidden_size
    k = 1.0 / np.sqrt(H)
    keys = iter(jax.random.split(key, 8 * num_layers + 4))

    def uni(shape):
        return jax.random.uniform(next(keys), shape, jnp.float32, -k, k)

    raw = {
        "embedding": jax.random.normal(next(keys),
                                       (input_dim, embedding_dim), jnp.float32),
        "layers": [],
    }
    in_size = embedding_dim
    for _ in range(num_layers):
        lyr = {}
        for d in ("f", "b"):
            lyr[f"wih_{d}"] = uni((4 * H, in_size))   # weight_ih_l{k}
            lyr[f"whh_{d}"] = uni((4 * H, H))         # weight_hh_l{k}
            lyr[f"bih_{d}"] = uni((4 * H,))
            lyr[f"bhh_{d}"] = uni((4 * H,))
        raw["layers"].append(lyr)
        in_size = 2 * H                               # bidirectional feeds next
    raw["w_out"] = uni((output_dim, 2 * H))           # Linear weight
    raw["b_out"] = uni((output_dim,))
    return raw


def _fuse_gate_cols(wf, wb, H):
    """Fuse fwd/bwd (..., 4H) PyTorch-order (i,f,g,o) blocks into the kernel's
    (..., 8H) layout [i_f,i_b, f_f,f_b, o_f,o_b, g_f,g_b]."""
    def g(w, k):
        return w[..., k * H:(k + 1) * H]
    return jnp.concatenate([g(wf, 0), g(wb, 0),
                            g(wf, 1), g(wb, 1),
                            g(wf, 3), g(wb, 3),
                            g(wf, 2), g(wb, 2)], axis=-1)


def _fuse_whh(whh_f_t, whh_b_t, H):
    """Block-diagonal recurrent weight: (2H, 8H) so [h_f|h_b] @ W_hh computes
    both directions' gate contributions in a single matmul."""
    top = _fuse_gate_cols(whh_f_t, jnp.zeros_like(whh_f_t), H)   # h_f rows
    bot = _fuse_gate_cols(jnp.zeros_like(whh_b_t), whh_b_t, H)   # h_b rows
    return jnp.concatenate([top, bot], axis=0)


def pack_params(raw, H):
    """Transpose / permute / fuse raw params into kernel layout."""
    # TODO(synk): optionally store weights as bf16 for v6e/v7x MXU throughput
    # (keep f32 accumulation); kept f32 here to preserve the 1e-5 check.
    packed = {"layers": [], "out_dim": int(raw["w_out"].shape[0])}
    for li, lyr in enumerate(raw["layers"]):
        wih = _fuse_gate_cols(lyr["wih_f"].T, lyr["wih_b"].T, H)      # (I, 8H)
        b = _fuse_gate_cols((lyr["bih_f"] + lyr["bhh_f"]).reshape(1, -1),
                            (lyr["bih_b"] + lyr["bhh_b"]).reshape(1, -1), H)
        whh = _fuse_whh(lyr["whh_f"].T, lyr["whh_b"].T, H)            # (2H, 8H)
        if li == 0:
            # Fold embedding + bias into layer 0's input projection: (V, 8H).
            table = jnp.dot(raw["embedding"], wih,
                            precision=jax.lax.Precision.HIGHEST) + b
            packed["layers"].append({"table": table, "whh": whh})
        else:
            packed["layers"].append({"wih": wih, "b": b, "whh": whh})
    O = packed["out_dim"]
    Opad = ((O + 127) // 128) * 128                   # lane-dense output store
    packed["w_out"] = jnp.zeros((2 * H, Opad), jnp.float32).at[:, :O].set(
        raw["w_out"].T)
    packed["b_out"] = jnp.zeros((1, Opad), jnp.float32).at[:, :O].set(
        raw["b_out"][None, :])
    return packed


# ----------------------------------------------------------------------------
# Forward pass (single fused pallas_call) and pure-JAX reference
# ----------------------------------------------------------------------------
def detector_forward(packed, x_ids):
    B, T = x_ids.shape
    H = packed["layers"][0]["whh"].shape[0] // 2
    Opad = packed["w_out"].shape[1]
    O = packed["out_dim"]
    V = packed["layers"][0]["table"].shape[0]
    num_layers = len(packed["layers"])

    # Pad batch to the f32 sublane tile so per-step slices/stores are full.
    Bp = ((B + 7) // 8) * 8
    n = T * Bp

    # Time-major flat ids: row index = t*Bp + b; padded rows use token 0.
    ids_tm = jnp.transpose(x_ids, (1, 0)).astype(jnp.int32)       # (T, B)
    ids_tm = jnp.pad(ids_tm, ((0, 0), (0, Bp - B))).reshape(n, 1)

    inputs = [ids_tm, packed["layers"][0]["table"], packed["layers"][0]["whh"]]
    for lyr in packed["layers"][1:]:
        inputs += [lyr["wih"], lyr["b"], lyr["whh"]]
    inputs += [packed["w_out"], packed["b_out"]]

    # Advisory cost estimate for XLA scheduling around the custom call.
    flops = 2 * n * V * 8 * H                                   # folded layer-0 proj
    flops += (num_layers - 1) * 2 * n * (2 * H) * (8 * H)       # layer>0 input proj
    flops += num_layers * 2 * n * (2 * H) * (8 * H)             # fused recurrences
    flops += 2 * n * (2 * H) * Opad                             # output linear
    transcendentals = num_layers * n * 10 * H + n * Opad
    bytes_accessed = (sum(int(a.size) * a.dtype.itemsize for a in inputs)
                      + n * Opad * 4)

    kernel = _build_detector_kernel(T, Bp, H, num_layers)
    # TODO(synk): on v7x, add a parallel batch grid (grid=(Bp//chunk,),
    # dimension_semantics=("parallel",)) so both TensorCores run independent
    # sequences; at this toy size a single gridless call is sufficient.
    probs_flat = pl.pallas_call(
        kernel,
        out_shape=jax.ShapeDtypeStruct((n, Opad), jnp.float32),
        in_specs=[pl.BlockSpec(memory_space=pltpu.MemorySpace.VMEM)]
                 * len(inputs),
        out_specs=pl.BlockSpec(memory_space=pltpu.MemorySpace.VMEM),
        scratch_shapes=[pltpu.VMEM((n, 2 * H), jnp.float32),    # seq activations
                        pltpu.VMEM((n, 8 * H), jnp.float32)],   # xproj
        compiler_params=pltpu.CompilerParams(
            vmem_limit_bytes=32 * 1024 * 1024),
        cost_estimate=pl.CostEstimate(flops=flops,
                                      transcendentals=transcendentals,
                                      bytes_accessed=bytes_accessed),
    )(*inputs)

    out = probs_flat.reshape(T, Bp, Opad)[:, :B, :O]
    return jnp.transpose(out, (1, 0, 2))                         # (B, T, O)


def _ref_lstm_dir(x_tbi, wih, whh, bih, bhh):
    """Pure-JAX single-direction LSTM, PyTorch gate order (i, f, g, o)."""
    H = whh.shape[1]
    B = x_tbi.shape[1]
    wih_t, whh_t = wih.T, whh.T
    b = (bih + bhh)[None, :]

    def step(carry, x_t):
        h, c = carry
        gates = x_t @ wih_t + h @ whh_t + b
        i = jax.nn.sigmoid(gates[:, 0:H])
        f = jax.nn.sigmoid(gates[:, H:2 * H])
        g = jnp.tanh(gates[:, 2 * H:3 * H])
        o = jax.nn.sigmoid(gates[:, 3 * H:4 * H])
        c = f * c + i * g
        h = o * jnp.tanh(c)
        return (h, c), h

    init = (jnp.zeros((B, H), jnp.float32), jnp.zeros((B, H), jnp.float32))
    _, out = lax.scan(step, init, x_tbi)
    return out


def detector_forward_ref(raw, x_ids):
    emb = jnp.take(raw["embedding"], x_ids, axis=0)           # (B, T, E)
    seq = jnp.transpose(emb, (1, 0, 2))                       # (T, B, E)
    for lyr in raw["layers"]:
        out_f = _ref_lstm_dir(seq, lyr["wih_f"], lyr["whh_f"],
                              lyr["bih_f"], lyr["bhh_f"])
        out_b = _ref_lstm_dir(seq[::-1], lyr["wih_b"], lyr["whh_b"],
                              lyr["bih_b"], lyr["bhh_b"])[::-1]
        seq = jnp.concatenate([out_f, out_b], axis=-1)
        # TODO(synk): nn.LSTM applies dropout(p=0.1) between layers only in
        # train mode; this implements eval (no-dropout) semantics.
    logits = jnp.einsum("tbf,of->tbo", seq, raw["w_out"]) + raw["b_out"]
    return jnp.transpose(jax.nn.sigmoid(logits), (1, 0, 2))   # (B, T, O)


# ----------------------------------------------------------------------------
if __name__ == "__main__":
    input_dim = 16       # vocab size
    output_dim = 4
    embedding_dim = 32
    num_layers = 2
    hidden_size = 32
    B, T = 2, 8

    key = jax.random.PRNGKey(0)
    k_par, k_ids = jax.random.split(key)
    raw = init_raw_params(k_par, input_dim, output_dim, embedding_dim,
                          num_layers, hidden_size)
    packed = pack_params(raw, hidden_size)
    x_ids = jax.random.randint(k_ids, (B, T), 0, input_dim, dtype=jnp.int32)

    out = jax.block_until_ready(detector_forward(packed, x_ids))
    ref = jax.block_until_ready(detector_forward_ref(raw, x_ids))

    assert out.shape == (B, T, output_dim), out.shape
    np.testing.assert_allclose(np.asarray(out), np.asarray(ref),
                               rtol=2e-5, atol=2e-5)
    print("KERNEL_OK")
</pallas_src>

<mosaic_0001>
module attributes {stable_mosaic.version = 11 : i64} {
  func.func @kernel(%arg0: memref<64x1xi32, #tpu.memory_space<vmem>>, %arg1: memref<16x256xf32, #tpu.memory_space<vmem>>, %arg2: memref<64x256xf32, #tpu.memory_space<vmem>>, %arg3: memref<64x256xf32, #tpu.memory_space<vmem>>, %arg4: memref<1x256xf32, #tpu.memory_space<vmem>>, %arg5: memref<64x256xf32, #tpu.memory_space<vmem>>, %arg6: memref<64x128xf32, #tpu.memory_space<vmem>>, %arg7: memref<1x128xf32, #tpu.memory_space<vmem>>, %arg8: memref<64x128xf32, #tpu.memory_space<vmem>>, %arg9: memref<64x64xf32, #tpu.memory_space<vmem>>, %arg10: memref<64x256xf32, #tpu.memory_space<vmem>>) attributes {dimension_semantics = [], scalar_prefetch = 0 : i64, scratch_operands = 2 : i64, tpu.core_type = #tpu.core_type<tc>} {
    %0 = tpu.iota {dimensions = array<i32: 1>} : vector<8x256xi32>
    %c64_i32 = arith.constant 64 : i32
    %c0_i32 = arith.constant 0 : i32
    %1 = arith.cmpi eq, %c64_i32, %c0_i32 : i32
    %c1_i32 = arith.constant 1 : i32
    %2 = arith.select %1, %c1_i32, %c64_i32 : i32
    %3 = vector.broadcast %2 : i32 to vector<8x256xi32>
    %4 = arith.remsi %0, %3 : vector<8x256xi32>
    %c0_i32_0 = arith.constant 0 : i32
    %5 = vector.broadcast %c0_i32_0 : i32 to vector<8x256xi32>
    %6 = arith.cmpi ne, %4, %5 : vector<8x256xi32>
    %c0_i32_1 = arith.constant 0 : i32
    %7 = vector.broadcast %c0_i32_1 : i32 to vector<8x256xi32>
    %8 = arith.cmpi slt, %4, %7 : vector<8x256xi32>
    %c0_i32_2 = arith.constant 0 : i32
    %9 = arith.cmpi slt, %2, %c0_i32_2 : i32
    %10 = vector.broadcast %9 : i1 to vector<8x256xi1>
    %11 = vector.broadcast %10 : vector<8x256xi1> to vector<8x256xi1>
    %12 = arith.xori %8, %11 : vector<8x256xi1>
    %13 = arith.andi %12, %6 : vector<8x256xi1>
    %14 = vector.broadcast %2 : i32 to vector<8x256xi32>
    %15 = arith.addi %4, %14 : vector<8x256xi32>
    %16 = arith.select %13, %15, %4 : vector<8x256xi1>, vector<8x256xi32>
    %c32_i32 = arith.constant 32 : i32
    %17 = vector.broadcast %c32_i32 : i32 to vector<8x256xi32>
    %18 = arith.cmpi slt, %16, %17 : vector<8x256xi32>
    %c0 = arith.constant 0 : index
    %c0_3 = arith.constant 0 : index
    %19 = vector.load %arg0[%c0, %c0_3] : memref<64x1xi32, #tpu.memory_space<vmem>>, vector<64x1xi32>
    %20 = tpu.iota {dimensions = array<i32: 1>} : vector<64x16xi32>
    %21 = vector.broadcast %19 : vector<64x1xi32> to vector<64x16xi32>
    %22 = arith.cmpi eq, %20, %21 : vector<64x16xi32>
    %23 = arith.extui %22 : vector<64x16xi1> to vector<64x16xi32>
    %24 = arith.sitofp %23 : vector<64x16xi32> to vector<64x16xf32>
    %c0_4 = arith.constant 0 : index
    %c0_5 = arith.constant 0 : index
    %25 = vector.load %arg1[%c0_4, %c0_5] : memref<16x256xf32, #tpu.memory_space<vmem>>, vector<16x256xf32>
    %cst = arith.constant dense<0.000000e+00> : vector<64x256xf32>
    %26 = tpu.matmul %24, %25, %cst {dimension_numbers = #tpu.dot_dimension_numbers<[1], [0], [0], [1], [0, 0, 1, 1], [], []>} : vector<64x16xf32>, vector<16x256xf32>, vector<64x256xf32> -> vector<64x256xf32>
    %c0_6 = arith.constant 0 : index
    %c0_7 = arith.constant 0 : index
    %27 = vector.load %arg10[%c0_6, %c0_7] : memref<64x256xf32, #tpu.memory_space<vmem>>, vector<64x256xf32>
    tpu.vector_store %arg10[%c0_6, %c0_7], %26 {strides = array<i32>} : memref<64x256xf32, #tpu.memory_space<vmem>>, vector<64x256xf32>,
    %c0_8 = arith.constant 0 : index
    %c0_9 = arith.constant 0 : index
    %28 = vector.load %arg2[%c0_8, %c0_9] : memref<64x256xf32, #tpu.memory_space<vmem>>, vector<64x256xf32>
    %cst_10 = arith.constant 0.000000e+00 : f32
    %29 = vector.broadcast %cst_10 : f32 to vector<8x64xf32>
    %cst_11 = arith.constant 0.000000e+00 : f32
    %30 = vector.broadcast %cst_11 : f32 to vector<8x64xf32>
    %c0_12 = arith.constant 0 : index
    %c0_13 = arith.constant 0 : index
    %31 = vector.load %arg10[%c0_12, %c0_13] : memref<64x256xf32, #tpu.memory_space<vmem>>, vector<8x256xf32>
    %c56 = arith.constant 56 : index
    %c0_14 = arith.constant 0 : index
    %32 = vector.load %arg10[%c56, %c0_14] : memref<64x256xf32, #tpu.memory_space<vmem>>, vector<8x256xf32>
    %33 = arith.select %18, %31, %32 : vector<8x256xi1>, vector<8x256xf32>
    %cst_15 = arith.constant dense<0.000000e+00> : vector<8x256xf32>
    %34 = tpu.matmul %29, %28, %cst_15 {dimension_numbers = #tpu.dot_dimension_numbers<[1], [0], [0], [1], [0, 0, 1, 1], [], []>} : vector<8x64xf32>, vector<64x256xf32>, vector<8x256xf32> -> vector<8x256xf32>
    %35 = arith.addf %33, %34 : vector<8x256xf32>
    %36 = vector.extract_strided_slice %35 {offsets = [0, 0], sizes = [8, 192], strides = [1, 1]} : vector<8x256xf32> to vector<8x192xf32>
    %37 = arith.negf %36 : vector<8x192xf32>
    %38 = math.exp %37 : vector<8x192xf32>
    %cst_16 = arith.constant 1.000000e+00 : f32
    %39 = vector.broadcast %cst_16 : f32 to vector<8x192xf32>
    %40 = arith.addf %39, %38 : vector<8x192xf32>
    %41 = arith.divf %39, %40 : vector<8x192xf32>
    %42 = vector.extract_strided_slice %35 {offsets = [0, 192], sizes = [8, 64], strides = [1, 1]} : vector<8x256xf32> to vector<8x64xf32>
    %43 = math.tanh %42 : vector<8x64xf32>
    %44 = vector.extract_strided_slice %41 {offsets = [0, 64], sizes = [8, 64], strides = [1, 1]} : vector<8x192xf32> to vector<8x64xf32>
    %45 = arith.mulf %44, %30 : vector<8x64xf32>
    %46 = vector.extract_strided_slice %41 {offsets = [0, 0], sizes = [8, 64], strides = [1, 1]} : vector<8x192xf32> to vector<8x64xf32>
    %47 = arith.mulf %46, %43 : vector<8x64xf32>
    %48 = arith.addf %45, %47 : vector<8x64xf32>
    %49 = vector.extract_strided_slice %41 {offsets = [0, 128], sizes = [8, 64], strides = [1, 1]} : vector<8x192xf32> to vector<8x64xf32>
    %50 = math.tanh %48 : vector<8x64xf32>
    %51 = arith.mulf %49, %50 : vector<8x64xf32>
    %52 = vector.extract_strided_slice %51 {offsets = [0, 0], sizes = [8, 32], strides = [1, 1]} : vector<8x64xf32> to vector<8x32xf32>
    %c0_17 = arith.constant 0 : index
    %c0_18 = arith.constant 0 : index
    %53 = vector.load %arg9[%c0_17, %c0_18] : memref<64x64xf32, #tpu.memory_space<vmem>>, vector<8x32xf32>
    tpu.vector_store %arg9[%c0_17, %c0_18], %52 {strides = array<i32>} : memref<64x64xf32, #tpu.memory_space<vmem>>, vector<8x32xf32>,
    %54 = vector.extract_strided_slice %51 {offsets = [0, 32], sizes = [8, 32], strides = [1, 1]} : vector<8x64xf32> to vector<8x32xf32>
    %c56_19 = arith.constant 56 : index
    %c32 = arith.constant 32 : index
    %55 = vector.load %arg9[%c56_19, %c32] : memref<64x64xf32, #tpu.memory_space<vmem>>, vector<8x32xf32>
    tpu.vector_store %arg9[%c56_19, %c32], %54 {strides = array<i32>} : memref<64x64xf32, #tpu.memory_space<vmem>>, vector<8x32xf32>,
    %c8 = arith.constant 8 : index
    %c0_20 = arith.constant 0 : index
    %56 = vector.load %arg10[%c8, %c0_20] : memref<64x256xf32, #tpu.memory_space<vmem>>, vector<8x256xf32>
    %c48 = arith.constant 48 : index
    %c0_21 = arith.constant 0 : index
    %57 = vector.load %arg10[%c48, %c0_21] : memref<64x256xf32, #tpu.memory_space<vmem>>, vector<8x256xf32>
    %58 = arith.select %18, %56, %57 : vector<8x256xi1>, vector<8x256xf32>
    %cst_22 = arith.constant dense<0.000000e+00> : vector<8x256xf32>
    %59 = tpu.matmul %51, %28, %cst_22 {dimension_numbers = #tpu.dot_dimension_numbers<[1], [0], [0], [1], [0, 0, 1, 1], [], []>} : vector<8x64xf32>, vector<64x256xf32>, vector<8x256xf32> -> vector<8x256xf32>
    %60 = arith.addf %58, %59 : vector<8x256xf32>
    %61 = vector.extract_strided_slice %60 {offsets = [0, 0], sizes = [8, 192], strides = [1, 1]} : vector<8x256xf32> to vector<8x192xf32>
    %62 = arith.negf %61 : vector<8x192xf32>
    %63 = math.exp %62 : vector<8x192xf32>
    %cst_23 = arith.constant 1.000000e+00 : f32
    %64 = vector.broadcast %cst_23 : f32 to vector<8x192xf32>
    %65 = arith.addf %64, %63 : vector<8x192xf32>
    %66 = arith.divf %64, %65 : vector<8x192xf32>
    %67 = vector.extract_strided_slice %60 {offsets = [0, 192], sizes = [8, 64], strides = [1, 1]} : vector<8x256xf32> to vector<8x64xf32>
    %68 = math.tanh %67 : vector<8x64xf32>
    %69 = vector.extract_strided_slice %66 {offsets = [0, 64], sizes = [8, 64], strides = [1, 1]} : vector<8x192xf32> to vector<8x64xf32>
    %70 = arith.mulf %69, %48 : vector<8x64xf32>
    %71 = vector.extract_strided_slice %66 {offsets = [0, 0], sizes = [8, 64], strides = [1, 1]} : vector<8x192xf32> to vector<8x64xf32>
    %72 = arith.mulf %71, %68 : vector<8x64xf32>
    %73 = arith.addf %70, %72 : vector<8x64xf32>
    %74 = vector.extract_strided_slice %66 {offsets = [0, 128], sizes = [8, 64], strides = [1, 1]} : vector<8x192xf32> to vector<8x64xf32>
    %75 = math.tanh %73 : vector<8x64xf32>
    %76 = arith.mulf %74, %75 : vector<8x64xf32>
    %77 = vector.extract_strided_slice %76 {offsets = [0, 0], sizes = [8, 32], strides = [1, 1]} : vector<8x64xf32> to vector<8x32xf32>
    %c8_24 = arith.constant 8 : index
    %c0_25 = arith.constant 0 : index
    %78 = vector.load %arg9[%c8_24, %c0_25] : memref<64x64xf32, #tpu.memory_space<vmem>>, vector<8x32xf32>
    tpu.vector_store %arg9[%c8_24, %c0_25], %77 {strides = array<i32>} : memref<64x64xf32, #tpu.memory_space<vmem>>, vector<8x32xf32>,
    %79 = vector.extract_strided_slice %76 {offsets = [0, 32], sizes = [8, 32], strides = [1, 1]} : vector<8x64xf32> to vector<8x32xf32>
    %c48_26 = arith.constant 48 : index
    %c32_27 = arith.constant 32 : index
    %80 = vector.load %arg9[%c48_26, %c32_27] : memref<64x64xf32, #tpu.memory_space<vmem>>, vector<8x32xf32>
    tpu.vector_store %arg9[%c48_26, %c32_27], %79 {strides = array<i32>} : memref<64x64xf32, #tpu.memory_space<vmem>>, vector<8x32xf32>,
    %c16 = arith.constant 16 : index
    %c0_28 = arith.constant 0 : index
    %81 = vector.load %arg10[%c16, %c0_28] : memref<64x256xf32, #tpu.memory_space<vmem>>, vector<8x256xf32>
    %c40 = arith.constant 40 : index
    %c0_29 = arith.constant 0 : index
    %82 = vector.load %arg10[%c40, %c0_29] : memref<64x256xf32, #tpu.memory_space<vmem>>, vector<8x256xf32>
    %83 = arith.select %18, %81, %82 : vector<8x256xi1>, vector<8x256xf32>
    %cst_30 = arith.constant dense<0.000000e+00> : vector<8x256xf32>
    %84 = tpu.matmul %76, %28, %cst_30 {dimension_numbers = #tpu.dot_dimension_numbers<[1], [0], [0], [1], [0, 0, 1, 1], [], []>} : vector<8x64xf32>, vector<64x256xf32>, vector<8x256xf32> -> vector<8x256xf32>
    %85 = arith.addf %83, %84 : vector<8x256xf32>
    %86 = vector.extract_strided_slice %85 {offsets = [0, 0], sizes = [8, 192], strides = [1, 1]} : vector<8x256xf32> to vector<8x192xf32>
    %87 = arith.negf %86 : vector<8x192xf32>
    %88 = math.exp %87 : vector<8x192xf32>
    %cst_31 = arith.constant 1.000000e+00 : f32
    %89 = vector.broadcast %cst_31 : f32 to vector<8x192xf32>
    %90 = arith.addf %89, %88 : vector<8x192xf32>
    %91 = arith.divf %89, %90 : vector<8x192xf32>
    %92 = vector.extract_strided_slice %85 {offsets = [0, 192], sizes = [8, 64], strides = [1, 1]} : vector<8x256xf32> to vector<8x64xf32>
    %93 = math.tanh %92 : vector<8x64xf32>
    %94 = vector.extract_strided_slice %91 {offsets = [0, 64], sizes = [8, 64], strides = [1, 1]} : vector<8x192xf32> to vector<8x64xf32>
    %95 = arith.mulf %94, %73 : vector<8x64xf32>
    %96 = vector.extract_strided_slice %91 {offsets = [0, 0], sizes = [8, 64], strides = [1, 1]} : vector<8x192xf32> to vector<8x64xf32>
    %97 = arith.mulf %96, %93 : vector<8x64xf32>
    %98 = arith.addf %95, %97 : vector<8x64xf32>
    %99 = vector.extract_strided_slice %91 {offsets = [0, 128], sizes = [8, 64], strides = [1, 1]} : vector<8x192xf32> to vector<8x64xf32>
    %100 = math.tanh %98 : vector<8x64xf32>
    %101 = arith.mulf %99, %100 : vector<8x64xf32>
    %102 = vector.extract_strided_slice %101 {offsets = [0, 0], sizes = [8, 32], strides = [1, 1]} : vector<8x64xf32> to vector<8x32xf32>
    %c16_32 = arith.constant 16 : index
    %c0_33 = arith.constant 0 : index
    %103 = vector.load %arg9[%c16_32, %c0_33] : memref<64x64xf32, #tpu.memory_space<vmem>>, vector<8x32xf32>
    tpu.vector_store %arg9[%c16_32, %c0_33], %102 {strides = array<i32>} : memref<64x64xf32, #tpu.memory_space<vmem>>, vector<8x32xf32>,
    %104 = vector.extract_strided_slice %101 {offsets = [0, 32], sizes = [8, 32], strides = [1, 1]} : vector<8x64xf32> to vector<8x32xf32>
    %c40_34 = arith.constant 40 : index
    %c32_35 = arith.constant 32 : index
    %105 = vector.load %arg9[%c40_34, %c32_35] : memref<64x64xf32, #tpu.memory_space<vmem>>, vector<8x32xf32>
    tpu.vector_store %arg9[%c40_34, %c32_35], %104 {strides = array<i32>} : memref<64x64xf32, #tpu.memory_space<vmem>>, vector<8x32xf32>,
    %c24 = arith.constant 24 : index
    %c0_36 = arith.constant 0 : index
    %106 = vector.load %arg10[%c24, %c0_36] : memref<64x256xf32, #tpu.memory_space<vmem>>, vector<8x256xf32>
    %c32_37 = arith.constant 32 : index
    %c0_38 = arith.constant 0 : index
    %107 = vector.load %arg10[%c32_37, %c0_38] : memref<64x256xf32, #tpu.memory_space<vmem>>, vector<8x256xf32>
    %108 = arith.select %18, %106, %107 : vector<8x256xi1>, vector<8x256xf32>
    %cst_39 = arith.constant dense<0.000000e+00> : vector<8x256xf32>
    %109 = tpu.matmul %101, %28, %cst_39 {dimension_numbers = #tpu.dot_dimension_numbers<[1], [0], [0], [1], [0, 0, 1, 1], [], []>} : vector<8x64xf32>, vector<64x256xf32>, vector<8x256xf32> -> vector<8x256xf32>
    %110 = arith.addf %108, %109 : vector<8x256xf32>
    %111 = vector.extract_strided_slice %110 {offsets = [0, 0], sizes = [8, 192], strides = [1, 1]} : vector<8x256xf32> to vector<8x192xf32>
    %112 = arith.negf %111 : vector<8x192xf32>
    %113 = math.exp %112 : vector<8x192xf32>
    %cst_40 = arith.constant 1.000000e+00 : f32
    %114 = vector.broadcast %cst_40 : f32 to vector<8x192xf32>
    %115 = arith.addf %114, %113 : vector<8x192xf32>
    %116 = arith.divf %114, %115 : vector<8x192xf32>
    %117 = vector.extract_strided_slice %110 {offsets = [0, 192], sizes = [8, 64], strides = [1, 1]} : vector<8x256xf32> to vector<8x64xf32>
    %118 = math.tanh %117 : vector<8x64xf32>
    %119 = vector.extract_strided_slice %116 {offsets = [0, 64], sizes = [8, 64], strides = [1, 1]} : vector<8x192xf32> to vector<8x64xf32>
    %120 = arith.mulf %119, %98 : vector<8x64xf32>
    %121 = vector.extract_strided_slice %116 {offsets = [0, 0], sizes = [8, 64], strides = [1, 1]} : vector<8x192xf32> to vector<8x64xf32>
    %122 = arith.mulf %121, %118 : vector<8x64xf32>
    %123 = arith.addf %120, %122 : vector<8x64xf32>
    %124 = vector.extract_strided_slice %116 {offsets = [0, 128], sizes = [8, 64], strides = [1, 1]} : vector<8x192xf32> to vector<8x64xf32>
    %125 = math.tanh %123 : vector<8x64xf32>
    %126 = arith.mulf %124, %125 : vector<8x64xf32>
    %127 = vector.extract_strided_slice %126 {offsets = [0, 0], sizes = [8, 32], strides = [1, 1]} : vector<8x64xf32> to vector<8x32xf32>
    %c24_41 = arith.constant 24 : index
    %c0_42 = arith.constant 0 : index
    %128 = vector.load %arg9[%c24_41, %c0_42] : memref<64x64xf32, #tpu.memory_space<vmem>>, vector<8x32xf32>
    tpu.vector_store %arg9[%c24_41, %c0_42], %127 {strides = array<i32>} : memref<64x64xf32, #tpu.memory_space<vmem>>, vector<8x32xf32>,
    %129 = vector.extract_strided_slice %126 {offsets = [0, 32], sizes = [8, 32], strides = [1, 1]} : vector<8x64xf32> to vector<8x32xf32>
    %c32_43 = arith.constant 32 : index
    %c32_44 = arith.constant 32 : index
    %130 = vector.load %arg9[%c32_43, %c32_44] : memref<64x64xf32, #tpu.memory_space<vmem>>, vector<8x32xf32>
    tpu.vector_store %arg9[%c32_43, %c32_44], %129 {strides = array<i32>} : memref<64x64xf32, #tpu.memory_space<vmem>>, vector<8x32xf32>,
    %c32_45 = arith.constant 32 : index
    %c0_46 = arith.constant 0 : index
    %131 = vector.load %arg10[%c32_45, %c0_46] : memref<64x256xf32, #tpu.memory_space<vmem>>, vector<8x256xf32>
    %c24_47 = arith.constant 24 : index
    %c0_48 = arith.constant 0 : index
    %132 = vector.load %arg10[%c24_47, %c0_48] : memref<64x256xf32, #tpu.memory_space<vmem>>, vector<8x256xf32>
    %133 = arith.select %18, %131, %132 : vector<8x256xi1>, vector<8x256xf32>
    %cst_49 = arith.constant dense<0.000000e+00> : vector<8x256xf32>
    %134 = tpu.matmul %126, %28, %cst_49 {dimension_numbers = #tpu.dot_dimension_numbers<[1], [0], [0], [1], [0, 0, 1, 1], [], []>} : vector<8x64xf32>, vector<64x256xf32>, vector<8x256xf32> -> vector<8x256xf32>
    %135 = arith.addf %133, %134 : vector<8x256xf32>
    %136 = vector.extract_strided_slice %135 {offsets = [0, 0], sizes = [8, 192], strides = [1, 1]} : vector<8x256xf32> to vector<8x192xf32>
    %137 = arith.negf %136 : vector<8x192xf32>
    %138 = math.exp %137 : vector<8x192xf32>
    %cst_50 = arith.constant 1.000000e+00 : f32
    %139 = vector.broadcast %cst_50 : f32 to vector<8x192xf32>
    %140 = arith.addf %139, %138 : vector<8x192xf32>
    %141 = arith.divf %139, %140 : vector<8x192xf32>
    %142 = vector.extract_strided_slice %135 {offsets = [0, 192], sizes = [8, 64], strides = [1, 1]} : vector<8x256xf32> to vector<8x64xf32>
    %143 = math.tanh %142 : vector<8x64xf32>
    %144 = vector.extract_strided_slice %141 {offsets = [0, 64], sizes = [8, 64], strides = [1, 1]} : vector<8x192xf32> to vector<8x64xf32>
    %145 = arith.mulf %144, %123 : vector<8x64xf32>
    %146 = vector.extract_strided_slice %141 {offsets = [0, 0], sizes = [8, 64], strides = [1, 1]} : vector<8x192xf32> to vector<8x64xf32>
    %147 = arith.mulf %146, %143 : vector<8x64xf32>
    %148 = arith.addf %145, %147 : vector<8x64xf32>
    %149 = vector.extract_strided_slice %141 {offsets = [0, 128], sizes = [8, 64], strides = [1, 1]} : vector<8x192xf32> to vector<8x64xf32>
    %150 = math.tanh %148 : vector<8x64xf32>
    %151 = arith.mulf %149, %150 : vector<8x64xf32>
    %152 = vector.extract_strided_slice %151 {offsets = [0, 0], sizes = [8, 32], strides = [1, 1]} : vector<8x64xf32> to vector<8x32xf32>
    %c32_51 = arith.constant 32 : index
    %c0_52 = arith.constant 0 : index
    %153 = vector.load %arg9[%c32_51, %c0_52] : memref<64x64xf32, #tpu.memory_space<vmem>>, vector<8x32xf32>
    tpu.vector_store %arg9[%c32_51, %c0_52], %152 {strides = array<i32>} : memref<64x64xf32, #tpu.memory_space<vmem>>, vector<8x32xf32>,
    %154 = vector.extract_strided_slice %151 {offsets = [0, 32], sizes = [8, 32], strides = [1, 1]} : vector<8x64xf32> to vector<8x32xf32>
    %c24_53 = arith.constant 24 : index
    %c32_54 = arith.constant 32 : index
    %155 = vector.load %arg9[%c24_53, %c32_54] : memref<64x64xf32, #tpu.memory_space<vmem>>, vector<8x32xf32>
    tpu.vector_store %arg9[%c24_53, %c32_54], %154 {strides = array<i32>} : memref<64x64xf32, #tpu.memory_space<vmem>>, vector<8x32xf32>,
    %c40_55 = arith.constant 40 : index
    %c0_56 = arith.constant 0 : index
    %156 = vector.load %arg10[%c40_55, %c0_56] : memref<64x256xf32, #tpu.memory_space<vmem>>, vector<8x256xf32>
    %c16_57 = arith.constant 16 : index
    %c0_58 = arith.constant 0 : index
    %157 = vector.load %arg10[%c16_57, %c0_58] : memref<64x256xf32, #tpu.memory_space<vmem>>, vector<8x256xf32>
    %158 = arith.select %18, %156, %157 : vector<8x256xi1>, vector<8x256xf32>
    %cst_59 = arith.constant dense<0.000000e+00> : vector<8x256xf32>
    %159 = tpu.matmul %151, %28, %cst_59 {dimension_numbers = #tpu.dot_dimension_numbers<[1], [0], [0], [1], [0, 0, 1, 1], [], []>} : vector<8x64xf32>, vector<64x256xf32>, vector<8x256xf32> -> vector<8x256xf32>
    %160 = arith.addf %158, %159 : vector<8x256xf32>
    %161 = vector.extract_strided_slice %160 {offsets = [0, 0], sizes = [8, 192], strides = [1, 1]} : vector<8x256xf32> to vector<8x192xf32>
    %162 = arith.negf %161 : vector<8x192xf32>
    %163 = math.exp %162 : vector<8x192xf32>
    %cst_60 = arith.constant 1.000000e+00 : f32
    %164 = vector.broadcast %cst_60 : f32 to vector<8x192xf32>
    %165 = arith.addf %164, %163 : vector<8x192xf32>
    %166 = arith.divf %164, %165 : vector<8x192xf32>
    %167 = vector.extract_strided_slice %160 {offsets = [0, 192], sizes = [8, 64], strides = [1, 1]} : vector<8x256xf32> to vector<8x64xf32>
    %168 = math.tanh %167 : vector<8x64xf32>
    %169 = vector.extract_strided_slice %166 {offsets = [0, 64], sizes = [8, 64], strides = [1, 1]} : vector<8x192xf32> to vector<8x64xf32>
    %170 = arith.mulf %169, %148 : vector<8x64xf32>
    %171 = vector.extract_strided_slice %166 {offsets = [0, 0], sizes = [8, 64], strides = [1, 1]} : vector<8x192xf32> to vector<8x64xf32>
    %172 = arith.mulf %171, %168 : vector<8x64xf32>
    %173 = arith.addf %170, %172 : vector<8x64xf32>
    %174 = vector.extract_strided_slice %166 {offsets = [0, 128], sizes = [8, 64], strides = [1, 1]} : vector<8x192xf32> to vector<8x64xf32>
    %175 = math.tanh %173 : vector<8x64xf32>
    %176 = arith.mulf %174, %175 : vector<8x64xf32>
    %177 = vector.extract_strided_slice %176 {offsets = [0, 0], sizes = [8, 32], strides = [1, 1]} : vector<8x64xf32> to vector<8x32xf32>
    %c40_61 = arith.constant 40 : index
    %c0_62 = arith.constant 0 : index
    %178 = vector.load %arg9[%c40_61, %c0_62] : memref<64x64xf32, #tpu.memory_space<vmem>>, vector<8x32xf32>
    tpu.vector_store %arg9[%c40_61, %c0_62], %177 {strides = array<i32>} : memref<64x64xf32, #tpu.memory_space<vmem>>, vector<8x32xf32>,
    %179 = vector.extract_strided_slice %176 {offsets = [0, 32], sizes = [8, 32], strides = [1, 1]} : vector<8x64xf32> to vector<8x32xf32>
    %c16_63 = arith.constant 16 : index
    %c32_64 = arith.constant 32 : index
    %180 = vector.load %arg9[%c16_63, %c32_64] : memref<64x64xf32, #tpu.memory_space<vmem>>, vector<8x32xf32>
    tpu.vector_store %arg9[%c16_63, %c32_64], %179 {strides = array<i32>} : memref<64x64xf32, #tpu.memory_space<vmem>>, vector<8x32xf32>,
    %c48_65 = arith.constant 48 : index
    %c0_66 = arith.constant 0 : index
    %181 = vector.load %arg10[%c48_65, %c0_66] : memref<64x256xf32, #tpu.memory_space<vmem>>, vector<8x256xf32>
    %c8_67 = arith.constant 8 : index
    %c0_68 = arith.constant 0 : index
    %182 = vector.load %arg10[%c8_67, %c0_68] : memref<64x256xf32, #tpu.memory_space<vmem>>, vector<8x256xf32>
    %183 = arith.select %18, %181, %182 : vector<8x256xi1>, vector<8x256xf32>
    %cst_69 = arith.constant dense<0.000000e+00> : vector<8x256xf32>
    %184 = tpu.matmul %176, %28, %cst_69 {dimension_numbers = #tpu.dot_dimension_numbers<[1], [0], [0], [1], [0, 0, 1, 1], [], []>} : vector<8x64xf32>, vector<64x256xf32>, vector<8x256xf32> -> vector<8x256xf32>
    %185 = arith.addf %183, %184 : vector<8x256xf32>
    %186 = vector.extract_strided_slice %185 {offsets = [0, 0], sizes = [8, 192], strides = [1, 1]} : vector<8x256xf32> to vector<8x192xf32>
    %187 = arith.negf %186 : vector<8x192xf32>
    %188 = math.exp %187 : vector<8x192xf32>
    %cst_70 = arith.constant 1.000000e+00 : f32
    %189 = vector.broadcast %cst_70 : f32 to vector<8x192xf32>
    %190 = arith.addf %189, %188 : vector<8x192xf32>
    %191 = arith.divf %189, %190 : vector<8x192xf32>
    %192 = vector.extract_strided_slice %185 {offsets = [0, 192], sizes = [8, 64], strides = [1, 1]} : vector<8x256xf32> to vector<8x64xf32>
    %193 = math.tanh %192 : vector<8x64xf32>
    %194 = vector.extract_strided_slice %191 {offsets = [0, 64], sizes = [8, 64], strides = [1, 1]} : vector<8x192xf32> to vector<8x64xf32>
    %195 = arith.mulf %194, %173 : vector<8x64xf32>
    %196 = vector.extract_strided_slice %191 {offsets = [0, 0], sizes = [8, 64], strides = [1, 1]} : vector<8x192xf32> to vector<8x64xf32>
    %197 = arith.mulf %196, %193 : vector<8x64xf32>
    %198 = arith.addf %195, %197 : vector<8x64xf32>
    %199 = vector.extract_strided_slice %191 {offsets = [0, 128], sizes = [8, 64], strides = [1, 1]} : vector<8x192xf32> to vector<8x64xf32>
    %200 = math.tanh %198 : vector<8x64xf32>
    %201 = arith.mulf %199, %200 : vector<8x64xf32>
    %202 = vector.extract_strided_slice %201 {offsets = [0, 0], sizes = [8, 32], strides = [1, 1]} : vector<8x64xf32> to vector<8x32xf32>
    %c48_71 = arith.constant 48 : index
    %c0_72 = arith.constant 0 : index
    %203 = vector.load %arg9[%c48_71, %c0_72] : memref<64x64xf32, #tpu.memory_space<vmem>>, vector<8x32xf32>
    tpu.vector_store %arg9[%c48_71, %c0_72], %202 {strides = array<i32>} : memref<64x64xf32, #tpu.memory_space<vmem>>, vector<8x32xf32>,
    %204 = vector.extract_strided_slice %201 {offsets = [0, 32], sizes = [8, 32], strides = [1, 1]} : vector<8x64xf32> to vector<8x32xf32>
    %c8_73 = arith.constant 8 : index
    %c32_74 = arith.constant 32 : index
    %205 = vector.load %arg9[%c8_73, %c32_74] : memref<64x64xf32, #tpu.memory_space<vmem>>, vector<8x32xf32>
    tpu.vector_store %arg9[%c8_73, %c32_74], %204 {strides = array<i32>} : memref<64x64xf32, #tpu.memory_space<vmem>>, vector<8x32xf32>,
    %c56_75 = arith.constant 56 : index
    %c0_76 = arith.constant 0 : index
    %206 = vector.load %arg10[%c56_75, %c0_76] : memref<64x256xf32, #tpu.memory_space<vmem>>, vector<8x256xf32>
    %c0_77 = arith.constant 0 : index
    %c0_78 = arith.constant 0 : index
    %207 = vector.load %arg10[%c0_77, %c0_78] : memref<64x256xf32, #tpu.memory_space<vmem>>, vector<8x256xf32>
    %208 = arith.select %18, %206, %207 : vector<8x256xi1>, vector<8x256xf32>
    %cst_79 = arith.constant dense<0.000000e+00> : vector<8x256xf32>
    %209 = tpu.matmul %201, %28, %cst_79 {dimension_numbers = #tpu.dot_dimension_numbers<[1], [0], [0], [1], [0, 0, 1, 1], [], []>} : vector<8x64xf32>, vector<64x256xf32>, vector<8x256xf32> -> vector<8x256xf32>
    %210 = arith.addf %208, %209 : vector<8x256xf32>
    %211 = vector.extract_strided_slice %210 {offsets = [0, 0], sizes = [8, 192], strides = [1, 1]} : vector<8x256xf32> to vector<8x192xf32>
    %212 = arith.negf %211 : vector<8x192xf32>
    %213 = math.exp %212 : vector<8x192xf32>
    %cst_80 = arith.constant 1.000000e+00 : f32
    %214 = vector.broadcast %cst_80 : f32 to vector<8x192xf32>
    %215 = arith.addf %214, %213 : vector<8x192xf32>
    %216 = arith.divf %214, %215 : vector<8x192xf32>
    %217 = vector.extract_strided_slice %210 {offsets = [0, 192], sizes = [8, 64], strides = [1, 1]} : vector<8x256xf32> to vector<8x64xf32>
    %218 = math.tanh %217 : vector<8x64xf32>
    %219 = vector.extract_strided_slice %216 {offsets = [0, 64], sizes = [8, 64], strides = [1, 1]} : vector<8x192xf32> to vector<8x64xf32>
    %220 = arith.mulf %219, %198 : vector<8x64xf32>
    %221 = vector.extract_strided_slice %216 {offsets = [0, 0], sizes = [8, 64], strides = [1, 1]} : vector<8x192xf32> to vector<8x64xf32>
    %222 = arith.mulf %221, %218 : vector<8x64xf32>
    %223 = arith.addf %220, %222 : vector<8x64xf32>
    %224 = vector.extract_strided_slice %216 {offsets = [0, 128], sizes = [8, 64], strides = [1, 1]} : vector<8x192xf32> to vector<8x64xf32>
    %225 = math.tanh %223 : vector<8x64xf32>
    %226 = arith.mulf %224, %225 : vector<8x64xf32>
    %227 = vector.extract_strided_slice %226 {offsets = [0, 0], sizes = [8, 32], strides = [1, 1]} : vector<8x64xf32> to vector<8x32xf32>
    %c56_81 = arith.constant 56 : index
    %c0_82 = arith.constant 0 : index
    %228 = vector.load %arg9[%c56_81, %c0_82] : memref<64x64xf32, #tpu.memory_space<vmem>>, vector<8x32xf32>
    tpu.vector_store %arg9[%c56_81, %c0_82], %227 {strides = array<i32>} : memref<64x64xf32, #tpu.memory_space<vmem>>, vector<8x32xf32>,
    %229 = vector.extract_strided_slice %226 {offsets = [0, 32], sizes = [8, 32], strides = [1, 1]} : vector<8x64xf32> to vector<8x32xf32>
    %c0_83 = arith.constant 0 : index
    %c32_84 = arith.constant 32 : index
    %230 = vector.load %arg9[%c0_83, %c32_84] : memref<64x64xf32, #tpu.memory_space<vmem>>, vector<8x32xf32>
    tpu.vector_store %arg9[%c0_83, %c32_84], %229 {strides = array<i32>} : memref<64x64xf32, #tpu.memory_space<vmem>>, vector<8x32xf32>,
    %c0_85 = arith.constant 0 : index
    %c0_86 = arith.constant 0 : index
    %231 = vector.load %arg9[%c0_85, %c0_86] : memref<64x64xf32, #tpu.memory_space<vmem>>, vector<64x64xf32>
    %c0_87 = arith.constant 0 : index
    %c0_88 = arith.constant 0 : index
    %232 = vector.load %arg3[%c0_87, %c0_88] : memref<64x256xf32, #tpu.memory_space<vmem>>, vector<64x256xf32>
    %cst_89 = arith.constant dense<0.000000e+00> : vector<64x256xf32>
    %233 = tpu.matmul %231, %232, %cst_89 {dimension_numbers = #tpu.dot_dimension_numbers<[1], [0], [0], [1], [0, 0, 1, 1], [], []>} : vector<64x64xf32>, vector<64x256xf32>, vector<64x256xf32> -> vector<64x256xf32>
    %c0_90 = arith.constant 0 : index
    %c0_91 = arith.constant 0 : index
    %234 = vector.load %arg4[%c0_90, %c0_91] : memref<1x256xf32, #tpu.memory_space<vmem>>, vector<1x256xf32>
    %235 = vector.broadcast %234 : vector<1x256xf32> to vector<64x256xf32>
    %236 = arith.addf %233, %235 : vector<64x256xf32>
    %c0_92 = arith.constant 0 : index
    %c0_93 = arith.constant 0 : index
    %237 = vector.load %arg10[%c0_92, %c0_93] : memref<64x256xf32, #tpu.memory_space<vmem>>, vector<64x256xf32>
    tpu.vector_store %arg10[%c0_92, %c0_93], %236 {strides = array<i32>} : memref<64x256xf32, #tpu.memory_space<vmem>>, vector<64x256xf32>,
    %c0_94 = arith.constant 0 : index
    %c0_95 = arith.constant 0 : index
    %238 = vector.load %arg5[%c0_94, %c0_95] : memref<64x256xf32, #tpu.memory_space<vmem>>, vector<64x256xf32>
    %cst_96 = arith.constant 0.000000e+00 : f32
    %239 = vector.broadcast %cst_96 : f32 to vector<8x64xf32>
    %cst_97 = arith.constant 0.000000e+00 : f32
    %240 = vector.broadcast %cst_97 : f32 to vector<8x64xf32>
    %c0_98 = arith.constant 0 : index
    %c0_99 = arith.constant 0 : index
    %241 = vector.load %arg10[%c0_98, %c0_99] : memref<64x256xf32, #tpu.memory_space<vmem>>, vector<8x256xf32>
    %c56_100 = arith.constant 56 : index
    %c0_101 = arith.constant 0 : index
    %242 = vector.load %arg10[%c56_100, %c0_101] : memref<64x256xf32, #tpu.memory_space<vmem>>, vector<8x256xf32>
    %243 = arith.select %18, %241, %242 : vector<8x256xi1>, vector<8x256xf32>
    %cst_102 = arith.constant dense<0.000000e+00> : vector<8x256xf32>
    %244 = tpu.matmul %239, %238, %cst_102 {dimension_numbers = #tpu.dot_dimension_numbers<[1], [0], [0], [1], [0, 0, 1, 1], [], []>} : vector<8x64xf32>, vector<64x256xf32>, vector<8x256xf32> -> vector<8x256xf32>
    %245 = arith.addf %243, %244 : vector<8x256xf32>
    %246 = vector.extract_strided_slice %245 {offsets = [0, 0], sizes = [8, 192], strides = [1, 1]} : vector<8x256xf32> to vector<8x192xf32>
    %247 = arith.negf %246 : vector<8x192xf32>
    %248 = math.exp %247 : vector<8x192xf32>
    %cst_103 = arith.constant 1.000000e+00 : f32
    %249 = vector.broadcast %cst_103 : f32 to vector<8x192xf32>
    %250 = arith.addf %249, %248 : vector<8x192xf32>
    %251 = arith.divf %249, %250 : vector<8x192xf32>
    %252 = vector.extract_strided_slice %245 {offsets = [0, 192], sizes = [8, 64], strides = [1, 1]} : vector<8x256xf32> to vector<8x64xf32>
    %253 = math.tanh %252 : vector<8x64xf32>
    %254 = vector.extract_strided_slice %251 {offsets = [0, 64], sizes = [8, 64], strides = [1, 1]} : vector<8x192xf32> to vector<8x64xf32>
    %255 = arith.mulf %254, %240 : vector<8x64xf32>
    %256 = vector.extract_strided_slice %251 {offsets = [0, 0], sizes = [8, 64], strides = [1, 1]} : vector<8x192xf32> to vector<8x64xf32>
    %257 = arith.mulf %256, %253 : vector<8x64xf32>
    %258 = arith.addf %255, %257 : vector<8x64xf32>
    %259 = vector.extract_strided_slice %251 {offsets = [0, 128], sizes = [8, 64], strides = [1, 1]} : vector<8x192xf32> to vector<8x64xf32>
    %260 = math.tanh %258 : vector<8x64xf32>
    %261 = arith.mulf %259, %260 : vector<8x64xf32>
    %262 = vector.extract_strided_slice %261 {offsets = [0, 0], sizes = [8, 32], strides = [1, 1]} : vector<8x64xf32> to vector<8x32xf32>
    %c0_104 = arith.constant 0 : index
    %c0_105 = arith.constant 0 : index
    %263 = vector.load %arg9[%c0_104, %c0_105] : memref<64x64xf32, #tpu.memory_space<vmem>>, vector<8x32xf32>
    tpu.vector_store %arg9[%c0_104, %c0_105], %262 {strides = array<i32>} : memref<64x64xf32, #tpu.memory_space<vmem>>, vector<8x32xf32>,
    %264 = vector.extract_strided_slice %261 {offsets = [0, 32], sizes = [8, 32], strides = [1, 1]} : vector<8x64xf32> to vector<8x32xf32>
    %c56_106 = arith.constant 56 : index
    %c32_107 = arith.constant 32 : index
    %265 = vector.load %arg9[%c56_106, %c32_107] : memref<64x64xf32, #tpu.memory_space<vmem>>, vector<8x32xf32>
    tpu.vector_store %arg9[%c56_106, %c32_107], %264 {strides = array<i32>} : memref<64x64xf32, #tpu.memory_space<vmem>>, vector<8x32xf32>,
    %c8_108 = arith.constant 8 : index
    %c0_109 = arith.constant 0 : index
    %266 = vector.load %arg10[%c8_108, %c0_109] : memref<64x256xf32, #tpu.memory_space<vmem>>, vector<8x256xf32>
    %c48_110 = arith.constant 48 : index
    %c0_111 = arith.constant 0 : index
    %267 = vector.load %arg10[%c48_110, %c0_111] : memref<64x256xf32, #tpu.memory_space<vmem>>, vector<8x256xf32>
    %268 = arith.select %18, %266, %267 : vector<8x256xi1>, vector<8x256xf32>
    %cst_112 = arith.constant dense<0.000000e+00> : vector<8x256xf32>
    %269 = tpu.matmul %261, %238, %cst_112 {dimension_numbers = #tpu.dot_dimension_numbers<[1], [0], [0], [1], [0, 0, 1, 1], [], []>} : vector<8x64xf32>, vector<64x256xf32>, vector<8x256xf32> -> vector<8x256xf32>
    %270 = arith.addf %268, %269 : vector<8x256xf32>
    %271 = vector.extract_strided_slice %270 {offsets = [0, 0], sizes = [8, 192], strides = [1, 1]} : vector<8x256xf32> to vector<8x192xf32>
    %272 = arith.negf %271 : vector<8x192xf32>
    %273 = math.exp %272 : vector<8x192xf32>
    %cst_113 = arith.constant 1.000000e+00 : f32
    %274 = vector.broadcast %cst_113 : f32 to vector<8x192xf32>
    %275 = arith.addf %274, %273 : vector<8x192xf32>
    %276 = arith.divf %274, %275 : vector<8x192xf32>
    %277 = vector.extract_strided_slice %270 {offsets = [0, 192], sizes = [8, 64], strides = [1, 1]} : vector<8x256xf32> to vector<8x64xf32>
    %278 = math.tanh %277 : vector<8x64xf32>
    %279 = vector.extract_strided_slice %276 {offsets = [0, 64], sizes = [8, 64], strides = [1, 1]} : vector<8x192xf32> to vector<8x64xf32>
    %280 = arith.mulf %279, %258 : vector<8x64xf32>
    %281 = vector.extract_strided_slice %276 {offsets = [0, 0], sizes = [8, 64], strides = [1, 1]} : vector<8x192xf32> to vector<8x64xf32>
    %282 = arith.mulf %281, %278 : vector<8x64xf32>
    %283 = arith.addf %280, %282 : vector<8x64xf32>
    %284 = vector.extract_strided_slice %276 {offsets = [0, 128], sizes = [8, 64], strides = [1, 1]} : vector<8x192xf32> to vector<8x64xf32>
    %285 = math.tanh %283 : vector<8x64xf32>
    %286 = arith.mulf %284, %285 : vector<8x64xf32>
    %287 = vector.extract_strided_slice %286 {offsets = [0, 0], sizes = [8, 32], strides = [1, 1]} : vector<8x64xf32> to vector<8x32xf32>
    %c8_114 = arith.constant 8 : index
    %c0_115 = arith.constant 0 : index
    %288 = vector.load %arg9[%c8_114, %c0_115] : memref<64x64xf32, #tpu.memory_space<vmem>>, vector<8x32xf32>
    tpu.vector_store %arg9[%c8_114, %c0_115], %287 {strides = array<i32>} : memref<64x64xf32, #tpu.memory_space<vmem>>, vector<8x32xf32>,
    %289 = vector.extract_strided_slice %286 {offsets = [0, 32], sizes = [8, 32], strides = [1, 1]} : vector<8x64xf32> to vector<8x32xf32>
    %c48_116 = arith.constant 48 : index
    %c32_117 = arith.constant 32 : index
    %290 = vector.load %arg9[%c48_116, %c32_117] : memref<64x64xf32, #tpu.memory_space<vmem>>, vector<8x32xf32>
    tpu.vector_store %arg9[%c48_116, %c32_117], %289 {strides = array<i32>} : memref<64x64xf32, #tpu.memory_space<vmem>>, vector<8x32xf32>,
    %c16_118 = arith.constant 16 : index
    %c0_119 = arith.constant 0 : index
    %291 = vector.load %arg10[%c16_118, %c0_119] : memref<64x256xf32, #tpu.memory_space<vmem>>, vector<8x256xf32>
    %c40_120 = arith.constant 40 : index
    %c0_121 = arith.constant 0 : index
    %292 = vector.load %arg10[%c40_120, %c0_121] : memref<64x256xf32, #tpu.memory_space<vmem>>, vector<8x256xf32>
    %293 = arith.select %18, %291, %292 : vector<8x256xi1>, vector<8x256xf32>
    %cst_122 = arith.constant dense<0.000000e+00> : vector<8x256xf32>
    %294 = tpu.matmul %286, %238, %cst_122 {dimension_numbers = #tpu.dot_dimension_numbers<[1], [0], [0], [1], [0, 0, 1, 1], [], []>} : vector<8x64xf32>, vector<64x256xf32>, vector<8x256xf32> -> vector<8x256xf32>
    %295 = arith.addf %293, %294 : vector<8x256xf32>
    %296 = vector.extract_strided_slice %295 {offsets = [0, 0], sizes = [8, 192], strides = [1, 1]} : vector<8x256xf32> to vector<8x192xf32>
    %297 = arith.negf %296 : vector<8x192xf32>
    %298 = math.exp %297 : vector<8x192xf32>
    %cst_123 = arith.constant 1.000000e+00 : f32
    %299 = vector.broadcast %cst_123 : f32 to vector<8x192xf32>
    %300 = arith.addf %299, %298 : vector<8x192xf32>
    %301 = arith.divf %299, %300 : vector<8x192xf32>
    %302 = vector.extract_strided_slice %295 {offsets = [0, 192], sizes = [8, 64], strides = [1, 1]} : vector<8x256xf32> to vector<8x64xf32>
    %303 = math.tanh %302 : vector<8x64xf32>
    %304 = vector.extract_strided_slice %301 {offsets = [0, 64], sizes = [8, 64], strides = [1, 1]} : vector<8x192xf32> to vector<8x64xf32>
    %305 = arith.mulf %304, %283 : vector<8x64xf32>
    %306 = vector.extract_strided_slice %301 {offsets = [0, 0], sizes = [8, 64], strides = [1, 1]} : vector<8x192xf32> to vector<8x64xf32>
    %307 = arith.mulf %306, %303 : vector<8x64xf32>
    %308 = arith.addf %305, %307 : vector<8x64xf32>
    %309 = vector.extract_strided_slice %301 {offsets = [0, 128], sizes = [8, 64], strides = [1, 1]} : vector<8x192xf32> to vector<8x64xf32>
    %310 = math.tanh %308 : vector<8x64xf32>
    %311 = arith.mulf %309, %310 : vector<8x64xf32>
    %312 = vector.extract_strided_slice %311 {offsets = [0, 0], sizes = [8, 32], strides = [1, 1]} : vector<8x64xf32> to vector<8x32xf32>
    %c16_124 = arith.constant 16 : index
    %c0_125 = arith.constant 0 : index
    %313 = vector.load %arg9[%c16_124, %c0_125] : memref<64x64xf32, #tpu.memory_space<vmem>>, vector<8x32xf32>
    tpu.vector_store %arg9[%c16_124, %c0_125], %312 {strides = array<i32>} : memref<64x64xf32, #tpu.memory_space<vmem>>, vector<8x32xf32>,
    %314 = vector.extract_strided_slice %311 {offsets = [0, 32], sizes = [8, 32], strides = [1, 1]} : vector<8x64xf32> to vector<8x32xf32>
    %c40_126 = arith.constant 40 : index
    %c32_127 = arith.constant 32 : index
    %315 = vector.load %arg9[%c40_126, %c32_127] : memref<64x64xf32, #tpu.memory_space<vmem>>, vector<8x32xf32>
    tpu.vector_store %arg9[%c40_126, %c32_127], %314 {strides = array<i32>} : memref<64x64xf32, #tpu.memory_space<vmem>>, vector<8x32xf32>,
    %c24_128 = arith.constant 24 : index
    %c0_129 = arith.constant 0 : index
    %316 = vector.load %arg10[%c24_128, %c0_129] : memref<64x256xf32, #tpu.memory_space<vmem>>, vector<8x256xf32>
    %c32_130 = arith.constant 32 : index
    %c0_131 = arith.constant 0 : index
    %317 = vector.load %arg10[%c32_130, %c0_131] : memref<64x256xf32, #tpu.memory_space<vmem>>, vector<8x256xf32>
    %318 = arith.select %18, %316, %317 : vector<8x256xi1>, vector<8x256xf32>
    %cst_132 = arith.constant dense<0.000000e+00> : vector<8x256xf32>
    %319 = tpu.matmul %311, %238, %cst_132 {dimension_numbers = #tpu.dot_dimension_numbers<[1], [0], [0], [1], [0, 0, 1, 1], [], []>} : vector<8x64xf32>, vector<64x256xf32>, vector<8x256xf32> -> vector<8x256xf32>
    %320 = arith.addf %318, %319 : vector<8x256xf32>
    %321 = vector.extract_strided_slice %320 {offsets = [0, 0], sizes = [8, 192], strides = [1, 1]} : vector<8x256xf32> to vector<8x192xf32>
    %322 = arith.negf %321 : vector<8x192xf32>
    %323 = math.exp %322 : vector<8x192xf32>
    %cst_133 = arith.constant 1.000000e+00 : f32
    %324 = vector.broadcast %cst_133 : f32 to vector<8x192xf32>
    %325 = arith.addf %324, %323 : vector<8x192xf32>
    %326 = arith.divf %324, %325 : vector<8x192xf32>
    %327 = vector.extract_strided_slice %320 {offsets = [0, 192], sizes = [8, 64], strides = [1, 1]} : vector<8x256xf32> to vector<8x64xf32>
    %328 = math.tanh %327 : vector<8x64xf32>
    %329 = vector.extract_strided_slice %326 {offsets = [0, 64], sizes = [8, 64], strides = [1, 1]} : vector<8x192xf32> to vector<8x64xf32>
    %330 = arith.mulf %329, %308 : vector<8x64xf32>
    %331 = vector.extract_strided_slice %326 {offsets = [0, 0], sizes = [8, 64], strides = [1, 1]} : vector<8x192xf32> to vector<8x64xf32>
    %332 = arith.mulf %331, %328 : vector<8x64xf32>
    %333 = arith.addf %330, %332 : vector<8x64xf32>
    %334 = vector.extract_strided_slice %326 {offsets = [0, 128], sizes = [8, 64], strides = [1, 1]} : vector<8x192xf32> to vector<8x64xf32>
    %335 = math.tanh %333 : vector<8x64xf32>
    %336 = arith.mulf %334, %335 : vector<8x64xf32>
    %337 = vector.extract_strided_slice %336 {offsets = [0, 0], sizes = [8, 32], strides = [1, 1]} : vector<8x64xf32> to vector<8x32xf32>
    %c24_134 = arith.constant 24 : index
    %c0_135 = arith.constant 0 : index
    %338 = vector.load %arg9[%c24_134, %c0_135] : memref<64x64xf32, #tpu.memory_space<vmem>>, vector<8x32xf32>
    tpu.vector_store %arg9[%c24_134, %c0_135], %337 {strides = array<i32>} : memref<64x64xf32, #tpu.memory_space<vmem>>, vector<8x32xf32>,
    %339 = vector.extract_strided_slice %336 {offsets = [0, 32], sizes = [8, 32], strides = [1, 1]} : vector<8x64xf32> to vector<8x32xf32>
    %c32_136 = arith.constant 32 : index
    %c32_137 = arith.constant 32 : index
    %340 = vector.load %arg9[%c32_136, %c32_137] : memref<64x64xf32, #tpu.memory_space<vmem>>, vector<8x32xf32>
    tpu.vector_store %arg9[%c32_136, %c32_137], %339 {strides = array<i32>} : memref<64x64xf32, #tpu.memory_space<vmem>>, vector<8x32xf32>,
    %c32_138 = arith.constant 32 : index
    %c0_139 = arith.constant 0 : index
    %341 = vector.load %arg10[%c32_138, %c0_139] : memref<64x256xf32, #tpu.memory_space<vmem>>, vector<8x256xf32>
    %c24_140 = arith.constant 24 : index
    %c0_141 = arith.constant 0 : index
    %342 = vector.load %arg10[%c24_140, %c0_141] : memref<64x256xf32, #tpu.memory_space<vmem>>, vector<8x256xf32>
    %343 = arith.select %18, %341, %342 : vector<8x256xi1>, vector<8x256xf32>
    %cst_142 = arith.constant dense<0.000000e+00> : vector<8x256xf32>
    %344 = tpu.matmul %336, %238, %cst_142 {dimension_numbers = #tpu.dot_dimension_numbers<[1], [0], [0], [1], [0, 0, 1, 1], [], []>} : vector<8x64xf32>, vector<64x256xf32>, vector<8x256xf32> -> vector<8x256xf32>
    %345 = arith.addf %343, %344 : vector<8x256xf32>
    %346 = vector.extract_strided_slice %345 {offsets = [0, 0], sizes = [8, 192], strides = [1, 1]} : vector<8x256xf32> to vector<8x192xf32>
    %347 = arith.negf %346 : vector<8x192xf32>
    %348 = math.exp %347 : vector<8x192xf32>
    %cst_143 = arith.constant 1.000000e+00 : f32
    %349 = vector.broadcast %cst_143 : f32 to vector<8x192xf32>
    %350 = arith.addf %349, %348 : vector<8x192xf32>
    %351 = arith.divf %349, %350 : vector<8x192xf32>
    %352 = vector.extract_strided_slice %345 {offsets = [0, 192], sizes = [8, 64], strides = [1, 1]} : vector<8x256xf32> to vector<8x64xf32>
    %353 = math.tanh %352 : vector<8x64xf32>
    %354 = vector.extract_strided_slice %351 {offsets = [0, 64], sizes = [8, 64], strides = [1, 1]} : vector<8x192xf32> to vector<8x64xf32>
    %355 = arith.mulf %354, %333 : vector<8x64xf32>
    %356 = vector.extract_strided_slice %351 {offsets = [0, 0], sizes = [8, 64], strides = [1, 1]} : vector<8x192xf32> to vector<8x64xf32>
    %357 = arith.mulf %356, %353 : vector<8x64xf32>
    %358 = arith.addf %355, %357 : vector<8x64xf32>
    %359 = vector.extract_strided_slice %351 {offsets = [0, 128], sizes = [8, 64], strides = [1, 1]} : vector<8x192xf32> to vector<8x64xf32>
    %360 = math.tanh %358 : vector<8x64xf32>
    %361 = arith.mulf %359, %360 : vector<8x64xf32>
    %362 = vector.extract_strided_slice %361 {offsets = [0, 0], sizes = [8, 32], strides = [1, 1]} : vector<8x64xf32> to vector<8x32xf32>
    %c32_144 = arith.constant 32 : index
    %c0_145 = arith.constant 0 : index
    %363 = vector.load %arg9[%c32_144, %c0_145] : memref<64x64xf32, #tpu.memory_space<vmem>>, vector<8x32xf32>
    tpu.vector_store %arg9[%c32_144, %c0_145], %362 {strides = array<i32>} : memref<64x64xf32, #tpu.memory_space<vmem>>, vector<8x32xf32>,
    %364 = vector.extract_strided_slice %361 {offsets = [0, 32], sizes = [8, 32], strides = [1, 1]} : vector<8x64xf32> to vector<8x32xf32>
    %c24_146 = arith.constant 24 : index
    %c32_147 = arith.constant 32 : index
    %365 = vector.load %arg9[%c24_146, %c32_147] : memref<64x64xf32, #tpu.memory_space<vmem>>, vector<8x32xf32>
    tpu.vector_store %arg9[%c24_146, %c32_147], %364 {strides = array<i32>} : memref<64x64xf32, #tpu.memory_space<vmem>>, vector<8x32xf32>,
    %c40_148 = arith.constant 40 : index
    %c0_149 = arith.constant 0 : index
    %366 = vector.load %arg10[%c40_148, %c0_149] : memref<64x256xf32, #tpu.memory_space<vmem>>, vector<8x256xf32>
    %c16_150 = arith.constant 16 : index
    %c0_151 = arith.constant 0 : index
    %367 = vector.load %arg10[%c16_150, %c0_151] : memref<64x256xf32, #tpu.memory_space<vmem>>, vector<8x256xf32>
    %368 = arith.select %18, %366, %367 : vector<8x256xi1>, vector<8x256xf32>
    %cst_152 = arith.constant dense<0.000000e+00> : vector<8x256xf32>
    %369 = tpu.matmul %361, %238, %cst_152 {dimension_numbers = #tpu.dot_dimension_numbers<[1], [0], [0], [1], [0, 0, 1, 1], [], []>} : vector<8x64xf32>, vector<64x256xf32>, vector<8x256xf32> -> vector<8x256xf32>
    %370 = arith.addf %368, %369 : vector<8x256xf32>
    %371 = vector.extract_strided_slice %370 {offsets = [0, 0], sizes = [8, 192], strides = [1, 1]} : vector<8x256xf32> to vector<8x192xf32>
    %372 = arith.negf %371 : vector<8x192xf32>
    %373 = math.exp %372 : vector<8x192xf32>
    %cst_153 = arith.constant 1.000000e+00 : f32
    %374 = vector.broadcast %cst_153 : f32 to vector<8x192xf32>
    %375 = arith.addf %374, %373 : vector<8x192xf32>
    %376 = arith.divf %374, %375 : vector<8x192xf32>
    %377 = vector.extract_strided_slice %370 {offsets = [0, 192], sizes = [8, 64], strides = [1, 1]} : vector<8x256xf32> to vector<8x64xf32>
    %378 = math.tanh %377 : vector<8x64xf32>
    %379 = vector.extract_strided_slice %376 {offsets = [0, 64], sizes = [8, 64], strides = [1, 1]} : vector<8x192xf32> to vector<8x64xf32>
    %380 = arith.mulf %379, %358 : vector<8x64xf32>
    %381 = vector.extract_strided_slice %376 {offsets = [0, 0], sizes = [8, 64], strides = [1, 1]} : vector<8x192xf32> to vector<8x64xf32>
    %382 = arith.mulf %381, %378 : vector<8x64xf32>
    %383 = arith.addf %380, %382 : vector<8x64xf32>
    %384 = vector.extract_strided_slice %376 {offsets = [0, 128], sizes = [8, 64], strides = [1, 1]} : vector<8x192xf32> to vector<8x64xf32>
    %385 = math.tanh %383 : vector<8x64xf32>
    %386 = arith.mulf %384, %385 : vector<8x64xf32>
    %387 = vector.extract_strided_slice %386 {offsets = [0, 0], sizes = [8, 32], strides = [1, 1]} : vector<8x64xf32> to vector<8x32xf32>
    %c40_154 = arith.constant 40 : index
    %c0_155 = arith.constant 0 : index
    %388 = vector.load %arg9[%c40_154, %c0_155] : memref<64x64xf32, #tpu.memory_space<vmem>>, vector<8x32xf32>
    tpu.vector_store %arg9[%c40_154, %c0_155], %387 {strides = array<i32>} : memref<64x64xf32, #tpu.memory_space<vmem>>, vector<8x32xf32>,
    %389 = vector.extract_strided_slice %386 {offsets = [0, 32], sizes = [8, 32], strides = [1, 1]} : vector<8x64xf32> to vector<8x32xf32>
    %c16_156 = arith.constant 16 : index
    %c32_157 = arith.constant 32 : index
    %390 = vector.load %arg9[%c16_156, %c32_157] : memref<64x64xf32, #tpu.memory_space<vmem>>, vector<8x32xf32>
    tpu.vector_store %arg9[%c16_156, %c32_157], %389 {strides = array<i32>} : memref<64x64xf32, #tpu.memory_space<vmem>>, vector<8x32xf32>,
    %c48_158 = arith.constant 48 : index
    %c0_159 = arith.constant 0 : index
    %391 = vector.load %arg10[%c48_158, %c0_159] : memref<64x256xf32, #tpu.memory_space<vmem>>, vector<8x256xf32>
    %c8_160 = arith.constant 8 : index
    %c0_161 = arith.constant 0 : index
    %392 = vector.load %arg10[%c8_160, %c0_161] : memref<64x256xf32, #tpu.memory_space<vmem>>, vector<8x256xf32>
    %393 = arith.select %18, %391, %392 : vector<8x256xi1>, vector<8x256xf32>
    %cst_162 = arith.constant dense<0.000000e+00> : vector<8x256xf32>
    %394 = tpu.matmul %386, %238, %cst_162 {dimension_numbers = #tpu.dot_dimension_numbers<[1], [0], [0], [1], [0, 0, 1, 1], [], []>} : vector<8x64xf32>, vector<64x256xf32>, vector<8x256xf32> -> vector<8x256xf32>
    %395 = arith.addf %393, %394 : vector<8x256xf32>
    %396 = vector.extract_strided_slice %395 {offsets = [0, 0], sizes = [8, 192], strides = [1, 1]} : vector<8x256xf32> to vector<8x192xf32>
    %397 = arith.negf %396 : vector<8x192xf32>
    %398 = math.exp %397 : vector<8x192xf32>
    %cst_163 = arith.constant 1.000000e+00 : f32
    %399 = vector.broadcast %cst_163 : f32 to vector<8x192xf32>
    %400 = arith.addf %399, %398 : vector<8x192xf32>
    %401 = arith.divf %399, %400 : vector<8x192xf32>
    %402 = vector.extract_strided_slice %395 {offsets = [0, 192], sizes = [8, 64], strides = [1, 1]} : vector<8x256xf32> to vector<8x64xf32>
    %403 = math.tanh %402 : vector<8x64xf32>
    %404 = vector.extract_strided_slice %401 {offsets = [0, 64], sizes = [8, 64], strides = [1, 1]} : vector<8x192xf32> to vector<8x64xf32>
    %405 = arith.mulf %404, %383 : vector<8x64xf32>
    %406 = vector.extract_strided_slice %401 {offsets = [0, 0], sizes = [8, 64], strides = [1, 1]} : vector<8x192xf32> to vector<8x64xf32>
    %407 = arith.mulf %406, %403 : vector<8x64xf32>
    %408 = arith.addf %405, %407 : vector<8x64xf32>
    %409 = vector.extract_strided_slice %401 {offsets = [0, 128], sizes = [8, 64], strides = [1, 1]} : vector<8x192xf32> to vector<8x64xf32>
    %410 = math.tanh %408 : vector<8x64xf32>
    %411 = arith.mulf %409, %410 : vector<8x64xf32>
    %412 = vector.extract_strided_slice %411 {offsets = [0, 0], sizes = [8, 32], strides = [1, 1]} : vector<8x64xf32> to vector<8x32xf32>
    %c48_164 = arith.constant 48 : index
    %c0_165 = arith.constant 0 : index
    %413 = vector.load %arg9[%c48_164, %c0_165] : memref<64x64xf32, #tpu.memory_space<vmem>>, vector<8x32xf32>
    tpu.vector_store %arg9[%c48_164, %c0_165], %412 {strides = array<i32>} : memref<64x64xf32, #tpu.memory_space<vmem>>, vector<8x32xf32>,
    %414 = vector.extract_strided_slice %411 {offsets = [0, 32], sizes = [8, 32], strides = [1, 1]} : vector<8x64xf32> to vector<8x32xf32>
    %c8_166 = arith.constant 8 : index
    %c32_167 = arith.constant 32 : index
    %415 = vector.load %arg9[%c8_166, %c32_167] : memref<64x64xf32, #tpu.memory_space<vmem>>, vector<8x32xf32>
    tpu.vector_store %arg9[%c8_166, %c32_167], %414 {strides = array<i32>} : memref<64x64xf32, #tpu.memory_space<vmem>>, vector<8x32xf32>,
    %c56_168 = arith.constant 56 : index
    %c0_169 = arith.constant 0 : index
    %416 = vector.load %arg10[%c56_168, %c0_169] : memref<64x256xf32, #tpu.memory_space<vmem>>, vector<8x256xf32>
    %c0_170 = arith.constant 0 : index
    %c0_171 = arith.constant 0 : index
    %417 = vector.load %arg10[%c0_170, %c0_171] : memref<64x256xf32, #tpu.memory_space<vmem>>, vector<8x256xf32>
    %418 = arith.select %18, %416, %417 : vector<8x256xi1>, vector<8x256xf32>
    %cst_172 = arith.constant dense<0.000000e+00> : vector<8x256xf32>
    %419 = tpu.matmul %411, %238, %cst_172 {dimension_numbers = #tpu.dot_dimension_numbers<[1], [0], [0], [1], [0, 0, 1, 1], [], []>} : vector<8x64xf32>, vector<64x256xf32>, vector<8x256xf32> -> vector<8x256xf32>
    %420 = arith.addf %418, %419 : vector<8x256xf32>
    %421 = vector.extract_strided_slice %420 {offsets = [0, 0], sizes = [8, 192], strides = [1, 1]} : vector<8x256xf32> to vector<8x192xf32>
    %422 = arith.negf %421 : vector<8x192xf32>
    %423 = math.exp %422 : vector<8x192xf32>
    %cst_173 = arith.constant 1.000000e+00 : f32
    %424 = vector.broadcast %cst_173 : f32 to vector<8x192xf32>
    %425 = arith.addf %424, %423 : vector<8x192xf32>
    %426 = arith.divf %424, %425 : vector<8x192xf32>
    %427 = vector.extract_strided_slice %420 {offsets = [0, 192], sizes = [8, 64], strides = [1, 1]} : vector<8x256xf32> to vector<8x64xf32>
    %428 = math.tanh %427 : vector<8x64xf32>
    %429 = vector.extract_strided_slice %426 {offsets = [0, 64], sizes = [8, 64], strides = [1, 1]} : vector<8x192xf32> to vector<8x64xf32>
    %430 = arith.mulf %429, %408 : vector<8x64xf32>
    %431 = vector.extract_strided_slice %426 {offsets = [0, 0], sizes = [8, 64], strides = [1, 1]} : vector<8x192xf32> to vector<8x64xf32>
    %432 = arith.mulf %431, %428 : vector<8x64xf32>
    %433 = arith.addf %430, %432 : vector<8x64xf32>
    %434 = vector.extract_strided_slice %426 {offsets = [0, 128], sizes = [8, 64], strides = [1, 1]} : vector<8x192xf32> to vector<8x64xf32>
    %435 = math.tanh %433 : vector<8x64xf32>
    %436 = arith.mulf %434, %435 : vector<8x64xf32>
    %437 = vector.extract_strided_slice %436 {offsets = [0, 0], sizes = [8, 32], strides = [1, 1]} : vector<8x64xf32> to vector<8x32xf32>
    %c56_174 = arith.constant 56 : index
    %c0_175 = arith.constant 0 : index
    %438 = vector.load %arg9[%c56_174, %c0_175] : memref<64x64xf32, #tpu.memory_space<vmem>>, vector<8x32xf32>
    tpu.vector_store %arg9[%c56_174, %c0_175], %437 {strides = array<i32>} : memref<64x64xf32, #tpu.memory_space<vmem>>, vector<8x32xf32>,
    %439 = vector.extract_strided_slice %436 {offsets = [0, 32], sizes = [8, 32], strides = [1, 1]} : vector<8x64xf32> to vector<8x32xf32>
    %c0_176 = arith.constant 0 : index
    %c32_177 = arith.constant 32 : index
    %440 = vector.load %arg9[%c0_176, %c32_177] : memref<64x64xf32, #tpu.memory_space<vmem>>, vector<8x32xf32>
    tpu.vector_store %arg9[%c0_176, %c32_177], %439 {strides = array<i32>} : memref<64x64xf32, #tpu.memory_space<vmem>>, vector<8x32xf32>,
    %c0_178 = arith.constant 0 : index
    %c0_179 = arith.constant 0 : index
    %441 = vector.load %arg9[%c0_178, %c0_179] : memref<64x64xf32, #tpu.memory_space<vmem>>, vector<64x64xf32>
    %c0_180 = arith.constant 0 : index
    %c0_181 = arith.constant 0 : index
    %442 = vector.load %arg6[%c0_180, %c0_181] : memref<64x128xf32, #tpu.memory_space<vmem>>, vector<64x128xf32>
    %cst_182 = arith.constant dense<0.000000e+00> : vector<64x128xf32>
    %443 = tpu.matmul %441, %442, %cst_182 {dimension_numbers = #tpu.dot_dimension_numbers<[1], [0], [0], [1], [0, 0, 1, 1], [], []>} : vector<64x64xf32>, vector<64x128xf32>, vector<64x128xf32> -> vector<64x128xf32>
    %c0_183 = arith.constant 0 : index
    %c0_184 = arith.constant 0 : index
    %444 = vector.load %arg7[%c0_183, %c0_184] : memref<1x128xf32, #tpu.memory_space<vmem>>, vector<1x128xf32>
    %445 = vector.broadcast %444 : vector<1x128xf32> to vector<64x128xf32>
    %446 = arith.addf %443, %445 : vector<64x128xf32>
    %447 = arith.negf %446 : vector<64x128xf32>
    %448 = math.exp %447 : vector<64x128xf32>
    %cst_185 = arith.constant 1.000000e+00 : f32
    %449 = vector.broadcast %cst_185 : f32 to vector<64x128xf32>
    %450 = arith.addf %449, %448 : vector<64x128xf32>
    %451 = arith.divf %449, %450 : vector<64x128xf32>
    %c0_186 = arith.constant 0 : index
    %c0_187 = arith.constant 0 : index
    %452 = vector.load %arg8[%c0_186, %c0_187] : memref<64x128xf32, #tpu.memory_space<vmem>>, vector<64x128xf32>
    tpu.vector_store %arg8[%c0_186, %c0_187], %451 {strides = array<i32>} : memref<64x128xf32, #tpu.memory_space<vmem>>, vector<64x128xf32>,
    return
  }
}

</mosaic_0001>

<llo_original>
// kernel: tpu_custom_call.1
$region0: #{tpu_custom_call.1}
  #allocation0 [shape = 'u32[]', space=smem, size = 0x4, offset = 0x4, fixed_abs, tag = 'smem constant byte address 0x4 - core index']
  #allocation1 [shape = 'u32[144,128]{1,0:T(1,128)}', space=vmem, size = 0x12000, scoped, tag = 'internal scratch']
  #allocation2 [shape = 'f32[64,64]{1,0:T(8,128)}', space=vmem, size = 0x8000, scoped, tag = 'scratch operand']
  #allocation3 [shape = 'f32[64,256]{1,0:T(8,128)}', space=vmem, size = 0x10000, scoped, tag = 'scratch operand']
  %s0 = inlined_call_operand.vmem [shape: s32[64,1], index: 0, kind: input, shape index: {}]
  %s1 = inlined_call_operand.hbm [shape: f32[16,256], index: 1, kind: input, shape index: {}]
  %s2 = inlined_call_operand.hbm [shape: f32[64,256], index: 2, kind: input, shape index: {}]
  %s3 = inlined_call_operand.hbm [shape: f32[64,256], index: 3, kind: input, shape index: {}]
  %s4 = inlined_call_operand.vmem [shape: f32[1,256], index: 4, kind: input, shape index: {}]
  %s5 = inlined_call_operand.hbm [shape: f32[64,256], index: 5, kind: input, shape index: {}]
  %s6 = inlined_call_operand.vmem [shape: f32[64,128], index: 6, kind: input, shape index: {}]
  %s7 = inlined_call_operand.vmem [shape: f32[1,128], index: 7, kind: input, shape index: {}]
  %s8 = inlined_call_operand.hbm [shape: f32[64,128], index: 8, kind: output, shape index: {}]
  %s9 = sld [smem:[#allocation0]]
  $region58: #{tpu_custom_call.1} parent=0
    _
  %s11 = ssub.s32 1, %s9
  %s12 = scalar_select 0, %s11, %s9
  $region1: #{tpu_custom_call.1} parent=0
    #allocation4 [shape = 'u8[16384]{0}', space=vmem, size = 0x4000, scoped, tag = 'input window, operand 1, single buffered']
    #allocation5 [shape = 's32[1]{0}', space=sflag, size = 0x4, scoped, tag = 'scoped memory for tpu_custom_call.1']
    #allocation6 [shape = 's32[1]{0}', space=sflag, size = 0x4, scoped, tag = 'scoped memory for tpu_custom_call.1']
    #allocation7 [shape = 'u8[65536]{0}', space=vmem, size = 0x10000, scoped, tag = 'input window, operand 2, single buffered']
    #allocation8 [shape = 's32[1]{0}', space=sflag, size = 0x4, scoped, tag = 'scoped memory for tpu_custom_call.1']
    #allocation9 [shape = 'u8[65536]{0}', space=vmem, size = 0x10000, scoped, tag = 'input window, operand 3, single buffered']
    #allocation10 [shape = 'u8[65536]{0}', space=vmem, size = 0x10000, scoped, tag = 'input window, operand 5, single buffered']
    #allocation11 [shape = 's32[1]{0}', space=sflag, size = 0x4, scoped, tag = 'scoped memory for tpu_custom_call.1']
    #allocation12 [shape = 'u8[32768]{0}', space=vmem, size = 0x8000, scoped, tag = 'output window, operand 0, single buffered']
    %13 = vsyncpa [#allocation5], 0
    %14 = vsyncpa [#allocation8], 0
    %15 = vsyncpa [#allocation11], 0
    %16 = vsyncpa [#allocation6], 0
    // Predicated region
    $region2: #{tpu_custom_call.1} parent=1 // pred_check
      _
    $region3: #{tpu_custom_call.1} parent=1 // pred_check_branch
      %18 = sbr.rel (0) target = $region5
    $region4: #{tpu_custom_call.1} parent=1 // pred_region
      _
    $region5: #{tpu_custom_call.1} parent=1 // pred_fallthru
      _
    // Predicated region
    $region6: #{tpu_custom_call.1} parent=1 // pred_check
      _
    $region7: #{tpu_custom_call.1} parent=1 // pred_check_branch
      %20 = sbr.rel (0) target = $region9
    $region8: #{tpu_custom_call.1} parent=1 // pred_region
      %s22 = ssub.s32 512, 512
      %23 = vsyncadd [#allocation5], %s22
      %s24 = sshll.u32 [#allocation4], 4
      %s25 = int_to_ptr.vmem [resolvable:$true] %s24
      %30 = dma.hbm_to_vmem [thread:$0]  %s1, 512, %s25, [#allocation5], 256, 256, 16
    $region9: #{tpu_custom_call.1} parent=1 // pred_fallthru
      _
    // Predicated region
    $region10: #{tpu_custom_call.1} parent=1 // pred_check
      _
    $region11: #{tpu_custom_call.1} parent=1 // pred_check_branch
      %32 = sbr.rel (0) target = $region13
    $region12: #{tpu_custom_call.1} parent=1 // pred_region
      %s34 = ssub.s32 2048, 2048
      %35 = vsyncadd [#allocation8], %s34
      %s36 = sshll.u32 [#allocation7], 4
      %s37 = int_to_ptr.vmem [resolvable:$true] %s36
      %42 = dma.hbm_to_vmem [thread:$0]  %s2, 2048, %s37, [#allocation8], 256, 256, 16
    $region13: #{tpu_custom_call.1} parent=1 // pred_fallthru
      _
    // Predicated region
    $region14: #{tpu_custom_call.1} parent=1 // pred_check
      _
    $region15: #{tpu_custom_call.1} parent=1 // pred_check_branch
      %44 = sbr.rel (0) target = $region17
    $region16: #{tpu_custom_call.1} parent=1 // pred_region
      %s46 = ssub.s32 2048, 2048
      %47 = vsyncadd [#allocation8], %s46
      %s48 = sshll.u32 [#allocation9], 4
      %s49 = int_to_ptr.vmem [resolvable:$true] %s48
      %54 = dma.hbm_to_vmem [thread:$0]  %s3, 2048, %s49, [#allocation8], 256, 256, 16
    $region17: #{tpu_custom_call.1} parent=1 // pred_fallthru
      _
    // Predicated region
    $region18: #{tpu_custom_call.1} parent=1 // pred_check
      _
    $region19: #{tpu_custom_call.1} parent=1 // pred_check_branch
      %56 = sbr.rel (0) target = $region21
    $region20: #{tpu_custom_call.1} parent=1 // pred_region
      _
    $region21: #{tpu_custom_call.1} parent=1 // pred_fallthru
      _
    // Predicated region
    $region22: #{tpu_custom_call.1} parent=1 // pred_check
      _
    $region23: #{tpu_custom_call.1} parent=1 // pred_check_branch
      %58 = sbr.rel (0) target = $region25
    $region24: #{tpu_custom_call.1} parent=1 // pred_region
      %s60 = ssub.s32 2048, 2048
      %61 = vsyncadd [#allocation11], %s60
      %s62 = sshll.u32 [#allocation10], 4
      %s63 = int_to_ptr.vmem [resolvable:$true] %s62
      %68 = dma.hbm_to_vmem [thread:$0]  %s5, 2048, %s63, [#allocation11], 256, 256, 16
    $region25: #{tpu_custom_call.1} parent=1 // pred_fallthru
      _
    // Predicated region
    $region26: #{tpu_custom_call.1} parent=1 // pred_check
      _
    $region27: #{tpu_custom_call.1} parent=1 // pred_check_branch
      %70 = sbr.rel (0) target = $region29
    $region28: #{tpu_custom_call.1} parent=1 // pred_region
      _
    $region29: #{tpu_custom_call.1} parent=1 // pred_fallthru
      _
    // Predicated region
    $region30: #{tpu_custom_call.1} parent=1 // pred_check
      _
    $region31: #{tpu_custom_call.1} parent=1 // pred_check_branch
      %72 = sbr.rel (0) target = $region33
    $region32: #{tpu_custom_call.1} parent=1 // pred_region
      _
    $region33: #{tpu_custom_call.1} parent=1 // pred_fallthru
      _
    // Predicated region
    $region34: #{tpu_custom_call.1} parent=1 // pred_check
      _
    $region35: #{tpu_custom_call.1} parent=1 // pred_check_branch
      %74 = sbr.rel (0) target = $region37
    $region36: #{tpu_custom_call.1} parent=1 // pred_region
      %75 = dma.done [#allocation5], 512
    $region37: #{tpu_custom_call.1} parent=1 // pred_fallthru
      _
    // Predicated region
    $region38: #{tpu_custom_call.1} parent=1 // pred_check
      _
    $region39: #{tpu_custom_call.1} parent=1 // pred_check_branch
      %77 = sbr.rel (0) target = $region41
    $region40: #{tpu_custom_call.1} parent=1 // pred_region
      %78 = dma.done [#allocation8], 2048
    $region41: #{tpu_custom_call.1} parent=1 // pred_fallthru
      _
    // Predicated region
    $region42: #{tpu_custom_call.1} parent=1 // pred_check
      _
    $region43: #{tpu_custom_call.1} parent=1 // pred_check_branch
      %80 = sbr.rel (0) target = $region45
    $region44: #{tpu_custom_call.1} parent=1 // pred_region
      %81 = dma.done [#allocation8], 2048
    $region45: #{tpu_custom_call.1} parent=1 // pred_fallthru
      _
    // Predicated region
    $region46: #{tpu_custom_call.1} parent=1 // pred_check
      _
    $region47: #{tpu_custom_call.1} parent=1 // pred_check_branch
      %83 = sbr.rel (0) target = $region49
    $region48: #{tpu_custom_call.1} parent=1 // pred_region
      %84 = dma.done [#allocation11], 2048
    $region49: #{tpu_custom_call.1} parent=1 // pred_fallthru
      _
    %v85 = vlaneseq
    %v86 = vand.u32 %v85, 127
    %v87 = vadd.s32 %v86, 128
    %vm88 = vcmp.lt.s32.totalorder %v86, 0
    %v89 = vsub.s32 0, %v86
    %v90 = vsel %vm88, %v89, %v86
    %v91 = vshrl.u32 %v90, 6
    %v92 = vand.u32 %v90, 63
    %v93 = vsub.s32 0, %v92
    %v94 = vsel %vm88, %v93, %v92
    %vm95 = vcmp.lt.s32.totalorder %v87, 0
    %v96 = vsub.s32 0, %v87
    %v97 = vsel %vm95, %v96, %v87
    %v98 = vshrl.u32 %v97, 6
    %v99 = vand.u32 %v97, 63
    %v100 = vsub.s32 0, %v99
    %v101 = vsel %vm95, %v100, %v99
    %vm102 = vcmp.ne.s32.totalorder %v94, 0
    %vm103 = vcmp.ne.s32.totalorder %v101, 0
    %vm104 = vcmp.lt.s32.totalorder %v94, 0
    %vm105 = vcmp.lt.s32.totalorder %v101, 0
    %vm106 = vmand %vm104, %vm102
    %vm107 = vmand %vm105, %vm103
    %v108 = vadd.s32 %v94, 64
    %v109 = vadd.s32 %v101, 64
    %v110 = vsel %vm106, %v108, %v94
    %v111 = vsel %vm107, %v109, %v101
    %vm112 = vcmp.lt.s32.totalorder %v110, 32
    %vm113 = vcmp.lt.s32.totalorder %v111, 32
    %v114 = vld [vmem:[%s0] sm:$0xff]
    %v115 = vld [vmem:[%s0 + $0x8] sm:$0xff]
    %v116 = vld [vmem:[%s0 + $0x10] sm:$0xff]
    %v117 = vld [vmem:[%s0 + $0x18] sm:$0xff]
    %v118 = vld [vmem:[%s0 + $0x20] sm:$0xff]
    %v119 = vld [vmem:[%s0 + $0x28] sm:$0xff]
    %v120 = vld [vmem:[%s0 + $0x30] sm:$0xff]
    %v121 = vld [vmem:[%s0 + $0x38] sm:$0xff]
    %122 = vset.pattern.permute.xlu0 0
    %123 = vperm.xlu0 %122, %v114
    %v124 = vpop.permute.xlu0 %123
    %125 = vset.pattern.permute.xlu0 0
    %126 = vperm.xlu0 %125, %v115
    %v127 = vpop.permute.xlu0 %126
    %128 = vset.pattern.permute.xlu0 0
    %129 = vperm.xlu0 %128, %v116
    %v130 = vpop.permute.xlu0 %129
    %131 = vset.pattern.permute.xlu0 0
    %132 = vperm.xlu0 %131, %v117
    %v133 = vpop.permute.xlu0 %132
    %134 = vset.pattern.permute.xlu0 0
    %135 = vperm.xlu0 %134, %v118
    %v136 = vpop.permute.xlu0 %135
    %137 = vset.pattern.permute.xlu0 0
    %138 = vperm.xlu0 %137, %v119
    %v139 = vpop.permute.xlu0 %138
    %140 = vset.pattern.permute.xlu0 0
    %141 = vperm.xlu0 %140, %v120
    %v142 = vpop.permute.xlu0 %141
    %143 = vset.pattern.permute.xlu0 0
    %144 = vperm.xlu0 %143, %v121
    %v145 = vpop.permute.xlu0 %144
    %vm146 = vcmp.eq.s32.totalorder %v86, %v124
    %vm147 = vcmp.eq.s32.totalorder %v86, %v127
    %vm148 = vcmp.eq.s32.totalorder %v86, %v130
    %vm149 = vcmp.eq.s32.totalorder %v86, %v133
    %vm150 = vcmp.eq.s32.totalorder %v86, %v136
    %vm151 = vcmp.eq.s32.totalorder %v86, %v139
    %vm152 = vcmp.eq.s32.totalorder %v86, %v142
    %vm153 = vcmp.eq.s32.totalorder %v86, %v145
    %v154 = vsel %vm146, 1, 0
    %v155 = vsel %vm147, 1, 0
    %v156 = vsel %vm148, 1, 0
    %v157 = vsel %vm149, 1, 0
    %v158 = vsel %vm150, 1, 0
    %v159 = vsel %vm151, 1, 0
    %v160 = vsel %vm152, 1, 0
    %v161 = vsel %vm153, 1, 0
    %v162 = vcvt.s32.f32 %v154
    %v163 = vcvt.s32.f32 %v155
    %v164 = vcvt.s32.f32 %v156
    %v165 = vcvt.s32.f32 %v157
    %v166 = vcvt.s32.f32 %v158
    %v167 = vcvt.s32.f32 %v159
    %v168 = vcvt.s32.f32 %v160
    %v169 = vcvt.s32.f32 %v161
    %v170 = vld [vmem:[#allocation4] sm:$0xff]
    %v171 = vld [vmem:[#allocation4 + $0x8] sm:$0xff]
    %v172 = vld [vmem:[#allocation4 + $0x10] sm:$0xff]
    %v173 = vld [vmem:[#allocation4 + $0x18] sm:$0xff]
    %vm174 = vcmask 130048
    %v176 = vsel %vm174, %v162, 0
    %v179 = vsel %vm174, %v163, 0
    %v182 = vsel %vm174, %v164, 0
    %v185 = vsel %vm174, %v165, 0
    %v188 = vsel %vm174, %v166, 0
    %v191 = vsel %vm174, %v167, 0
    %v194 = vsel %vm174, %v168, 0
    %v197 = vsel %vm174, %v169, 0
    %199 = vmatprep.subr.mxu0 0.0
    %200 = vmatpush1.msra.mxu0 0.0
    %201 = vmatprep.subr.mxu0 0.0
    %202 = vmatpush1.msra.mxu0 0.0
    %203 = vmatprep.subr.mxu0 0.0
    %204 = vmatpush1.msra.mxu0 0.0
    %205 = vmatprep.subr.mxu0 0.0
    %206 = vmatpush1.msra.mxu0 0.0
    %207 = vmatprep.subr.mxu0 0.0
    %208 = vmatpush1.msra.mxu0 0.0
    %209 = vmatprep.subr.mxu0 0.0
    %210 = vmatpush1.msra.mxu0 0.0
    %211 = vmatprep.subr.mxu0 0.0
    %212 = vmatpush1.msra.mxu0 0.0
    %213 = vmatprep.subr.mxu0 0.0
    %214 = vmatpush1.msra.mxu0 0.0
    %215 = vmatprep.subr.mxu0 0.0
    %216 = vmatpush1.msra.mxu0 0.0
    %217 = vmatprep.subr.mxu0 0.0
    %218 = vmatpush1.msra.mxu0 0.0
    %219 = vmatprep.subr.mxu0 0.0
    %220 = vmatpush1.msra.mxu0 0.0
    %221 = vmatprep.subr.mxu0 0.0
    %222 = vmatpush1.msra.mxu0 0.0
    %223 = vmatprep.subr.mxu0 0.0
    %224 = vmatpush1.msra.mxu0 0.0
    %225 = vmatprep.subr.mxu0 0.0
    %226 = vmatpush1.msra.mxu0 0.0
    %227 = vmatprep.subr.mxu0 %v173
    %228 = vmatpush1.msra.mxu0 %v172
    %229 = vmatprep.subr.mxu0 %v171
    %230 = vmatpush1.msra.mxu0 %v170
    %231 = vmatprep.subr.mxu0 0.0
    %232 = vmatpush2.msra.mxu0 0.0
    %233 = vmatprep.subr.mxu0 0.0
    %234 = vmatpush2.msra.mxu0 0.0
    %235 = vmatprep.subr.mxu0 0.0
    %236 = vmatpush2.msra.mxu0 0.0
    %237 = vmatprep.subr.mxu0 0.0
    %238 = vmatpush2.msra.mxu0 0.0
    %239 = vmatprep.subr.mxu0 0.0
    %240 = vmatpush2.msra.mxu0 0.0
    %241 = vmatprep.subr.mxu0 0.0
    %242 = vmatpush2.msra.mxu0 0.0
    %243 = vmatprep.subr.mxu0 0.0
    %244 = vmatpush2.msra.mxu0 0.0
    %245 = vmatprep.subr.mxu0 0.0
    %246 = vmatpush2.msra.mxu0 0.0
    %247 = vmatprep.subr.mxu0 0.0
    %248 = vmatpush2.msra.mxu0 0.0
    %249 = vmatprep.subr.mxu0 0.0
    %250 = vmatpush2.msra.mxu0 0.0
    %251 = vmatprep.subr.mxu0 0.0
    %252 = vmatpush2.msra.mxu0 0.0
    %253 = vmatprep.subr.mxu0 0.0
    %254 = vmatpush2.msra.mxu0 0.0
    %255 = vmatprep.subr.mxu0 0.0
    %256 = vmatpush2.msra.mxu0 0.0
    %257 = vmatprep.subr.mxu0 0.0
    %258 = vmatpush2.msra.mxu0 0.0
    %259 = vmatprep.subr.mxu0 0.0
    %260 = vmatpush2.msra.mxu0 0.0
    %261 = vmatprep.subr.mxu0 0.0
    %262 = vmatpush2.msra.mxu0 0.0
    %263 = vmatprep.mubr.f32.mxu0 0.0
    %264 = vmatmul.mubr.f32.gmra.mxu0 %v176
    %v265 = vpop.f32.mrf.mxu0
    %v266 = vadd.f32 0.0, %v265
    %v267 = vpop.f32.mrf.mxu0
    %v268 = vadd.f32 0.0, %v267
    %269 = vmatprep.mubr.f32.mxu0 0.0
    %270 = vmatmul.mubr.f32.gmra.mxu0 %v179
    %v271 = vpop.f32.mrf.mxu0
    %v272 = vadd.f32 0.0, %v271
    %v273 = vpop.f32.mrf.mxu0
    %v274 = vadd.f32 0.0, %v273
    %275 = vmatprep.mubr.f32.mxu0 0.0
    %276 = vmatmul.mubr.f32.gmra.mxu0 %v182
    %v277 = vpop.f32.mrf.mxu0
    %v278 = vadd.f32 0.0, %v277
    %v279 = vpop.f32.mrf.mxu0
    %v280 = vadd.f32 0.0, %v279
    %281 = vmatprep.mubr.f32.mxu0 0.0
    %282 = vmatmul.mubr.f32.gmra.mxu0 %v185
    %v283 = vpop.f32.mrf.mxu0
    %v284 = vadd.f32 0.0, %v283
    %v285 = vpop.f32.mrf.mxu0
    %v286 = vadd.f32 0.0, %v285
    %287 = vmatprep.mubr.f32.mxu0 0.0
    %288 = vmatmul.mubr.f32.gmra.mxu0 %v188
    %v289 = vpop.f32.mrf.mxu0
    %v290 = vadd.f32 0.0, %v289
    %v291 = vpop.f32.mrf.mxu0
    %v292 = vadd.f32 0.0, %v291
    %293 = vmatprep.mubr.f32.mxu0 0.0
    %294 = vmatmul.mubr.f32.gmra.mxu0 %v191
    %v295 = vpop.f32.mrf.mxu0
    %v296 = vadd.f32 0.0, %v295
    %v297 = vpop.f32.mrf.mxu0
    %v298 = vadd.f32 0.0, %v297
    %299 = vmatprep.mubr.f32.mxu0 0.0
    %300 = vmatmul.mubr.f32.gmra.mxu0 %v194
    %v301 = vpop.f32.mrf.mxu0
    %v302 = vadd.f32 0.0, %v301
    %v303 = vpop.f32.mrf.mxu0
    %v304 = vadd.f32 0.0, %v303
    %305 = vmatprep.mubr.f32.mxu0 0.0
    %306 = vmatmul.mubr.f32.gmra.mxu0 %v197
    %v307 = vpop.f32.mrf.mxu0
    %v308 = vadd.f32 0.0, %v307
    %v309 = vpop.f32.mrf.mxu0
    %v310 = vadd.f32 0.0, %v309
    %311 = vdwg.mxu0
    %312 = vst [vmem:[#allocation3] sm:$0xff] %v266
    %313 = vst [vmem:[#allocation3 + $0x8] sm:$0xff] %v268
    %314 = vst [vmem:[#allocation3 + $0x10] sm:$0xff] %v272
    %315 = vst [vmem:[#allocation3 + $0x18] sm:$0xff] %v274
    %316 = vst [vmem:[#allocation3 + $0x20] sm:$0xff] %v278
    %317 = vst [vmem:[#allocation3 + $0x28] sm:$0xff] %v280
    %318 = vst [vmem:[#allocation3 + $0x30] sm:$0xff] %v284
    %319 = vst [vmem:[#allocation3 + $0x38] sm:$0xff] %v286
    %320 = vst [vmem:[#allocation3 + $0x40] sm:$0xff] %v290
    %321 = vst [vmem:[#allocation3 + $0x48] sm:$0xff] %v292
    %322 = vst [vmem:[#allocation3 + $0x50] sm:$0xff] %v296
    %323 = vst [vmem:[#allocation3 + $0x58] sm:$0xff] %v298
    %324 = vst [vmem:[#allocation3 + $0x60] sm:$0xff] %v302
    %325 = vst [vmem:[#allocation3 + $0x68] sm:$0xff] %v304
    %326 = vst [vmem:[#allocation3 + $0x70] sm:$0xff] %v308
    %327 = vst [vmem:[#allocation3 + $0x78] sm:$0xff] %v310
    %v328 = vld [vmem:[#allocation7] sm:$0xff]
    %v329 = vld [vmem:[#allocation7 + $0x8] sm:$0xff]
    %v330 = vld [vmem:[#allocation7 + $0x10] sm:$0xff]
    %v331 = vld [vmem:[#allocation7 + $0x18] sm:$0xff]
    %v332 = vld [vmem:[#allocation7 + $0x20] sm:$0xff]
    %v333 = vld [vmem:[#allocation7 + $0x28] sm:$0xff]
    %v334 = vld [vmem:[#allocation7 + $0x30] sm:$0xff]
    %v335 = vld [vmem:[#allocation7 + $0x38] sm:$0xff]
    %v336 = vld [vmem:[#allocation7 + $0x40] sm:$0xff]
    %v337 = vld [vmem:[#allocation7 + $0x48] sm:$0xff]
    %v338 = vld [vmem:[#allocation7 + $0x50] sm:$0xff]
    %v339 = vld [vmem:[#allocation7 + $0x58] sm:$0xff]
    %v340 = vld [vmem:[#allocation7 + $0x60] sm:$0xff]
    %v341 = vld [vmem:[#allocation7 + $0x68] sm:$0xff]
    %v342 = vld [vmem:[#allocation7 + $0x70] sm:$0xff]
    %v343 = vld [vmem:[#allocation7 + $0x78] sm:$0xff]
    %v344 = vld [vmem:[#allocation3] sm:$0xff]
    %v345 = vld [vmem:[#allocation3 + $0x8] sm:$0xff]
    %v346 = vld [vmem:[#allocation3 + $0x70] sm:$0xff]
    %v347 = vld [vmem:[#allocation3 + $0x78] sm:$0xff]
    %v348 = vsel %vm112, %v344, %v346
    %v349 = vsel %vm113, %v345, %v347
    %vm350 = vcmask 523264
    %v352 = vsel %vm350, 0.0, 0
    %354 = vmatprep.subr.mxu0 0.0
    %355 = vmatpush1.msra.mxu0 0.0
    %356 = vmatprep.subr.mxu0 0.0
    %357 = vmatpush1.msra.mxu0 0.0
    %358 = vmatprep.subr.mxu0 0.0
    %359 = vmatpush1.msra.mxu0 0.0
    %360 = vmatprep.subr.mxu0 0.0
    %361 = vmatpush1.msra.mxu0 0.0
    %362 = vmatprep.subr.mxu0 0.0
    %363 = vmatpush1.msra.mxu0 0.0
    %364 = vmatprep.subr.mxu0 0.0
    %365 = vmatpush1.msra.mxu0 0.0
    %366 = vmatprep.subr.mxu0 0.0
    %367 = vmatpush1.msra.mxu0 0.0
    %368 = vmatprep.subr.mxu0 0.0
    %369 = vmatpush1.msra.mxu0 0.0
    %370 = vmatprep.subr.mxu0 %v343
    %371 = vmatpush1.msra.mxu0 %v342
    %372 = vmatprep.subr.mxu0 %v341
    %373 = vmatpush1.msra.mxu0 %v340
    %374 = vmatprep.subr.mxu0 %v339
    %375 = vmatpush1.msra.mxu0 %v338
    %376 = vmatprep.subr.mxu0 %v337
    %377 = vmatpush1.msra.mxu0 %v336
    %378 = vmatprep.subr.mxu0 %v335
    %379 = vmatpush1.msra.mxu0 %v334
    %380 = vmatprep.subr.mxu0 %v333
    %381 = vmatpush1.msra.mxu0 %v332
    %382 = vmatprep.subr.mxu0 %v331
    %383 = vmatpush1.msra.mxu0 %v330
    %384 = vmatprep.subr.mxu0 %v329
    %385 = vmatpush1.msra.mxu0 %v328
    %386 = vmatprep.subr.mxu0 0.0
    %387 = vmatpush2.msra.mxu0 0.0
    %388 = vmatprep.subr.mxu0 0.0
    %389 = vmatpush2.msra.mxu0 0.0
    %390 = vmatprep.subr.mxu0 0.0
    %391 = vmatpush2.msra.mxu0 0.0
    %392 = vmatprep.subr.mxu0 0.0
    %393 = vmatpush2.msra.mxu0 0.0
    %394 = vmatprep.subr.mxu0 0.0
    %395 = vmatpush2.msra.mxu0 0.0
    %396 = vmatprep.subr.mxu0 0.0
    %397 = vmatpush2.msra.mxu0 0.0
    %398 = vmatprep.subr.mxu0 0.0
    %399 = vmatpush2.msra.mxu0 0.0
    %400 = vmatprep.subr.mxu0 0.0
    %401 = vmatpush2.msra.mxu0 0.0
    %402 = vmatprep.subr.mxu0 0.0
    %403 = vmatpush2.msra.mxu0 0.0
    %404 = vmatprep.subr.mxu0 0.0
    %405 = vmatpush2.msra.mxu0 0.0
    %406 = vmatprep.subr.mxu0 0.0
    %407 = vmatpush2.msra.mxu0 0.0
    %408 = vmatprep.subr.mxu0 0.0
    %409 = vmatpush2.msra.mxu0 0.0
    %410 = vmatprep.subr.mxu0 0.0
    %411 = vmatpush2.msra.mxu0 0.0
    %412 = vmatprep.subr.mxu0 0.0
    %413 = vmatpush2.msra.mxu0 0.0
    %414 = vmatprep.subr.mxu0 0.0
    %415 = vmatpush2.msra.mxu0 0.0
    %416 = vmatprep.subr.mxu0 0.0
    %417 = vmatpush2.msra.mxu0 0.0
    %418 = vmatprep.mubr.f32.mxu0 0.0
    %419 = vmatmul.mubr.f32.gmra.mxu0 %v352
    %v420 = vpop.f32.mrf.mxu0
    %v421 = vadd.f32 0.0, %v420
    %v422 = vpop.f32.mrf.mxu0
    %v423 = vadd.f32 0.0, %v422
    %424 = vdwg.mxu0
    %v425 = vadd.f32 %v348, %v421
    %v426 = vadd.f32 %v349, %v423
    %v427 = vxor.u32 %v425, 2147483648
    %v428 = vxor.u32 %v426, 2147483648
    %v429 = vmul.f32 %v427, 1.442695
    %v430 = vpow.pop %v429
    %v431 = vmul.f32 %v428, 1.442695
    %v432 = vpow.pop %v431
    %v433 = vadd.f32 %v430, 1.0
    %v434 = vadd.f32 %v432, 1.0
    %v435 = vrcp.pop %v433
    %v436 = vmul.f32 1.0, %v435
    %v437 = vrcp.pop %v434
    %v438 = vmul.f32 1.0, %v437
    %v439 = vtanh.pop %v426
    %v440 = vmul.f32 %v436, 0.0
    %442 = vrot.lane.b32.xlu0 %v439, 64
    %v443 = vpop.permute.xlu0 %442
    %v445 = vmul.f32 %v436, %v443
    %447 = vrot.lane.b32.xlu0 %v445, 64
    %v448 = vpop.permute.xlu0 %447
    %v450 = vadd.f32 %v440, %v448
    %v451 = vtanh.pop %v450
    %453 = vrot.lane.b32.xlu0 %v451, 64
    %v454 = vpop.permute.xlu0 %453
    %v456 = vmul.f32 %v438, %v454
    %vm457 = vcmask 261120
    %458 = vst.msk [vmem:[#allocation2] sm:$0xff] %vm457, %v456
    %vm459 = vcmask 523520
    %460 = vst.msk [vmem:[#allocation2 + $0x38] sm:$0xff] %vm459, %v456
    %v461 = vld [vmem:[#allocation3 + $0x10] sm:$0xff]
    %v462 = vld [vmem:[#allocation3 + $0x18] sm:$0xff]
    %v463 = vld [vmem:[#allocation3 + $0x60] sm:$0xff]
    %v464 = vld [vmem:[#allocation3 + $0x68] sm:$0xff]
    %v465 = vsel %vm112, %v461, %v463
    %v466 = vsel %vm113, %v462, %v464
    %v468 = vsel %vm350, %v456, 0
    %470 = vmatprep.subr.mxu0 0.0
    %471 = vmatpush1.msra.mxu0 0.0
    %472 = vmatprep.subr.mxu0 0.0
    %473 = vmatpush1.msra.mxu0 0.0
    %474 = vmatprep.subr.mxu0 0.0
    %475 = vmatpush1.msra.mxu0 0.0
    %476 = vmatprep.subr.mxu0 0.0
    %477 = vmatpush1.msra.mxu0 0.0
    %478 = vmatprep.subr.mxu0 0.0
    %479 = vmatpush1.msra.mxu0 0.0
    %480 = vmatprep.subr.mxu0 0.0
    %481 = vmatpush1.msra.mxu0 0.0
    %482 = vmatprep.subr.mxu0 0.0
    %483 = vmatpush1.msra.mxu0 0.0
    %484 = vmatprep.subr.mxu0 0.0
    %485 = vmatpush1.msra.mxu0 0.0
    %486 = vmatprep.subr.mxu0 %v343
    %487 = vmatpush1.msra.mxu0 %v342
    %488 = vmatprep.subr.mxu0 %v341
    %489 = vmatpush1.msra.mxu0 %v340
    %490 = vmatprep.subr.mxu0 %v339
    %491 = vmatpush1.msra.mxu0 %v338
    %492 = vmatprep.subr.mxu0 %v337
    %493 = vmatpush1.msra.mxu0 %v336
    %494 = vmatprep.subr.mxu0 %v335
    %495 = vmatpush1.msra.mxu0 %v334
    %496 = vmatprep.subr.mxu0 %v333
    %497 = vmatpush1.msra.mxu0 %v332
    %498 = vmatprep.subr.mxu0 %v331
    %499 = vmatpush1.msra.mxu0 %v330
    %500 = vmatprep.subr.mxu0 %v329
    %501 = vmatpush1.msra.mxu0 %v328
    %502 = vmatprep.subr.mxu0 0.0
    %503 = vmatpush2.msra.mxu0 0.0
    %504 = vmatprep.subr.mxu0 0.0
    %505 = vmatpush2.msra.mxu0 0.0
    %506 = vmatprep.subr.mxu0 0.0
    %507 = vmatpush2.msra.mxu0 0.0
    %508 = vmatprep.subr.mxu0 0.0
    %509 = vmatpush2.msra.mxu0 0.0
    %510 = vmatprep.subr.mxu0 0.0
    %511 = vmatpush2.msra.mxu0 0.0
    %512 = vmatprep.subr.mxu0 0.0
    %513 = vmatpush2.msra.mxu0 0.0
    %514 = vmatprep.subr.mxu0 0.0
    %515 = vmatpush2.msra.mxu0 0.0
    %516 = vmatprep.subr.mxu0 0.0
    %517 = vmatpush2.msra.mxu0 0.0
    %518 = vmatprep.subr.mxu0 0.0
    %519 = vmatpush2.msra.mxu0 0.0
    %520 = vmatprep.subr.mxu0 0.0
    %521 = vmatpush2.msra.mxu0 0.0
    %522 = vmatprep.subr.mxu0 0.0
    %523 = vmatpush2.msra.mxu0 0.0
    %524 = vmatprep.subr.mxu0 0.0
    %525 = vmatpush2.msra.mxu0 0.0
    %526 = vmatprep.subr.mxu0 0.0
    %527 = vmatpush2.msra.mxu0 0.0
    %528 = vmatprep.subr.mxu0 0.0
    %529 = vmatpush2.msra.mxu0 0.0
    %530 = vmatprep.subr.mxu0 0.0
    %531 = vmatpush2.msra.mxu0 0.0
    %532 = vmatprep.subr.mxu0 0.0
    %533 = vmatpush2.msra.mxu0 0.0
    %534 = vmatprep.mubr.f32.mxu0 0.0
    %535 = vmatmul.mubr.f32.gmra.mxu0 %v468
    %v536 = vpop.f32.mrf.mxu0
    %v537 = vadd.f32 0.0, %v536
    %v538 = vpop.f32.mrf.mxu0
    %v539 = vadd.f32 0.0, %v538
    %540 = vdwg.mxu0
    %v541 = vadd.f32 %v465, %v537
    %v542 = vadd.f32 %v466, %v539
    %v543 = vxor.u32 %v541, 2147483648
    %v544 = vxor.u32 %v542, 2147483648
    %v545 = vmul.f32 %v543, 1.442695
    %v546 = vpow.pop %v545
    %v547 = vmul.f32 %v544, 1.442695
    %v548 = vpow.pop %v547
    %v549 = vadd.f32 %v546, 1.0
    %v550 = vadd.f32 %v548, 1.0
    %v551 = vrcp.pop %v549
    %v552 = vmul.f32 1.0, %v551
    %v553 = vrcp.pop %v550
    %v554 = vmul.f32 1.0, %v553
    %v555 = vtanh.pop %v542
    %v556 = vmul.f32 %v552, %v450
    %558 = vrot.lane.b32.xlu0 %v555, 64
    %v559 = vpop.permute.xlu0 %558
    %v561 = vmul.f32 %v552, %v559
    %563 = vrot.lane.b32.xlu0 %v561, 64
    %v564 = vpop.permute.xlu0 %563
    %v566 = vadd.f32 %v556, %v564
    %v567 = vtanh.pop %v566
    %569 = vrot.lane.b32.xlu0 %v567, 64
    %v570 = vpop.permute.xlu0 %569
    %v572 = vmul.f32 %v554, %v570
    %573 = vst.msk [vmem:[#allocation2 + $0x8] sm:$0xff] %vm457, %v572
    %574 = vst.msk [vmem:[#allocation2 + $0x30] sm:$0xff] %vm459, %v572
    %v575 = vld [vmem:[#allocation3 + $0x20] sm:$0xff]
    %v576 = vld [vmem:[#allocation3 + $0x28] sm:$0xff]
    %v577 = vld [vmem:[#allocation3 + $0x50] sm:$0xff]
    %v578 = vld [vmem:[#allocation3 + $0x58] sm:$0xff]
    %v579 = vsel %vm112, %v575, %v577
    %v580 = vsel %vm113, %v576, %v578
    %v582 = vsel %vm350, %v572, 0
    %584 = vmatprep.subr.mxu0 0.0
    %585 = vmatpush1.msra.mxu0 0.0
    %586 = vmatprep.subr.mxu0 0.0
    %587 = vmatpush1.msra.mxu0 0.0
    %588 = vmatprep.subr.mxu0 0.0
    %589 = vmatpush1.msra.mxu0 0.0
    %590 = vmatprep.subr.mxu0 0.0
    %591 = vmatpush1.msra.mxu0 0.0
    %592 = vmatprep.subr.mxu0 0.0
    %593 = vmatpush1.msra.mxu0 0.0
    %594 = vmatprep.subr.mxu0 0.0
    %595 = vmatpush1.msra.mxu0 0.0
    %596 = vmatprep.subr.mxu0 0.0
    %597 = vmatpush1.msra.mxu0 0.0
    %598 = vmatprep.subr.mxu0 0.0
    %599 = vmatpush1.msra.mxu0 0.0
    %600 = vmatprep.subr.mxu0 %v343
    %601 = vmatpush1.msra.mxu0 %v342
    %602 = vmatprep.subr.mxu0 %v341
    %603 = vmatpush1.msra.mxu0 %v340
    %604 = vmatprep.subr.mxu0 %v339
    %605 = vmatpush1.msra.mxu0 %v338
    %606 = vmatprep.subr.mxu0 %v337
    %607 = vmatpush1.msra.mxu0 %v336
    %608 = vmatprep.subr.mxu0 %v335
    %609 = vmatpush1.msra.mxu0 %v334
    %610 = vmatprep.subr.mxu0 %v333
    %611 = vmatpush1.msra.mxu0 %v332
    %612 = vmatprep.subr.mxu0 %v331
    %613 = vmatpush1.msra.mxu0 %v330
    %614 = vmatprep.subr.mxu0 %v329
    %615 = vmatpush1.msra.mxu0 %v328
    %616 = vmatprep.subr.mxu0 0.0
    %617 = vmatpush2.msra.mxu0 0.0
    %618 = vmatprep.subr.mxu0 0.0
    %619 = vmatpush2.msra.mxu0 0.0
    %620 = vmatprep.subr.mxu0 0.0
    %621 = vmatpush2.msra.mxu0 0.0
    %622 = vmatprep.subr.mxu0 0.0
    %623 = vmatpush2.msra.mxu0 0.0
    %624 = vmatprep.subr.mxu0 0.0
    %625 = vmatpush2.msra.mxu0 0.0
    %626 = vmatprep.subr.mxu0 0.0
    %627 = vmatpush2.msra.mxu0 0.0
    %628 = vmatprep.subr.mxu0 0.0
    %629 = vmatpush2.msra.mxu0 0.0
    %630 = vmatprep.subr.mxu0 0.0
    %631 = vmatpush2.msra.mxu0 0.0
    %632 = vmatprep.subr.mxu0 0.0
    %633 = vmatpush2.msra.mxu0 0.0
    %634 = vmatprep.subr.mxu0 0.0
    %635 = vmatpush2.msra.mxu0 0.0
    %636 = vmatprep.subr.mxu0 0.0
    %637 = vmatpush2.msra.mxu0 0.0
    %638 = vmatprep.subr.mxu0 0.0
    %639 = vmatpush2.msra.mxu0 0.0
    %640 = vmatprep.subr.mxu0 0.0
    %641 = vmatpush2.msra.mxu0 0.0
    %642 = vmatprep.subr.mxu0 0.0
    %643 = vmatpush2.msra.mxu0 0.0
    %644 = vmatprep.subr.mxu0 0.0
    %645 = vmatpush2.msra.mxu0 0.0
    %646 = vmatprep.subr.mxu0 0.0
    %647 = vmatpush2.msra.mxu0 0.0
    %648 = vmatprep.mubr.f32.mxu0 0.0
    %649 = vmatmul.mubr.f32.gmra.mxu0 %v582
    %v650 = vpop.f32.mrf.mxu0
    %v651 = vadd.f32 0.0, %v650
    %v652 = vpop.f32.mrf.mxu0
    %v653 = vadd.f32 0.0, %v652
    %654 = vdwg.mxu0
    %v655 = vadd.f32 %v579, %v651
    %v656 = vadd.f32 %v580, %v653
    %v657 = vxor.u32 %v655, 2147483648
    %v658 = vxor.u32 %v656, 2147483648
    %v659 = vmul.f32 %v657, 1.442695
    %v660 = vpow.pop %v659
    %v661 = vmul.f32 %v658, 1.442695
    %v662 = vpow.pop %v661
    %v663 = vadd.f32 %v660, 1.0
    %v664 = vadd.f32 %v662, 1.0
    %v665 = vrcp.pop %v663
    %v666 = vmul.f32 1.0, %v665
    %v667 = vrcp.pop %v664
    %v668 = vmul.f32 1.0, %v667
    %v669 = vtanh.pop %v656
    %v670 = vmul.f32 %v666, %v566
    %672 = vrot.lane.b32.xlu0 %v669, 64
    %v673 = vpop.permute.xlu0 %672
    %v675 = vmul.f32 %v666, %v673
    %677 = vrot.lane.b32.xlu0 %v675, 64
    %v678 = vpop.permute.xlu0 %677
    %v680 = vadd.f32 %v670, %v678
    %v681 = vtanh.pop %v680
    %683 = vrot.lane.b32.xlu0 %v681, 64
    %v684 = vpop.permute.xlu0 %683
    %v686 = vmul.f32 %v668, %v684
    %687 = vst.msk [vmem:[#allocation2 + $0x10] sm:$0xff] %vm457, %v686
    %688 = vst.msk [vmem:[#allocation2 + $0x28] sm:$0xff] %vm459, %v686
    %v689 = vld [vmem:[#allocation3 + $0x30] sm:$0xff]
    %v690 = vld [vmem:[#allocation3 + $0x38] sm:$0xff]
    %v691 = vld [vmem:[#allocation3 + $0x40] sm:$0xff]
    %v692 = vld [vmem:[#allocation3 + $0x48] sm:$0xff]
    %v693 = vsel %vm112, %v689, %v691
    %v694 = vsel %vm113, %v690, %v692
    %v696 = vsel %vm350, %v686, 0
    %698 = vmatprep.subr.mxu0 0.0
    %699 = vmatpush1.msra.mxu0 0.0
    %700 = vmatprep.subr.mxu0 0.0
    %701 = vmatpush1.msra.mxu0 0.0
    %702 = vmatprep.subr.mxu0 0.0
    %703 = vmatpush1.msra.mxu0 0.0
    %704 = vmatprep.subr.mxu0 0.0
    %705 = vmatpush1.msra.mxu0 0.0
    %706 = vmatprep.subr.mxu0 0.0
    %707 = vmatpush1.msra.mxu0 0.0
    %708 = vmatprep.subr.mxu0 0.0
    %709 = vmatpush1.msra.mxu0 0.0
    %710 = vmatprep.subr.mxu0 0.0
    %711 = vmatpush1.msra.mxu0 0.0
    %712 = vmatprep.subr.mxu0 0.0
    %713 = vmatpush1.msra.mxu0 0.0
    %714 = vmatprep.subr.mxu0 %v343
    %715 = vmatpush1.msra.mxu0 %v342
    %716 = vmatprep.subr.mxu0 %v341
    %717 = vmatpush1.msra.mxu0 %v340
    %718 = vmatprep.subr.mxu0 %v339
    %719 = vmatpush1.msra.mxu0 %v338
    %720 = vmatprep.subr.mxu0 %v337
    %721 = vmatpush1.msra.mxu0 %v336
    %722 = vmatprep.subr.mxu0 %v335
    %723 = vmatpush1.msra.mxu0 %v334
    %724 = vmatprep.subr.mxu0 %v333
    %725 = vmatpush1.msra.mxu0 %v332
    %726 = vmatprep.subr.mxu0 %v331
    %727 = vmatpush1.msra.mxu0 %v330
    %728 = vmatprep.subr.mxu0 %v329
    %729 = vmatpush1.msra.mxu0 %v328
    %730 = vmatprep.subr.mxu0 0.0
    %731 = vmatpush2.msra.mxu0 0.0
    %732 = vmatprep.subr.mxu0 0.0
    %733 = vmatpush2.msra.mxu0 0.0
    %734 = vmatprep.subr.mxu0 0.0
    %735 = vmatpush2.msra.mxu0 0.0
    %736 = vmatprep.subr.mxu0 0.0
    %737 = vmatpush2.msra.mxu0 0.0
    %738 = vmatprep.subr.mxu0 0.0
    %739 = vmatpush2.msra.mxu0 0.0
    %740 = vmatprep.subr.mxu0 0.0
    %741 = vmatpush2.msra.mxu0 0.0
    %742 = vmatprep.subr.mxu0 0.0
    %743 = vmatpush2.msra.mxu0 0.0
    %744 = vmatprep.subr.mxu0 0.0
    %745 = vmatpush2.msra.mxu0 0.0
    %746 = vmatprep.subr.mxu0 0.0
    %747 = vmatpush2.msra.mxu0 0.0
    %748 = vmatprep.subr.mxu0 0.0
    %749 = vmatpush2.msra.mxu0 0.0
    %750 = vmatprep.subr.mxu0 0.0
    %751 = vmatpush2.msra.mxu0 0.0
    %752 = vmatprep.subr.mxu0 0.0
    %753 = vmatpush2.msra.mxu0 0.0
    %754 = vmatprep.subr.mxu0 0.0
    %755 = vmatpush2.msra.mxu0 0.0
    %756 = vmatprep.subr.mxu0 0.0
    %757 = vmatpush2.msra.mxu0 0.0
    %758 = vmatprep.subr.mxu0 0.0
    %759 = vmatpush2.msra.mxu0 0.0
    %760 = vmatprep.subr.mxu0 0.0
    %761 = vmatpush2.msra.mxu0 0.0
    %762 = vmatprep.mubr.f32.mxu0 0.0
    %763 = vmatmul.mubr.f32.gmra.mxu0 %v696
    %v764 = vpop.f32.mrf.mxu0
    %v765 = vadd.f32 0.0, %v764
    %v766 = vpop.f32.mrf.mxu0
    %v767 = vadd.f32 0.0, %v766
    %768 = vdwg.mxu0
    %v769 = vadd.f32 %v693, %v765
    %v770 = vadd.f32 %v694, %v767
    %v771 = vxor.u32 %v769, 2147483648
    %v772 = vxor.u32 %v770, 2147483648
    %v773 = vmul.f32 %v771, 1.442695
    %v774 = vpow.pop %v773
    %v775 = vmul.f32 %v772, 1.442695
    %v776 = vpow.pop %v775
    %v777 = vadd.f32 %v774, 1.0
    %v778 = vadd.f32 %v776, 1.0
    %v779 = vrcp.pop %v777
    %v780 = vmul.f32 1.0, %v779
    %v781 = vrcp.pop %v778
    %v782 = vmul.f32 1.0, %v781
    %v783 = vtanh.pop %v770
    %v784 = vmul.f32 %v780, %v680
    %786 = vrot.lane.b32.xlu0 %v783, 64
    %v787 = vpop.permute.xlu0 %786
    %v789 = vmul.f32 %v780, %v787
    %791 = vrot.lane.b32.xlu0 %v789, 64
    %v792 = vpop.permute.xlu0 %791
    %v794 = vadd.f32 %v784, %v792
    %v795 = vtanh.pop %v794
    %797 = vrot.lane.b32.xlu0 %v795, 64
    %v798 = vpop.permute.xlu0 %797
    %v800 = vmul.f32 %v782, %v798
    %801 = vst.msk [vmem:[#allocation2 + $0x18] sm:$0xff] %vm457, %v800
    %802 = vst.msk [vmem:[#allocation2 + $0x20] sm:$0xff] %vm459, %v800
    %v803 = vld [vmem:[#allocation3 + $0x40] sm:$0xff]
    %v804 = vld [vmem:[#allocation3 + $0x48] sm:$0xff]
    %v805 = vld [vmem:[#allocation3 + $0x30] sm:$0xff]
    %v806 = vld [vmem:[#allocation3 + $0x38] sm:$0xff]
    %v807 = vsel %vm112, %v803, %v805
    %v808 = vsel %vm113, %v804, %v806
    %v810 = vsel %vm350, %v800, 0
    %812 = vmatprep.subr.mxu0 0.0
    %813 = vmatpush1.msra.mxu0 0.0
    %814 = vmatprep.subr.mxu0 0.0
    %815 = vmatpush1.msra.mxu0 0.0
    %816 = vmatprep.subr.mxu0 0.0
    %817 = vmatpush1.msra.mxu0 0.0
    %818 = vmatprep.subr.mxu0 0.0
    %819 = vmatpush1.msra.mxu0 0.0
    %820 = vmatprep.subr.mxu0 0.0
    %821 = vmatpush1.msra.mxu0 0.0
    %822 = vmatprep.subr.mxu0 0.0
    %823 = vmatpush1.msra.mxu0 0.0
    %824 = vmatprep.subr.mxu0 0.0
    %825 = vmatpush1.msra.mxu0 0.0
    %826 = vmatprep.subr.mxu0 0.0
    %827 = vmatpush1.msra.mxu0 0.0
    %828 = vmatprep.subr.mxu0 %v343
    %829 = vmatpush1.msra.mxu0 %v342
    %830 = vmatprep.subr.mxu0 %v341
    %831 = vmatpush1.msra.mxu0 %v340
    %832 = vmatprep.subr.mxu0 %v339
    %833 = vmatpush1.msra.mxu0 %v338
    %834 = vmatprep.subr.mxu0 %v337
    %835 = vmatpush1.msra.mxu0 %v336
    %836 = vmatprep.subr.mxu0 %v335
    %837 = vmatpush1.msra.mxu0 %v334
    %838 = vmatprep.subr.mxu0 %v333
    %839 = vmatpush1.msra.mxu0 %v332
    %840 = vmatprep.subr.mxu0 %v331
    %841 = vmatpush1.msra.mxu0 %v330
    %842 = vmatprep.subr.mxu0 %v329
    %843 = vmatpush1.msra.mxu0 %v328
    %844 = vmatprep.subr.mxu0 0.0
    %845 = vmatpush2.msra.mxu0 0.0
    %846 = vmatprep.subr.mxu0 0.0
    %847 = vmatpush2.msra.mxu0 0.0
    %848 = vmatprep.subr.mxu0 0.0
    %849 = vmatpush2.msra.mxu0 0.0
    %850 = vmatprep.subr.mxu0 0.0
    %851 = vmatpush2.msra.mxu0 0.0
    %852 = vmatprep.subr.mxu0 0.0
    %853 = vmatpush2.msra.mxu0 0.0
    %854 = vmatprep.subr.mxu0 0.0
    %855 = vmatpush2.msra.mxu0 0.0
    %856 = vmatprep.subr.mxu0 0.0
    %857 = vmatpush2.msra.mxu0 0.0
    %858 = vmatprep.subr.mxu0 0.0
    %859 = vmatpush2.msra.mxu0 0.0
    %860 = vmatprep.subr.mxu0 0.0
    %861 = vmatpush2.msra.mxu0 0.0
    %862 = vmatprep.subr.mxu0 0.0
    %863 = vmatpush2.msra.mxu0 0.0
    %864 = vmatprep.subr.mxu0 0.0
    %865 = vmatpush2.msra.mxu0 0.0
    %866 = vmatprep.subr.mxu0 0.0
    %867 = vmatpush2.msra.mxu0 0.0
    %868 = vmatprep.subr.mxu0 0.0
    %869 = vmatpush2.msra.mxu0 0.0
    %870 = vmatprep.subr.mxu0 0.0
    %871 = vmatpush2.msra.mxu0 0.0
    %872 = vmatprep.subr.mxu0 0.0
    %873 = vmatpush2.msra.mxu0 0.0
    %874 = vmatprep.subr.mxu0 0.0
    %875 = vmatpush2.msra.mxu0 0.0
    %876 = vmatprep.mubr.f32.mxu0 0.0
    %877 = vmatmul.mubr.f32.gmra.mxu0 %v810
    %v878 = vpop.f32.mrf.mxu0
    %v879 = vadd.f32 0.0, %v878
    %v880 = vpop.f32.mrf.mxu0
    %v881 = vadd.f32 0.0, %v880
    %882 = vdwg.mxu0
    %v883 = vadd.f32 %v807, %v879
    %v884 = vadd.f32 %v808, %v881
    %v885 = vxor.u32 %v883, 2147483648
    %v886 = vxor.u32 %v884, 2147483648
    %v887 = vmul.f32 %v885, 1.442695
    %v888 = vpow.pop %v887
    %v889 = vmul.f32 %v886, 1.442695
    %v890 = vpow.pop %v889
    %v891 = vadd.f32 %v888, 1.0
    %v892 = vadd.f32 %v890, 1.0
    %v893 = vrcp.pop %v891
    %v894 = vmul.f32 1.0, %v893
    %v895 = vrcp.pop %v892
    %v896 = vmul.f32 1.0, %v895
    %v897 = vtanh.pop %v884
    %v898 = vmul.f32 %v894, %v794
    %900 = vrot.lane.b32.xlu0 %v897, 64
    %v901 = vpop.permute.xlu0 %900
    %v903 = vmul.f32 %v894, %v901
    %905 = vrot.lane.b32.xlu0 %v903, 64
    %v906 = vpop.permute.xlu0 %905
    %v908 = vadd.f32 %v898, %v906
    %v909 = vtanh.pop %v908
    %911 = vrot.lane.b32.xlu0 %v909, 64
    %v912 = vpop.permute.xlu0 %911
    %v914 = vmul.f32 %v896, %v912
    %915 = vst.msk [vmem:[#allocation2 + $0x20] sm:$0xff] %vm457, %v914
    %916 = vst.msk [vmem:[#allocation2 + $0x18] sm:$0xff] %vm459, %v914
    %v917 = vld [vmem:[#allocation3 + $0x50] sm:$0xff]
    %v918 = vld [vmem:[#allocation3 + $0x58] sm:$0xff]
    %v919 = vld [vmem:[#allocation3 + $0x20] sm:$0xff]
    %v920 = vld [vmem:[#allocation3 + $0x28] sm:$0xff]
    %v921 = vsel %vm112, %v917, %v919
    %v922 = vsel %vm113, %v918, %v920
    %v924 = vsel %vm350, %v914, 0
    %926 = vmatprep.subr.mxu0 0.0
    %927 = vmatpush1.msra.mxu0 0.0
    %928 = vmatprep.subr.mxu0 0.0
    %929 = vmatpush1.msra.mxu0 0.0
    %930 = vmatprep.subr.mxu0 0.0
    %931 = vmatpush1.msra.mxu0 0.0
    %932 = vmatprep.subr.mxu0 0.0
    %933 = vmatpush1.msra.mxu0 0.0
    %934 = vmatprep.subr.mxu0 0.0
    %935 = vmatpush1.msra.mxu0 0.0
    %936 = vmatprep.subr.mxu0 0.0
    %937 = vmatpush1.msra.mxu0 0.0
    %938 = vmatprep.subr.mxu0 0.0
    %939 = vmatpush1.msra.mxu0 0.0
    %940 = vmatprep.subr.mxu0 0.0
    %941 = vmatpush1.msra.mxu0 0.0
    %942 = vmatprep.subr.mxu0 %v343
    %943 = vmatpush1.msra.mxu0 %v342
    %944 = vmatprep.subr.mxu0 %v341
    %945 = vmatpush1.msra.mxu0 %v340
    %946 = vmatprep.subr.mxu0 %v339
    %947 = vmatpush1.msra.mxu0 %v338
    %948 = vmatprep.subr.mxu0 %v337
    %949 = vmatpush1.msra.mxu0 %v336
    %950 = vmatprep.subr.mxu0 %v335
    %951 = vmatpush1.msra.mxu0 %v334
    %952 = vmatprep.subr.mxu0 %v333
    %953 = vmatpush1.msra.mxu0 %v332
    %954 = vmatprep.subr.mxu0 %v331
    %955 = vmatpush1.msra.mxu0 %v330
    %956 = vmatprep.subr.mxu0 %v329
    %957 = vmatpush1.msra.mxu0 %v328
    %958 = vmatprep.subr.mxu0 0.0
    %959 = vmatpush2.msra.mxu0 0.0
    %960 = vmatprep.subr.mxu0 0.0
    %961 = vmatpush2.msra.mxu0 0.0
    %962 = vmatprep.subr.mxu0 0.0
    %963 = vmatpush2.msra.mxu0 0.0
    %964 = vmatprep.subr.mxu0 0.0
    %965 = vmatpush2.msra.mxu0 0.0
    %966 = vmatprep.subr.mxu0 0.0
    %967 = vmatpush2.msra.mxu0 0.0
    %968 = vmatprep.subr.mxu0 0.0
    %969 = vmatpush2.msra.mxu0 0.0
    %970 = vmatprep.subr.mxu0 0.0
    %971 = vmatpush2.msra.mxu0 0.0
    %972 = vmatprep.subr.mxu0 0.0
    %973 = vmatpush2.msra.mxu0 0.0
    %974 = vmatprep.subr.mxu0 0.0
    %975 = vmatpush2.msra.mxu0 0.0
    %976 = vmatprep.subr.mxu0 0.0
    %977 = vmatpush2.msra.mxu0 0.0
    %978 = vmatprep.subr.mxu0 0.0
    %979 = vmatpush2.msra.mxu0 0.0
    %980 = vmatprep.subr.mxu0 0.0
    %981 = vmatpush2.msra.mxu0 0.0
    %982 = vmatprep.subr.mxu0 0.0
    %983 = vmatpush2.msra.mxu0 0.0
    %984 = vmatprep.subr.mxu0 0.0
    %985 = vmatpush2.msra.mxu0 0.0
    %986 = vmatprep.subr.mxu0 0.0
    %987 = vmatpush2.msra.mxu0 0.0
    %988 = vmatprep.subr.mxu0 0.0
    %989 = vmatpush2.msra.mxu0 0.0
    %990 = vmatprep.mubr.f32.mxu0 0.0
    %991 = vmatmul.mubr.f32.gmra.mxu0 %v924
    %v992 = vpop.f32.mrf.mxu0
    %v993 = vadd.f32 0.0, %v992
    %v994 = vpop.f32.mrf.mxu0
    %v995 = vadd.f32 0.0, %v994
    %996 = vdwg.mxu0
    %v997 = vadd.f32 %v921, %v993
    %v998 = vadd.f32 %v922, %v995
    %v999 = vxor.u32 %v997, 2147483648
    %v1000 = vxor.u32 %v998, 2147483648
    %v1001 = vmul.f32 %v999, 1.442695
    %v1002 = vpow.pop %v1001
    %v1003 = vmul.f32 %v1000, 1.442695
    %v1004 = vpow.pop %v1003
    %v1005 = vadd.f32 %v1002, 1.0
    %v1006 = vadd.f32 %v1004, 1.0
    %v1007 = vrcp.pop %v1005
    %v1008 = vmul.f32 1.0, %v1007
    %v1009 = vrcp.pop %v1006
    %v1010 = vmul.f32 1.0, %v1009
    %v1011 = vtanh.pop %v998
    %v1012 = vmul.f32 %v1008, %v908
    %1014 = vrot.lane.b32.xlu0 %v1011, 64
    %v1015 = vpop.permute.xlu0 %1014
    %v1017 = vmul.f32 %v1008, %v1015
    %1019 = vrot.lane.b32.xlu0 %v1017, 64
    %v1020 = vpop.permute.xlu0 %1019
    %v1022 = vadd.f32 %v1012, %v1020
    %v1023 = vtanh.pop %v1022
    %1025 = vrot.lane.b32.xlu0 %v1023, 64
    %v1026 = vpop.permute.xlu0 %1025
    %v1028 = vmul.f32 %v1010, %v1026
    %1029 = vst.msk [vmem:[#allocation2 + $0x28] sm:$0xff] %vm457, %v1028
    %1030 = vst.msk [vmem:[#allocation2 + $0x10] sm:$0xff] %vm459, %v1028
    %v1031 = vld [vmem:[#allocation3 + $0x60] sm:$0xff]
    %v1032 = vld [vmem:[#allocation3 + $0x68] sm:$0xff]
    %v1033 = vld [vmem:[#allocation3 + $0x10] sm:$0xff]
    %v1034 = vld [vmem:[#allocation3 + $0x18] sm:$0xff]
    %v1035 = vsel %vm112, %v1031, %v1033
    %v1036 = vsel %vm113, %v1032, %v1034
    %v1038 = vsel %vm350, %v1028, 0
    %1040 = vmatprep.subr.mxu0 0.0
    %1041 = vmatpush1.msra.mxu0 0.0
    %1042 = vmatprep.subr.mxu0 0.0
    %1043 = vmatpush1.msra.mxu0 0.0
    %1044 = vmatprep.subr.mxu0 0.0
    %1045 = vmatpush1.msra.mxu0 0.0
    %1046 = vmatprep.subr.mxu0 0.0
    %1047 = vmatpush1.msra.mxu0 0.0
    %1048 = vmatprep.subr.mxu0 0.0
    %1049 = vmatpush1.msra.mxu0 0.0
    %1050 = vmatprep.subr.mxu0 0.0
    %1051 = vmatpush1.msra.mxu0 0.0
    %1052 = vmatprep.subr.mxu0 0.0
    %1053 = vmatpush1.msra.mxu0 0.0
    %1054 = vmatprep.subr.mxu0 0.0
    %1055 = vmatpush1.msra.mxu0 0.0
    %1056 = vmatprep.subr.mxu0 %v343
    %1057 = vmatpush1.msra.mxu0 %v342
    %1058 = vmatprep.subr.mxu0 %v341
    %1059 = vmatpush1.msra.mxu0 %v340
    %1060 = vmatprep.subr.mxu0 %v339
    %1061 = vmatpush1.msra.mxu0 %v338
    %1062 = vmatprep.subr.mxu0 %v337
    %1063 = vmatpush1.msra.mxu0 %v336
    %1064 = vmatprep.subr.mxu0 %v335
    %1065 = vmatpush1.msra.mxu0 %v334
    %1066 = vmatprep.subr.mxu0 %v333
    %1067 = vmatpush1.msra.mxu0 %v332
    %1068 = vmatprep.subr.mxu0 %v331
    %1069 = vmatpush1.msra.mxu0 %v330
    %1070 = vmatprep.subr.mxu0 %v329
    %1071 = vmatpush1.msra.mxu0 %v328
    %1072 = vmatprep.subr.mxu0 0.0
    %1073 = vmatpush2.msra.mxu0 0.0
    %1074 = vmatprep.subr.mxu0 0.0
    %1075 = vmatpush2.msra.mxu0 0.0
    %1076 = vmatprep.subr.mxu0 0.0
    %1077 = vmatpush2.msra.mxu0 0.0
    %1078 = vmatprep.subr.mxu0 0.0
    %1079 = vmatpush2.msra.mxu0 0.0
    %1080 = vmatprep.subr.mxu0 0.0
    %1081 = vmatpush2.msra.mxu0 0.0
    %1082 = vmatprep.subr.mxu0 0.0
    %1083 = vmatpush2.msra.mxu0 0.0
    %1084 = vmatprep.subr.mxu0 0.0
    %1085 = vmatpush2.msra.mxu0 0.0
    %1086 = vmatprep.subr.mxu0 0.0
    %1087 = vmatpush2.msra.mxu0 0.0
    %1088 = vmatprep.subr.mxu0 0.0
    %1089 = vmatpush2.msra.mxu0 0.0
    %1090 = vmatprep.subr.mxu0 0.0
    %1091 = vmatpush2.msra.mxu0 0.0
    %1092 = vmatprep.subr.mxu0 0.0
    %1093 = vmatpush2.msra.mxu0 0.0
    %1094 = vmatprep.subr.mxu0 0.0
    %1095 = vmatpush2.msra.mxu0 0.0
    %1096 = vmatprep.subr.mxu0 0.0
    %1097 = vmatpush2.msra.mxu0 0.0
    %1098 = vmatprep.subr.mxu0 0.0
    %1099 = vmatpush2.msra.mxu0 0.0
    %1100 = vmatprep.subr.mxu0 0.0
    %1101 = vmatpush2.msra.mxu0 0.0
    %1102 = vmatprep.subr.mxu0 0.0
    %1103 = vmatpush2.msra.mxu0 0.0
    %1104 = vmatprep.mubr.f32.mxu0 0.0
    %1105 = vmatmul.mubr.f32.gmra.mxu0 %v1038
    %v1106 = vpop.f32.mrf.mxu0
    %v1107 = vadd.f32 0.0, %v1106
    %v1108 = vpop.f32.mrf.mxu0
    %v1109 = vadd.f32 0.0, %v1108
    %1110 = vdwg.mxu0
    %v1111 = vadd.f32 %v1035, %v1107
    %v1112 = vadd.f32 %v1036, %v1109
    %v1113 = vxor.u32 %v1111, 2147483648
    %v1114 = vxor.u32 %v1112, 2147483648
    %v1115 = vmul.f32 %v1113, 1.442695
    %v1116 = vpow.pop %v1115
    %v1117 = vmul.f32 %v1114, 1.442695
    %v1118 = vpow.pop %v1117
    %v1119 = vadd.f32 %v1116, 1.0
    %v1120 = vadd.f32 %v1118, 1.0
    %v1121 = vrcp.pop %v1119
    %v1122 = vmul.f32 1.0, %v1121
    %v1123 = vrcp.pop %v1120
    %v1124 = vmul.f32 1.0, %v1123
    %v1125 = vtanh.pop %v1112
    %v1126 = vmul.f32 %v1122, %v1022
    %1128 = vrot.lane.b32.xlu0 %v1125, 64
    %v1129 = vpop.permute.xlu0 %1128
    %v1131 = vmul.f32 %v1122, %v1129
    %1133 = vrot.lane.b32.xlu0 %v1131, 64
    %v1134 = vpop.permute.xlu0 %1133
    %v1136 = vadd.f32 %v1126, %v1134
    %v1137 = vtanh.pop %v1136
    %1139 = vrot.lane.b32.xlu0 %v1137, 64
    %v1140 = vpop.permute.xlu0 %1139
    %v1142 = vmul.f32 %v1124, %v1140
    %1143 = vst.msk [vmem:[#allocation2 + $0x30] sm:$0xff] %vm457, %v1142
    %1144 = vst.msk [vmem:[#allocation2 + $0x8] sm:$0xff] %vm459, %v1142
    %v1145 = vld [vmem:[#allocation3 + $0x70] sm:$0xff]
    %v1146 = vld [vmem:[#allocation3 + $0x78] sm:$0xff]
    %v1147 = vld [vmem:[#allocation3] sm:$0xff]
    %v1148 = vld [vmem:[#allocation3 + $0x8] sm:$0xff]
    %v1149 = vsel %vm112, %v1145, %v1147
    %v1150 = vsel %vm113, %v1146, %v1148
    %v1152 = vsel %vm350, %v1142, 0
    %1154 = vmatprep.subr.mxu0 0.0
    %1155 = vmatpush1.msra.mxu0 0.0
    %1156 = vmatprep.subr.mxu0 0.0
    %1157 = vmatpush1.msra.mxu0 0.0
    %1158 = vmatprep.subr.mxu0 0.0
    %1159 = vmatpush1.msra.mxu0 0.0
    %1160 = vmatprep.subr.mxu0 0.0
    %1161 = vmatpush1.msra.mxu0 0.0
    %1162 = vmatprep.subr.mxu0 0.0
    %1163 = vmatpush1.msra.mxu0 0.0
    %1164 = vmatprep.subr.mxu0 0.0
    %1165 = vmatpush1.msra.mxu0 0.0
    %1166 = vmatprep.subr.mxu0 0.0
    %1167 = vmatpush1.msra.mxu0 0.0
    %1168 = vmatprep.subr.mxu0 0.0
    %1169 = vmatpush1.msra.mxu0 0.0
    %1170 = vmatprep.subr.mxu0 %v343
    %1171 = vmatpush1.msra.mxu0 %v342
    %1172 = vmatprep.subr.mxu0 %v341
    %1173 = vmatpush1.msra.mxu0 %v340
    %1174 = vmatprep.subr.mxu0 %v339
    %1175 = vmatpush1.msra.mxu0 %v338
    %1176 = vmatprep.subr.mxu0 %v337
    %1177 = vmatpush1.msra.mxu0 %v336
    %1178 = vmatprep.subr.mxu0 %v335
    %1179 = vmatpush1.msra.mxu0 %v334
    %1180 = vmatprep.subr.mxu0 %v333
    %1181 = vmatpush1.msra.mxu0 %v332
    %1182 = vmatprep.subr.mxu0 %v331
    %1183 = vmatpush1.msra.mxu0 %v330
    %1184 = vmatprep.subr.mxu0 %v329
    %1185 = vmatpush1.msra.mxu0 %v328
    %1186 = vmatprep.subr.mxu0 0.0
    %1187 = vmatpush2.msra.mxu0 0.0
    %1188 = vmatprep.subr.mxu0 0.0
    %1189 = vmatpush2.msra.mxu0 0.0
    %1190 = vmatprep.subr.mxu0 0.0
    %1191 = vmatpush2.msra.mxu0 0.0
    %1192 = vmatprep.subr.mxu0 0.0
    %1193 = vmatpush2.msra.mxu0 0.0
    %1194 = vmatprep.subr.mxu0 0.0
    %1195 = vmatpush2.msra.mxu0 0.0
    %1196 = vmatprep.subr.mxu0 0.0
    %1197 = vmatpush2.msra.mxu0 0.0
    %1198 = vmatprep.subr.mxu0 0.0
    %1199 = vmatpush2.msra.mxu0 0.0
    %1200 = vmatprep.subr.mxu0 0.0
    %1201 = vmatpush2.msra.mxu0 0.0
    %1202 = vmatprep.subr.mxu0 0.0
    %1203 = vmatpush2.msra.mxu0 0.0
    %1204 = vmatprep.subr.mxu0 0.0
    %1205 = vmatpush2.msra.mxu0 0.0
    %1206 = vmatprep.subr.mxu0 0.0
    %1207 = vmatpush2.msra.mxu0 0.0
    %1208 = vmatprep.subr.mxu0 0.0
    %1209 = vmatpush2.msra.mxu0 0.0
    %1210 = vmatprep.subr.mxu0 0.0
    %1211 = vmatpush2.msra.mxu0 0.0
    %1212 = vmatprep.subr.mxu0 0.0
    %1213 = vmatpush2.msra.mxu0 0.0
    %1214 = vmatprep.subr.mxu0 0.0
    %1215 = vmatpush2.msra.mxu0 0.0
    %1216 = vmatprep.subr.mxu0 0.0
    %1217 = vmatpush2.msra.mxu0 0.0
    %1218 = vmatprep.mubr.f32.mxu0 0.0
    %1219 = vmatmul.mubr.f32.gmra.mxu0 %v1152
    %v1220 = vpop.f32.mrf.mxu0
    %v1221 = vadd.f32 0.0, %v1220
    %v1222 = vpop.f32.mrf.mxu0
    %v1223 = vadd.f32 0.0, %v1222
    %1224 = vdwg.mxu0
    %v1225 = vadd.f32 %v1149, %v1221
    %v1226 = vadd.f32 %v1150, %v1223
    %v1227 = vxor.u32 %v1225, 2147483648
    %v1228 = vxor.u32 %v1226, 2147483648
    %v1229 = vmul.f32 %v1227, 1.442695
    %v1230 = vpow.pop %v1229
    %v1231 = vmul.f32 %v1228, 1.442695
    %v1232 = vpow.pop %v1231
    %v1233 = vadd.f32 %v1230, 1.0
    %v1234 = vadd.f32 %v1232, 1.0
    %v1235 = vrcp.pop %v1233
    %v1236 = vmul.f32 1.0, %v1235
    %v1237 = vrcp.pop %v1234
    %v1238 = vmul.f32 1.0, %v1237
    %v1239 = vtanh.pop %v1226
    %v1240 = vmul.f32 %v1236, %v1136
    %1242 = vrot.lane.b32.xlu0 %v1239, 64
    %v1243 = vpop.permute.xlu0 %1242
    %v1245 = vmul.f32 %v1236, %v1243
    %1247 = vrot.lane.b32.xlu0 %v1245, 64
    %v1248 = vpop.permute.xlu0 %1247
    %v1250 = vadd.f32 %v1240, %v1248
    %v1251 = vtanh.pop %v1250
    %1253 = vrot.lane.b32.xlu0 %v1251, 64
    %v1254 = vpop.permute.xlu0 %1253
    %v1256 = vmul.f32 %v1238, %v1254
    %1257 = vst.msk [vmem:[#allocation2 + $0x38] sm:$0xff] %vm457, %v1256
    %1258 = vst.msk [vmem:[#allocation2] sm:$0xff] %vm459, %v1256
    %v1259 = vld [vmem:[#allocation2] sm:$0xff]
    %v1260 = vld [vmem:[#allocation2 + $0x8] sm:$0xff]
    %v1261 = vld [vmem:[#allocation2 + $0x10] sm:$0xff]
    %v1262 = vld [vmem:[#allocation2 + $0x18] sm:$0xff]
    %v1263 = vld [vmem:[#allocation2 + $0x20] sm:$0xff]
    %v1264 = vld [vmem:[#allocation2 + $0x28] sm:$0xff]
    %v1265 = vld [vmem:[#allocation2 + $0x30] sm:$0xff]
    %v1266 = vld [vmem:[#allocation2 + $0x38] sm:$0xff]
    %v1267 = vld [vmem:[#allocation9] sm:$0xff]
    %v1268 = vld [vmem:[#allocation9 + $0x8] sm:$0xff]
    %v1269 = vld [vmem:[#allocation9 + $0x10] sm:$0xff]
    %v1270 = vld [vmem:[#allocation9 + $0x18] sm:$0xff]
    %v1271 = vld [vmem:[#allocation9 + $0x20] sm:$0xff]
    %v1272 = vld [vmem:[#allocation9 + $0x28] sm:$0xff]
    %v1273 = vld [vmem:[#allocation9 + $0x30] sm:$0xff]
    %v1274 = vld [vmem:[#allocation9 + $0x38] sm:$0xff]
    %v1275 = vld [vmem:[#allocation9 + $0x40] sm:$0xff]
    %v1276 = vld [vmem:[#allocation9 + $0x48] sm:$0xff]
    %v1277 = vld [vmem:[#allocation9 + $0x50] sm:$0xff]
    %v1278 = vld [vmem:[#allocation9 + $0x58] sm:$0xff]
    %v1279 = vld [vmem:[#allocation9 + $0x60] sm:$0xff]
    %v1280 = vld [vmem:[#allocation9 + $0x68] sm:$0xff]
    %v1281 = vld [vmem:[#allocation9 + $0x70] sm:$0xff]
    %v1282 = vld [vmem:[#allocation9 + $0x78] sm:$0xff]
    %v1283 = vld [vmem:[%s4] sm:$0x3]
    %v1285 = vlaneseq
    %v1286 = vshrl.u32 %v1285, 7
    %v1287 = vsub.s32 0, %v1286
    %v1288 = vrot.slane %v1283, %v1287
    %v1289 = vlaneseq
    %v1290 = vshrl.u32 %v1289, 7
    %v1291 = vsub.s32 1, %v1290
    %v1292 = vrot.slane %v1283, %v1291
    %v1296 = vsel %vm350, %v1259, 0
    %v1299 = vsel %vm350, %v1260, 0
    %v1302 = vsel %vm350, %v1261, 0
    %v1305 = vsel %vm350, %v1262, 0
    %v1308 = vsel %vm350, %v1263, 0
    %v1311 = vsel %vm350, %v1264, 0
    %v1314 = vsel %vm350, %v1265, 0
    %v1317 = vsel %vm350, %v1266, 0
    %1319 = vmatprep.subr.mxu0 0.0
    %1320 = vmatpush1.msra.mxu0 0.0
    %1321 = vmatprep.subr.mxu0 0.0
    %1322 = vmatpush1.msra.mxu0 0.0
    %1323 = vmatprep.subr.mxu0 0.0
    %1324 = vmatpush1.msra.mxu0 0.0
    %1325 = vmatprep.subr.mxu0 0.0
    %1326 = vmatpush1.msra.mxu0 0.0
    %1327 = vmatprep.subr.mxu0 0.0
    %1328 = vmatpush1.msra.mxu0 0.0
    %1329 = vmatprep.subr.mxu0 0.0
    %1330 = vmatpush1.msra.mxu0 0.0
    %1331 = vmatprep.subr.mxu0 0.0
    %1332 = vmatpush1.msra.mxu0 0.0
    %1333 = vmatprep.subr.mxu0 0.0
    %1334 = vmatpush1.msra.mxu0 0.0
    %1335 = vmatprep.subr.mxu0 %v1282
    %1336 = vmatpush1.msra.mxu0 %v1281
    %1337 = vmatprep.subr.mxu0 %v1280
    %1338 = vmatpush1.msra.mxu0 %v1279
    %1339 = vmatprep.subr.mxu0 %v1278
    %1340 = vmatpush1.msra.mxu0 %v1277
    %1341 = vmatprep.subr.mxu0 %v1276
    %1342 = vmatpush1.msra.mxu0 %v1275
    %1343 = vmatprep.subr.mxu0 %v1274
    %1344 = vmatpush1.msra.mxu0 %v1273
    %1345 = vmatprep.subr.mxu0 %v1272
    %1346 = vmatpush1.msra.mxu0 %v1271
    %1347 = vmatprep.subr.mxu0 %v1270
    %1348 = vmatpush1.msra.mxu0 %v1269
    %1349 = vmatprep.subr.mxu0 %v1268
    %1350 = vmatpush1.msra.mxu0 %v1267
    %1351 = vmatprep.subr.mxu0 0.0
    %1352 = vmatpush2.msra.mxu0 0.0
    %1353 = vmatprep.subr.mxu0 0.0
    %1354 = vmatpush2.msra.mxu0 0.0
    %1355 = vmatprep.subr.mxu0 0.0
    %1356 = vmatpush2.msra.mxu0 0.0
    %1357 = vmatprep.subr.mxu0 0.0
    %1358 = vmatpush2.msra.mxu0 0.0
    %1359 = vmatprep.subr.mxu0 0.0
    %1360 = vmatpush2.msra.mxu0 0.0
    %1361 = vmatprep.subr.mxu0 0.0
    %1362 = vmatpush2.msra.mxu0 0.0
    %1363 = vmatprep.subr.mxu0 0.0
    %1364 = vmatpush2.msra.mxu0 0.0
    %1365 = vmatprep.subr.mxu0 0.0
    %1366 = vmatpush2.msra.mxu0 0.0
    %1367 = vmatprep.subr.mxu0 0.0
    %1368 = vmatpush2.msra.mxu0 0.0
    %1369 = vmatprep.subr.mxu0 0.0
    %1370 = vmatpush2.msra.mxu0 0.0
    %1371 = vmatprep.subr.mxu0 0.0
    %1372 = vmatpush2.msra.mxu0 0.0
    %1373 = vmatprep.subr.mxu0 0.0
    %1374 = vmatpush2.msra.mxu0 0.0
    %1375 = vmatprep.subr.mxu0 0.0
    %1376 = vmatpush2.msra.mxu0 0.0
    %1377 = vmatprep.subr.mxu0 0.0
    %1378 = vmatpush2.msra.mxu0 0.0
    %1379 = vmatprep.subr.mxu0 0.0
    %1380 = vmatpush2.msra.mxu0 0.0
    %1381 = vmatprep.subr.mxu0 0.0
    %1382 = vmatpush2.msra.mxu0 0.0
    %1383 = vmatprep.mubr.f32.mxu0 0.0
    %1384 = vmatmul.mubr.f32.gmra.mxu0 %v1296
    %v1385 = vpop.f32.mrf.mxu0
    %v1386 = vadd.f32 %v1288, %v1385
    %v1387 = vpop.f32.mrf.mxu0
    %v1388 = vadd.f32 %v1292, %v1387
    %1389 = vmatprep.mubr.f32.mxu0 0.0
    %1390 = vmatmul.mubr.f32.gmra.mxu0 %v1299
    %v1391 = vpop.f32.mrf.mxu0
    %v1392 = vadd.f32 %v1288, %v1391
    %v1393 = vpop.f32.mrf.mxu0
    %v1394 = vadd.f32 %v1292, %v1393
    %1395 = vmatprep.mubr.f32.mxu0 0.0
    %1396 = vmatmul.mubr.f32.gmra.mxu0 %v1302
    %v1397 = vpop.f32.mrf.mxu0
    %v1398 = vadd.f32 %v1288, %v1397
    %v1399 = vpop.f32.mrf.mxu0
    %v1400 = vadd.f32 %v1292, %v1399
    %1401 = vmatprep.mubr.f32.mxu0 0.0
    %1402 = vmatmul.mubr.f32.gmra.mxu0 %v1305
    %v1403 = vpop.f32.mrf.mxu0
    %v1404 = vadd.f32 %v1288, %v1403
    %v1405 = vpop.f32.mrf.mxu0
    %v1406 = vadd.f32 %v1292, %v1405
    %1407 = vmatprep.mubr.f32.mxu0 0.0
    %1408 = vmatmul.mubr.f32.gmra.mxu0 %v1308
    %v1409 = vpop.f32.mrf.mxu0
    %v1410 = vadd.f32 %v1288, %v1409
    %v1411 = vpop.f32.mrf.mxu0
    %v1412 = vadd.f32 %v1292, %v1411
    %1413 = vmatprep.mubr.f32.mxu0 0.0
    %1414 = vmatmul.mubr.f32.gmra.mxu0 %v1311
    %v1415 = vpop.f32.mrf.mxu0
    %v1416 = vadd.f32 %v1288, %v1415
    %v1417 = vpop.f32.mrf.mxu0
    %v1418 = vadd.f32 %v1292, %v1417
    %1419 = vmatprep.mubr.f32.mxu0 0.0
    %1420 = vmatmul.mubr.f32.gmra.mxu0 %v1314
    %v1421 = vpop.f32.mrf.mxu0
    %v1422 = vadd.f32 %v1288, %v1421
    %v1423 = vpop.f32.mrf.mxu0
    %v1424 = vadd.f32 %v1292, %v1423
    %1425 = vmatprep.mubr.f32.mxu0 0.0
    %1426 = vmatmul.mubr.f32.gmra.mxu0 %v1317
    %v1427 = vpop.f32.mrf.mxu0
    %v1428 = vadd.f32 %v1288, %v1427
    %v1429 = vpop.f32.mrf.mxu0
    %v1430 = vadd.f32 %v1292, %v1429
    %1431 = vdwg.mxu0
    %1432 = vst [vmem:[#allocation3] sm:$0xff] %v1386
    %1433 = vst [vmem:[#allocation3 + $0x8] sm:$0xff] %v1388
    %1434 = vst [vmem:[#allocation3 + $0x10] sm:$0xff] %v1392
    %1435 = vst [vmem:[#allocation3 + $0x18] sm:$0xff] %v1394
    %1436 = vst [vmem:[#allocation3 + $0x20] sm:$0xff] %v1398
    %1437 = vst [vmem:[#allocation3 + $0x28] sm:$0xff] %v1400
    %1438 = vst [vmem:[#allocation3 + $0x30] sm:$0xff] %v1404
    %1439 = vst [vmem:[#allocation3 + $0x38] sm:$0xff] %v1406
    %1440 = vst [vmem:[#allocation3 + $0x40] sm:$0xff] %v1410
    %1441 = vst [vmem:[#allocation3 + $0x48] sm:$0xff] %v1412
    %1442 = vst [vmem:[#allocation3 + $0x50] sm:$0xff] %v1416
    %1443 = vst [vmem:[#allocation3 + $0x58] sm:$0xff] %v1418
    %1444 = vst [vmem:[#allocation3 + $0x60] sm:$0xff] %v1422
    %1445 = vst [vmem:[#allocation3 + $0x68] sm:$0xff] %v1424
    %1446 = vst [vmem:[#allocation3 + $0x70] sm:$0xff] %v1428
    %1447 = vst [vmem:[#allocation3 + $0x78] sm:$0xff] %v1430
    %v1448 = vld [vmem:[#allocation10] sm:$0xff]
    %v1449 = vld [vmem:[#allocation10 + $0x8] sm:$0xff]
    %v1450 = vld [vmem:[#allocation10 + $0x10] sm:$0xff]
    %v1451 = vld [vmem:[#allocation10 + $0x18] sm:$0xff]
    %v1452 = vld [vmem:[#allocation10 + $0x20] sm:$0xff]
    %v1453 = vld [vmem:[#allocation10 + $0x28] sm:$0xff]
    %v1454 = vld [vmem:[#allocation10 + $0x30] sm:$0xff]
    %v1455 = vld [vmem:[#allocation10 + $0x38] sm:$0xff]
    %v1456 = vld [vmem:[#allocation10 + $0x40] sm:$0xff]
    %v1457 = vld [vmem:[#allocation10 + $0x48] sm:$0xff]
    %v1458 = vld [vmem:[#allocation10 + $0x50] sm:$0xff]
    %v1459 = vld [vmem:[#allocation10 + $0x58] sm:$0xff]
    %v1460 = vld [vmem:[#allocation10 + $0x60] sm:$0xff]
    %v1461 = vld [vmem:[#allocation10 + $0x68] sm:$0xff]
    %v1462 = vld [vmem:[#allocation10 + $0x70] sm:$0xff]
    %v1463 = vld [vmem:[#allocation10 + $0x78] sm:$0xff]
    %v1464 = vld [vmem:[#allocation3] sm:$0xff]
    %v1465 = vld [vmem:[#allocation3 + $0x8] sm:$0xff]
    %v1466 = vld [vmem:[#allocation3 + $0x70] sm:$0xff]
    %v1467 = vld [vmem:[#allocation3 + $0x78] sm:$0xff]
    %v1468 = vsel %vm112, %v1464, %v1466
    %v1469 = vsel %vm113, %v1465, %v1467
    %1470 = vmatprep.subr.mxu0 0.0
    %1471 = vmatpush1.msra.mxu0 0.0
    %1472 = vmatprep.subr.mxu0 0.0
    %1473 = vmatpush1.msra.mxu0 0.0
    %1474 = vmatprep.subr.mxu0 0.0
    %1475 = vmatpush1.msra.mxu0 0.0
    %1476 = vmatprep.subr.mxu0 0.0
    %1477 = vmatpush1.msra.mxu0 0.0
    %1478 = vmatprep.subr.mxu0 0.0
    %1479 = vmatpush1.msra.mxu0 0.0
    %1480 = vmatprep.subr.mxu0 0.0
    %1481 = vmatpush1.msra.mxu0 0.0
    %1482 = vmatprep.subr.mxu0 0.0
    %1483 = vmatpush1.msra.mxu0 0.0
    %1484 = vmatprep.subr.mxu0 0.0
    %1485 = vmatpush1.msra.mxu0 0.0
    %1486 = vmatprep.subr.mxu0 %v1463
    %1487 = vmatpush1.msra.mxu0 %v1462
    %1488 = vmatprep.subr.mxu0 %v1461
    %1489 = vmatpush1.msra.mxu0 %v1460
    %1490 = vmatprep.subr.mxu0 %v1459
    %1491 = vmatpush1.msra.mxu0 %v1458
    %1492 = vmatprep.subr.mxu0 %v1457
    %1493 = vmatpush1.msra.mxu0 %v1456
    %1494 = vmatprep.subr.mxu0 %v1455
    %1495 = vmatpush1.msra.mxu0 %v1454
    %1496 = vmatprep.subr.mxu0 %v1453
    %1497 = vmatpush1.msra.mxu0 %v1452
    %1498 = vmatprep.subr.mxu0 %v1451
    %1499 = vmatpush1.msra.mxu0 %v1450
    %1500 = vmatprep.subr.mxu0 %v1449
    %1501 = vmatpush1.msra.mxu0 %v1448
    %1502 = vmatprep.subr.mxu0 0.0
    %1503 = vmatpush2.msra.mxu0 0.0
    %1504 = vmatprep.subr.mxu0 0.0
    %1505 = vmatpush2.msra.mxu0 0.0
    %1506 = vmatprep.subr.mxu0 0.0
    %1507 = vmatpush2.msra.mxu0 0.0
    %1508 = vmatprep.subr.mxu0 0.0
    %1509 = vmatpush2.msra.mxu0 0.0
    %1510 = vmatprep.subr.mxu0 0.0
    %1511 = vmatpush2.msra.mxu0 0.0
    %1512 = vmatprep.subr.mxu0 0.0
    %1513 = vmatpush2.msra.mxu0 0.0
    %1514 = vmatprep.subr.mxu0 0.0
    %1515 = vmatpush2.msra.mxu0 0.0
    %1516 = vmatprep.subr.mxu0 0.0
    %1517 = vmatpush2.msra.mxu0 0.0
    %1518 = vmatprep.subr.mxu0 0.0
    %1519 = vmatpush2.msra.mxu0 0.0
    %1520 = vmatprep.subr.mxu0 0.0
    %1521 = vmatpush2.msra.mxu0 0.0
    %1522 = vmatprep.subr.mxu0 0.0
    %1523 = vmatpush2.msra.mxu0 0.0
    %1524 = vmatprep.subr.mxu0 0.0
    %1525 = vmatpush2.msra.mxu0 0.0
    %1526 = vmatprep.subr.mxu0 0.0
    %1527 = vmatpush2.msra.mxu0 0.0
    %1528 = vmatprep.subr.mxu0 0.0
    %1529 = vmatpush2.msra.mxu0 0.0
    %1530 = vmatprep.subr.mxu0 0.0
    %1531 = vmatpush2.msra.mxu0 0.0
    %1532 = vmatprep.subr.mxu0 0.0
    %1533 = vmatpush2.msra.mxu0 0.0
    %1534 = vmatprep.mubr.f32.mxu0 0.0
    %1535 = vmatmul.mubr.f32.gmra.mxu0 %v352
    %v1536 = vpop.f32.mrf.mxu0
    %v1537 = vadd.f32 0.0, %v1536
    %v1538 = vpop.f32.mrf.mxu0
    %v1539 = vadd.f32 0.0, %v1538
    %1540 = vdwg.mxu0
    %v1541 = vadd.f32 %v1468, %v1537
    %v1542 = vadd.f32 %v1469, %v1539
    %v1543 = vxor.u32 %v1541, 2147483648
    %v1544 = vxor.u32 %v1542, 2147483648
    %v1545 = vmul.f32 %v1543, 1.442695
    %v1546 = vpow.pop %v1545
    %v1547 = vmul.f32 %v1544, 1.442695
    %v1548 = vpow.pop %v1547
    %v1549 = vadd.f32 %v1546, 1.0
    %v1550 = vadd.f32 %v1548, 1.0
    %v1551 = vrcp.pop %v1549
    %v1552 = vmul.f32 1.0, %v1551
    %v1553 = vrcp.pop %v1550
    %v1554 = vmul.f32 1.0, %v1553
    %v1555 = vtanh.pop %v1542
    %v1556 = vmul.f32 %v1552, 0.0
    %1558 = vrot.lane.b32.xlu0 %v1555, 64
    %v1559 = vpop.permute.xlu0 %1558
    %v1561 = vmul.f32 %v1552, %v1559
    %1563 = vrot.lane.b32.xlu0 %v1561, 64
    %v1564 = vpop.permute.xlu0 %1563
    %v1566 = vadd.f32 %v1556, %v1564
    %v1567 = vtanh.pop %v1566
    %1569 = vrot.lane.b32.xlu0 %v1567, 64
    %v1570 = vpop.permute.xlu0 %1569
    %v1572 = vmul.f32 %v1554, %v1570
    %1573 = vst.msk [vmem:[#allocation2] sm:$0xff] %vm457, %v1572
    %1574 = vst.msk [vmem:[#allocation2 + $0x38] sm:$0xff] %vm459, %v1572
    %v1575 = vld [vmem:[#allocation3 + $0x10] sm:$0xff]
    %v1576 = vld [vmem:[#allocation3 + $0x18] sm:$0xff]
    %v1577 = vld [vmem:[#allocation3 + $0x60] sm:$0xff]
    %v1578 = vld [vmem:[#allocation3 + $0x68] sm:$0xff]
    %v1579 = vsel %vm112, %v1575, %v1577
    %v1580 = vsel %vm113, %v1576, %v1578
    %v1582 = vsel %vm350, %v1572, 0
    %1584 = vmatprep.subr.mxu0 0.0
    %1585 = vmatpush1.msra.mxu0 0.0
    %1586 = vmatprep.subr.mxu0 0.0
    %1587 = vmatpush1.msra.mxu0 0.0
    %1588 = vmatprep.subr.mxu0 0.0
    %1589 = vmatpush1.msra.mxu0 0.0
    %1590 = vmatprep.subr.mxu0 0.0
    %1591 = vmatpush1.msra.mxu0 0.0
    %1592 = vmatprep.subr.mxu0 0.0
    %1593 = vmatpush1.msra.mxu0 0.0
    %1594 = vmatprep.subr.mxu0 0.0
    %1595 = vmatpush1.msra.mxu0 0.0
    %1596 = vmatprep.subr.mxu0 0.0
    %1597 = vmatpush1.msra.mxu0 0.0
    %1598 = vmatprep.subr.mxu0 0.0
    %1599 = vmatpush1.msra.mxu0 0.0
    %1600 = vmatprep.subr.mxu0 %v1463
    %1601 = vmatpush1.msra.mxu0 %v1462
    %1602 = vmatprep.subr.mxu0 %v1461
    %1603 = vmatpush1.msra.mxu0 %v1460
    %1604 = vmatprep.subr.mxu0 %v1459
    %1605 = vmatpush1.msra.mxu0 %v1458
    %1606 = vmatprep.subr.mxu0 %v1457
    %1607 = vmatpush1.msra.mxu0 %v1456
    %1608 = vmatprep.subr.mxu0 %v1455
    %1609 = vmatpush1.msra.mxu0 %v1454
    %1610 = vmatprep.subr.mxu0 %v1453
    %1611 = vmatpush1.msra.mxu0 %v1452
    %1612 = vmatprep.subr.mxu0 %v1451
    %1613 = vmatpush1.msra.mxu0 %v1450
    %1614 = vmatprep.subr.mxu0 %v1449
    %1615 = vmatpush1.msra.mxu0 %v1448
    %1616 = vmatprep.subr.mxu0 0.0
    %1617 = vmatpush2.msra.mxu0 0.0
    %1618 = vmatprep.subr.mxu0 0.0
    %1619 = vmatpush2.msra.mxu0 0.0
    %1620 = vmatprep.subr.mxu0 0.0
    %1621 = vmatpush2.msra.mxu0 0.0
    %1622 = vmatprep.subr.mxu0 0.0
    %1623 = vmatpush2.msra.mxu0 0.0
    %1624 = vmatprep.subr.mxu0 0.0
    %1625 = vmatpush2.msra.mxu0 0.0
    %1626 = vmatprep.subr.mxu0 0.0
    %1627 = vmatpush2.msra.mxu0 0.0
    %1628 = vmatprep.subr.mxu0 0.0
    %1629 = vmatpush2.msra.mxu0 0.0
    %1630 = vmatprep.subr.mxu0 0.0
    %1631 = vmatpush2.msra.mxu0 0.0
    %1632 = vmatprep.subr.mxu0 0.0
    %1633 = vmatpush2.msra.mxu0 0.0
    %1634 = vmatprep.subr.mxu0 0.0
    %1635 = vmatpush2.msra.mxu0 0.0
    %1636 = vmatprep.subr.mxu0 0.0
    %1637 = vmatpush2.msra.mxu0 0.0
    %1638 = vmatprep.subr.mxu0 0.0
    %1639 = vmatpush2.msra.mxu0 0.0
    %1640 = vmatprep.subr.mxu0 0.0
    %1641 = vmatpush2.msra.mxu0 0.0
    %1642 = vmatprep.subr.mxu0 0.0
    %1643 = vmatpush2.msra.mxu0 0.0
    %1644 = vmatprep.subr.mxu0 0.0
    %1645 = vmatpush2.msra.mxu0 0.0
    %1646 = vmatprep.subr.mxu0 0.0
    %1647 = vmatpush2.msra.mxu0 0.0
    %1648 = vmatprep.mubr.f32.mxu0 0.0
    %1649 = vmatmul.mubr.f32.gmra.mxu0 %v1582
    %v1650 = vpop.f32.mrf.mxu0
    %v1651 = vadd.f32 0.0, %v1650
    %v1652 = vpop.f32.mrf.mxu0
    %v1653 = vadd.f32 0.0, %v1652
    %1654 = vdwg.mxu0
    %v1655 = vadd.f32 %v1579, %v1651
    %v1656 = vadd.f32 %v1580, %v1653
    %v1657 = vxor.u32 %v1655, 2147483648
    %v1658 = vxor.u32 %v1656, 2147483648
    %v1659 = vmul.f32 %v1657, 1.442695
    %v1660 = vpow.pop %v1659
    %v1661 = vmul.f32 %v1658, 1.442695
    %v1662 = vpow.pop %v1661
    %v1663 = vadd.f32 %v1660, 1.0
    %v1664 = vadd.f32 %v1662, 1.0
    %v1665 = vrcp.pop %v1663
    %v1666 = vmul.f32 1.0, %v1665
    %v1667 = vrcp.pop %v1664
    %v1668 = vmul.f32 1.0, %v1667
    %v1669 = vtanh.pop %v1656
    %v1670 = vmul.f32 %v1666, %v1566
    %1672 = vrot.lane.b32.xlu0 %v1669, 64
    %v1673 = vpop.permute.xlu0 %1672
    %v1675 = vmul.f32 %v1666, %v1673
    %1677 = vrot.lane.b32.xlu0 %v1675, 64
    %v1678 = vpop.permute.xlu0 %1677
    %v1680 = vadd.f32 %v1670, %v1678
    %v1681 = vtanh.pop %v1680
    %1683 = vrot.lane.b32.xlu0 %v1681, 64
    %v1684 = vpop.permute.xlu0 %1683
    %v1686 = vmul.f32 %v1668, %v1684
    %1687 = vst.msk [vmem:[#allocation2 + $0x8] sm:$0xff] %vm457, %v1686
    %1688 = vst.msk [vmem:[#allocation2 + $0x30] sm:$0xff] %vm459, %v1686
    %v1689 = vld [vmem:[#allocation3 + $0x20] sm:$0xff]
    %v1690 = vld [vmem:[#allocation3 + $0x28] sm:$0xff]
    %v1691 = vld [vmem:[#allocation3 + $0x50] sm:$0xff]
    %v1692 = vld [vmem:[#allocation3 + $0x58] sm:$0xff]
    %v1693 = vsel %vm112, %v1689, %v1691
    %v1694 = vsel %vm113, %v1690, %v1692
    %v1696 = vsel %vm350, %v1686, 0
    %1698 = vmatprep.subr.mxu0 0.0
    %1699 = vmatpush1.msra.mxu0 0.0
    %1700 = vmatprep.subr.mxu0 0.0
    %1701 = vmatpush1.msra.mxu0 0.0
    %1702 = vmatprep.subr.mxu0 0.0
    %1703 = vmatpush1.msra.mxu0 0.0
    %1704 = vmatprep.subr.mxu0 0.0
    %1705 = vmatpush1.msra.mxu0 0.0
    %1706 = vmatprep.subr.mxu0 0.0
    %1707 = vmatpush1.msra.mxu0 0.0
    %1708 = vmatprep.subr.mxu0 0.0
    %1709 = vmatpush1.msra.mxu0 0.0
    %1710 = vmatprep.subr.mxu0 0.0
    %1711 = vmatpush1.msra.mxu0 0.0
    %1712 = vmatprep.subr.mxu0 0.0
    %1713 = vmatpush1.msra.mxu0 0.0
    %1714 = vmatprep.subr.mxu0 %v1463
    %1715 = vmatpush1.msra.mxu0 %v1462
    %1716 = vmatprep.subr.mxu0 %v1461
    %1717 = vmatpush1.msra.mxu0 %v1460
    %1718 = vmatprep.subr.mxu0 %v1459
    %1719 = vmatpush1.msra.mxu0 %v1458
    %1720 = vmatprep.subr.mxu0 %v1457
    %1721 = vmatpush1.msra.mxu0 %v1456
    %1722 = vmatprep.subr.mxu0 %v1455
    %1723 = vmatpush1.msra.mxu0 %v1454
    %1724 = vmatprep.subr.mxu0 %v1453
    %1725 = vmatpush1.msra.mxu0 %v1452
    %1726 = vmatprep.subr.mxu0 %v1451
    %1727 = vmatpush1.msra.mxu0 %v1450
    %1728 = vmatprep.subr.mxu0 %v1449
    %1729 = vmatpush1.msra.mxu0 %v1448
    %1730 = vmatprep.subr.mxu0 0.0
    %1731 = vmatpush2.msra.mxu0 0.0
    %1732 = vmatprep.subr.mxu0 0.0
    %1733 = vmatpush2.msra.mxu0 0.0
    %1734 = vmatprep.subr.mxu0 0.0
    %1735 = vmatpush2.msra.mxu0 0.0
    %1736 = vmatprep.subr.mxu0 0.0
    %1737 = vmatpush2.msra.mxu0 0.0
    %1738 = vmatprep.subr.mxu0 0.0
    %1739 = vmatpush2.msra.mxu0 0.0
    %1740 = vmatprep.subr.mxu0 0.0
    %1741 = vmatpush2.msra.mxu0 0.0
    %1742 = vmatprep.subr.mxu0 0.0
    %1743 = vmatpush2.msra.mxu0 0.0
    %1744 = vmatprep.subr.mxu0 0.0
    %1745 = vmatpush2.msra.mxu0 0.0
    %1746 = vmatprep.subr.mxu0 0.0
    %1747 = vmatpush2.msra.mxu0 0.0
    %1748 = vmatprep.subr.mxu0 0.0
    %1749 = vmatpush2.msra.mxu0 0.0
    %1750 = vmatprep.subr.mxu0 0.0
    %1751 = vmatpush2.msra.mxu0 0.0
    %1752 = vmatprep.subr.mxu0 0.0
    %1753 = vmatpush2.msra.mxu0 0.0
    %1754 = vmatprep.subr.mxu0 0.0
    %1755 = vmatpush2.msra.mxu0 0.0
    %1756 = vmatprep.subr.mxu0 0.0
    %1757 = vmatpush2.msra.mxu0 0.0
    %1758 = vmatprep.subr.mxu0 0.0
    %1759 = vmatpush2.msra.mxu0 0.0
    %1760 = vmatprep.subr.mxu0 0.0
    %1761 = vmatpush2.msra.mxu0 0.0
    %1762 = vmatprep.mubr.f32.mxu0 0.0
    %1763 = vmatmul.mubr.f32.gmra.mxu0 %v1696
    %v1764 = vpop.f32.mrf.mxu0
    %v1765 = vadd.f32 0.0, %v1764
    %v1766 = vpop.f32.mrf.mxu0
    %v1767 = vadd.f32 0.0, %v1766
    %1768 = vdwg.mxu0
    %v1769 = vadd.f32 %v1693, %v1765
    %v1770 = vadd.f32 %v1694, %v1767
    %v1771 = vxor.u32 %v1769, 2147483648
    %v1772 = vxor.u32 %v1770, 2147483648
    %v1773 = vmul.f32 %v1771, 1.442695
    %v1774 = vpow.pop %v1773
    %v1775 = vmul.f32 %v1772, 1.442695
    %v1776 = vpow.pop %v1775
    %v1777 = vadd.f32 %v1774, 1.0
    %v1778 = vadd.f32 %v1776, 1.0
    %v1779 = vrcp.pop %v1777
    %v1780 = vmul.f32 1.0, %v1779
    %v1781 = vrcp.pop %v1778
    %v1782 = vmul.f32 1.0, %v1781
    %v1783 = vtanh.pop %v1770
    %v1784 = vmul.f32 %v1780, %v1680
    %1786 = vrot.lane.b32.xlu0 %v1783, 64
    %v1787 = vpop.permute.xlu0 %1786
    %v1789 = vmul.f32 %v1780, %v1787
    %1791 = vrot.lane.b32.xlu0 %v1789, 64
    %v1792 = vpop.permute.xlu0 %1791
    %v1794 = vadd.f32 %v1784, %v1792
    %v1795 = vtanh.pop %v1794
    %1797 = vrot.lane.b32.xlu0 %v1795, 64
    %v1798 = vpop.permute.xlu0 %1797
    %v1800 = vmul.f32 %v1782, %v1798
    %1801 = vst.msk [vmem:[#allocation2 + $0x10] sm:$0xff] %vm457, %v1800
    %1802 = vst.msk [vmem:[#allocation2 + $0x28] sm:$0xff] %vm459, %v1800
    %v1803 = vld [vmem:[#allocation3 + $0x30] sm:$0xff]
    %v1804 = vld [vmem:[#allocation3 + $0x38] sm:$0xff]
    %v1805 = vld [vmem:[#allocation3 + $0x40] sm:$0xff]
    %v1806 = vld [vmem:[#allocation3 + $0x48] sm:$0xff]
    %v1807 = vsel %vm112, %v1803, %v1805
    %v1808 = vsel %vm113, %v1804, %v1806
    %v1810 = vsel %vm350, %v1800, 0
    %1812 = vmatprep.subr.mxu0 0.0
    %1813 = vmatpush1.msra.mxu0 0.0
    %1814 = vmatprep.subr.mxu0 0.0
    %1815 = vmatpush1.msra.mxu0 0.0
    %1816 = vmatprep.subr.mxu0 0.0
    %1817 = vmatpush1.msra.mxu0 0.0
    %1818 = vmatprep.subr.mxu0 0.0
    %1819 = vmatpush1.msra.mxu0 0.0
    %1820 = vmatprep.subr.mxu0 0.0
    %1821 = vmatpush1.msra.mxu0 0.0
    %1822 = vmatprep.subr.mxu0 0.0
    %1823 = vmatpush1.msra.mxu0 0.0
    %1824 = vmatprep.subr.mxu0 0.0
    %1825 = vmatpush1.msra.mxu0 0.0
    %1826 = vmatprep.subr.mxu0 0.0
    %1827 = vmatpush1.msra.mxu0 0.0
    %1828 = vmatprep.subr.mxu0 %v1463
    %1829 = vmatpush1.msra.mxu0 %v1462
    %1830 = vmatprep.subr.mxu0 %v1461
    %1831 = vmatpush1.msra.mxu0 %v1460
    %1832 = vmatprep.subr.mxu0 %v1459
    %1833 = vmatpush1.msra.mxu0 %v1458
    %1834 = vmatprep.subr.mxu0 %v1457
    %1835 = vmatpush1.msra.mxu0 %v1456
    %1836 = vmatprep.subr.mxu0 %v1455
    %1837 = vmatpush1.msra.mxu0 %v1454
    %1838 = vmatprep.subr.mxu0 %v1453
    %1839 = vmatpush1.msra.mxu0 %v1452
    %1840 = vmatprep.subr.mxu0 %v1451
    %1841 = vmatpush1.msra.mxu0 %v1450
    %1842 = vmatprep.subr.mxu0 %v1449
    %1843 = vmatpush1.msra.mxu0 %v1448
    %1844 = vmatprep.subr.mxu0 0.0
    %1845 = vmatpush2.msra.mxu0 0.0
    %1846 = vmatprep.subr.mxu0 0.0
    %1847 = vmatpush2.msra.mxu0 0.0
    %1848 = vmatprep.subr.mxu0 0.0
    %1849 = vmatpush2.msra.mxu0 0.0
    %1850 = vmatprep.subr.mxu0 0.0
    %1851 = vmatpush2.msra.mxu0 0.0
    %1852 = vmatprep.subr.mxu0 0.0
    %1853 = vmatpush2.msra.mxu0 0.0
    %1854 = vmatprep.subr.mxu0 0.0
    %1855 = vmatpush2.msra.mxu0 0.0
    %1856 = vmatprep.subr.mxu0 0.0
    %1857 = vmatpush2.msra.mxu0 0.0
    %1858 = vmatprep.subr.mxu0 0.0
    %1859 = vmatpush2.msra.mxu0 0.0
    %1860 = vmatprep.subr.mxu0 0.0
    %1861 = vmatpush2.msra.mxu0 0.0
    %1862 = vmatprep.subr.mxu0 0.0
    %1863 = vmatpush2.msra.mxu0 0.0
    %1864 = vmatprep.subr.mxu0 0.0
    %1865 = vmatpush2.msra.mxu0 0.0
    %1866 = vmatprep.subr.mxu0 0.0
    %1867 = vmatpush2.msra.mxu0 0.0
    %1868 = vmatprep.subr.mxu0 0.0
    %1869 = vmatpush2.msra.mxu0 0.0
    %1870 = vmatprep.subr.mxu0 0.0
    %1871 = vmatpush2.msra.mxu0 0.0
    %1872 = vmatprep.subr.mxu0 0.0
    %1873 = vmatpush2.msra.mxu0 0.0
    %1874 = vmatprep.subr.mxu0 0.0
    %1875 = vmatpush2.msra.mxu0 0.0
    %1876 = vmatprep.mubr.f32.mxu0 0.0
    %1877 = vmatmul.mubr.f32.gmra.mxu0 %v1810
    %v1878 = vpop.f32.mrf.mxu0
    %v1879 = vadd.f32 0.0, %v1878
    %v1880 = vpop.f32.mrf.mxu0
    %v1881 = vadd.f32 0.0, %v1880
    %1882 = vdwg.mxu0
    %v1883 = vadd.f32 %v1807, %v1879
    %v1884 = vadd.f32 %v1808, %v1881
    %v1885 = vxor.u32 %v1883, 2147483648
    %v1886 = vxor.u32 %v1884, 2147483648
    %v1887 = vmul.f32 %v1885, 1.442695
    %v1888 = vpow.pop %v1887
    %v1889 = vmul.f32 %v1886, 1.442695
    %v1890 = vpow.pop %v1889
    %v1891 = vadd.f32 %v1888, 1.0
    %v1892 = vadd.f32 %v1890, 1.0
    %v1893 = vrcp.pop %v1891
    %v1894 = vmul.f32 1.0, %v1893
    %v1895 = vrcp.pop %v1892
    %v1896 = vmul.f32 1.0, %v1895
    %v1897 = vtanh.pop %v1884
    %v1898 = vmul.f32 %v1894, %v1794
    %1900 = vrot.lane.b32.xlu0 %v1897, 64
    %v1901 = vpop.permute.xlu0 %1900
    %v1903 = vmul.f32 %v1894, %v1901
    %1905 = vrot.lane.b32.xlu0 %v1903, 64
    %v1906 = vpop.permute.xlu0 %1905
    %v1908 = vadd.f32 %v1898, %v1906
    %v1909 = vtanh.pop %v1908
    %1911 = vrot.lane.b32.xlu0 %v1909, 64
    %v1912 = vpop.permute.xlu0 %1911
    %v1914 = vmul.f32 %v1896, %v1912
    %1915 = vst.msk [vmem:[#allocation2 + $0x18] sm:$0xff] %vm457, %v1914
    %1916 = vst.msk [vmem:[#allocation2 + $0x20] sm:$0xff] %vm459, %v1914
    %v1917 = vld [vmem:[#allocation3 + $0x40] sm:$0xff]
    %v1918 = vld [vmem:[#allocation3 + $0x48] sm:$0xff]
    %v1919 = vld [vmem:[#allocation3 + $0x30] sm:$0xff]
    %v1920 = vld [vmem:[#allocation3 + $0x38] sm:$0xff]
    %v1921 = vsel %vm112, %v1917, %v1919
    %v1922 = vsel %vm113, %v1918, %v1920
    %v1924 = vsel %vm350, %v1914, 0
    %1926 = vmatprep.subr.mxu0 0.0
    %1927 = vmatpush1.msra.mxu0 0.0
    %1928 = vmatprep.subr.mxu0 0.0
    %1929 = vmatpush1.msra.mxu0 0.0
    %1930 = vmatprep.subr.mxu0 0.0
    %1931 = vmatpush1.msra.mxu0 0.0
    %1932 = vmatprep.subr.mxu0 0.0
    %1933 = vmatpush1.msra.mxu0 0.0
    %1934 = vmatprep.subr.mxu0 0.0
    %1935 = vmatpush1.msra.mxu0 0.0
    %1936 = vmatprep.subr.mxu0 0.0
    %1937 = vmatpush1.msra.mxu0 0.0
    %1938 = vmatprep.subr.mxu0 0.0
    %1939 = vmatpush1.msra.mxu0 0.0
    %1940 = vmatprep.subr.mxu0 0.0
    %1941 = vmatpush1.msra.mxu0 0.0
    %1942 = vmatprep.subr.mxu0 %v1463
    %1943 = vmatpush1.msra.mxu0 %v1462
    %1944 = vmatprep.subr.mxu0 %v1461
    %1945 = vmatpush1.msra.mxu0 %v1460
    %1946 = vmatprep.subr.mxu0 %v1459
    %1947 = vmatpush1.msra.mxu0 %v1458
    %1948 = vmatprep.subr.mxu0 %v1457
    %1949 = vmatpush1.msra.mxu0 %v1456
    %1950 = vmatprep.subr.mxu0 %v1455
    %1951 = vmatpush1.msra.mxu0 %v1454
    %1952 = vmatprep.subr.mxu0 %v1453
    %1953 = vmatpush1.msra.mxu0 %v1452
    %1954 = vmatprep.subr.mxu0 %v1451
    %1955 = vmatpush1.msra.mxu0 %v1450
    %1956 = vmatprep.subr.mxu0 %v1449
    %1957 = vmatpush1.msra.mxu0 %v1448
    %1958 = vmatprep.subr.mxu0 0.0
    %1959 = vmatpush2.msra.mxu0 0.0
    %1960 = vmatprep.subr.mxu0 0.0
    %1961 = vmatpush2.msra.mxu0 0.0
    %1962 = vmatprep.subr.mxu0 0.0
    %1963 = vmatpush2.msra.mxu0 0.0
    %1964 = vmatprep.subr.mxu0 0.0
    %1965 = vmatpush2.msra.mxu0 0.0
    %1966 = vmatprep.subr.mxu0 0.0
    %1967 = vmatpush2.msra.mxu0 0.0
    %1968 = vmatprep.subr.mxu0 0.0
    %1969 = vmatpush2.msra.mxu0 0.0
    %1970 = vmatprep.subr.mxu0 0.0
    %1971 = vmatpush2.msra.mxu0 0.0
    %1972 = vmatprep.subr.mxu0 0.0
    %1973 = vmatpush2.msra.mxu0 0.0
    %1974 = vmatprep.subr.mxu0 0.0
    %1975 = vmatpush2.msra.mxu0 0.0
    %1976 = vmatprep.subr.mxu0 0.0
    %1977 = vmatpush2.msra.mxu0 0.0
    %1978 = vmatprep.subr.mxu0 0.0
    %1979 = vmatpush2.msra.mxu0 0.0
    %1980 = vmatprep.subr.mxu0 0.0
    %1981 = vmatpush2.msra.mxu0 0.0
    %1982 = vmatprep.subr.mxu0 0.0
    %1983 = vmatpush2.msra.mxu0 0.0
    %1984 = vmatprep.subr.mxu0 0.0
    %1985 = vmatpush2.msra.mxu0 0.0
    %1986 = vmatprep.subr.mxu0 0.0
    %1987 = vmatpush2.msra.mxu0 0.0
    %1988 = vmatprep.subr.mxu0 0.0
    %1989 = vmatpush2.msra.mxu0 0.0
    %1990 = vmatprep.mubr.f32.mxu0 0.0
    %1991 = vmatmul.mubr.f32.gmra.mxu0 %v1924
    %v1992 = vpop.f32.mrf.mxu0
    %v1993 = vadd.f32 0.0, %v1992
    %v1994 = vpop.f32.mrf.mxu0
    %v1995 = vadd.f32 0.0, %v1994
    %1996 = vdwg.mxu0
    %v1997 = vadd.f32 %v1921, %v1993
    %v1998 = vadd.f32 %v1922, %v1995
    %v1999 = vxor.u32 %v1997, 2147483648
    %v2000 = vxor.u32 %v1998, 2147483648
    %v2001 = vmul.f32 %v1999, 1.442695
    %v2002 = vpow.pop %v2001
    %v2003 = vmul.f32 %v2000, 1.442695
    %v2004 = vpow.pop %v2003
    %v2005 = vadd.f32 %v2002, 1.0
    %v2006 = vadd.f32 %v2004, 1.0
    %v2007 = vrcp.pop %v2005
    %v2008 = vmul.f32 1.0, %v2007
    %v2009 = vrcp.pop %v2006
    %v2010 = vmul.f32 1.0, %v2009
    %v2011 = vtanh.pop %v1998
    %v2012 = vmul.f32 %v2008, %v1908
    %2014 = vrot.lane.b32.xlu0 %v2011, 64
    %v2015 = vpop.permute.xlu0 %2014
    %v2017 = vmul.f32 %v2008, %v2015
    %2019 = vrot.lane.b32.xlu0 %v2017, 64
    %v2020 = vpop.permute.xlu0 %2019
    %v2022 = vadd.f32 %v2012, %v2020
    %v2023 = vtanh.pop %v2022
    %2025 = vrot.lane.b32.xlu0 %v2023, 64
    %v2026 = vpop.permute.xlu0 %2025
    %v2028 = vmul.f32 %v2010, %v2026
    %2029 = vst.msk [vmem:[#allocation2 + $0x20] sm:$0xff] %vm457, %v2028
    %2030 = vst.msk [vmem:[#allocation2 + $0x18] sm:$0xff] %vm459, %v2028
    %v2031 = vld [vmem:[#allocation3 + $0x50] sm:$0xff]
    %v2032 = vld [vmem:[#allocation3 + $0x58] sm:$0xff]
    %v2033 = vld [vmem:[#allocation3 + $0x20] sm:$0xff]
    %v2034 = vld [vmem:[#allocation3 + $0x28] sm:$0xff]
    %v2035 = vsel %vm112, %v2031, %v2033
    %v2036 = vsel %vm113, %v2032, %v2034
    %v2038 = vsel %vm350, %v2028, 0
    %2040 = vmatprep.subr.mxu0 0.0
    %2041 = vmatpush1.msra.mxu0 0.0
    %2042 = vmatprep.subr.mxu0 0.0
    %2043 = vmatpush1.msra.mxu0 0.0
    %2044 = vmatprep.subr.mxu0 0.0
    %2045 = vmatpush1.msra.mxu0 0.0
    %2046 = vmatprep.subr.mxu0 0.0
    %2047 = vmatpush1.msra.mxu0 0.0
    %2048 = vmatprep.subr.mxu0 0.0
    %2049 = vmatpush1.msra.mxu0 0.0
    %2050 = vmatprep.subr.mxu0 0.0
    %2051 = vmatpush1.msra.mxu0 0.0
    %2052 = vmatprep.subr.mxu0 0.0
    %2053 = vmatpush1.msra.mxu0 0.0
    %2054 = vmatprep.subr.mxu0 0.0
    %2055 = vmatpush1.msra.mxu0 0.0
    %2056 = vmatprep.subr.mxu0 %v1463
    %2057 = vmatpush1.msra.mxu0 %v1462
    %2058 = vmatprep.subr.mxu0 %v1461
    %2059 = vmatpush1.msra.mxu0 %v1460
    %2060 = vmatprep.subr.mxu0 %v1459
    %2061 = vmatpush1.msra.mxu0 %v1458
    %2062 = vmatprep.subr.mxu0 %v1457
    %2063 = vmatpush1.msra.mxu0 %v1456
    %2064 = vmatprep.subr.mxu0 %v1455
    %2065 = vmatpush1.msra.mxu0 %v1454
    %2066 = vmatprep.subr.mxu0 %v1453
    %2067 = vmatpush1.msra.mxu0 %v1452
    %2068 = vmatprep.subr.mxu0 %v1451
    %2069 = vmatpush1.msra.mxu0 %v1450
    %2070 = vmatprep.subr.mxu0 %v1449
    %2071 = vmatpush1.msra.mxu0 %v1448
    %2072 = vmatprep.subr.mxu0 0.0
    %2073 = vmatpush2.msra.mxu0 0.0
    %2074 = vmatprep.subr.mxu0 0.0
    %2075 = vmatpush2.msra.mxu0 0.0
    %2076 = vmatprep.subr.mxu0 0.0
    %2077 = vmatpush2.msra.mxu0 0.0
    %2078 = vmatprep.subr.mxu0 0.0
    %2079 = vmatpush2.msra.mxu0 0.0
    %2080 = vmatprep.subr.mxu0 0.0
    %2081 = vmatpush2.msra.mxu0 0.0
    %2082 = vmatprep.subr.mxu0 0.0
    %2083 = vmatpush2.msra.mxu0 0.0
    %2084 = vmatprep.subr.mxu0 0.0
    %2085 = vmatpush2.msra.mxu0 0.0
    %2086 = vmatprep.subr.mxu0 0.0
    %2087 = vmatpush2.msra.mxu0 0.0
    %2088 = vmatprep.subr.mxu0 0.0
    %2089 = vmatpush2.msra.mxu0 0.0
    %2090 = vmatprep.subr.mxu0 0.0
    %2091 = vmatpush2.msra.mxu0 0.0
    %2092 = vmatprep.subr.mxu0 0.0
    %2093 = vmatpush2.msra.mxu0 0.0
    %2094 = vmatprep.subr.mxu0 0.0
    %2095 = vmatpush2.msra.mxu0 0.0
    %2096 = vmatprep.subr.mxu0 0.0
    %2097 = vmatpush2.msra.mxu0 0.0
    %2098 = vmatprep.subr.mxu0 0.0
    %2099 = vmatpush2.msra.mxu0 0.0
    %2100 = vmatprep.subr.mxu0 0.0
    %2101 = vmatpush2.msra.mxu0 0.0
    %2102 = vmatprep.subr.mxu0 0.0
    %2103 = vmatpush2.msra.mxu0 0.0
    %2104 = vmatprep.mubr.f32.mxu0 0.0
    %2105 = vmatmul.mubr.f32.gmra.mxu0 %v2038
    %v2106 = vpop.f32.mrf.mxu0
    %v2107 = vadd.f32 0.0, %v2106
    %v2108 = vpop.f32.mrf.mxu0
    %v2109 = vadd.f32 0.0, %v2108
    %2110 = vdwg.mxu0
    %v2111 = vadd.f32 %v2035, %v2107
    %v2112 = vadd.f32 %v2036, %v2109
    %v2113 = vxor.u32 %v2111, 2147483648
    %v2114 = vxor.u32 %v2112, 2147483648
    %v2115 = vmul.f32 %v2113, 1.442695
    %v2116 = vpow.pop %v2115
    %v2117 = vmul.f32 %v2114, 1.442695
    %v2118 = vpow.pop %v2117
    %v2119 = vadd.f32 %v2116, 1.0
    %v2120 = vadd.f32 %v2118, 1.0
    %v2121 = vrcp.pop %v2119
    %v2122 = vmul.f32 1.0, %v2121
    %v2123 = vrcp.pop %v2120
    %v2124 = vmul.f32 1.0, %v2123
    %v2125 = vtanh.pop %v2112
    %v2126 = vmul.f32 %v2122, %v2022
    %2128 = vrot.lane.b32.xlu0 %v2125, 64
    %v2129 = vpop.permute.xlu0 %2128
    %v2131 = vmul.f32 %v2122, %v2129
    %2133 = vrot.lane.b32.xlu0 %v2131, 64
    %v2134 = vpop.permute.xlu0 %2133
    %v2136 = vadd.f32 %v2126, %v2134
    %v2137 = vtanh.pop %v2136
    %2139 = vrot.lane.b32.xlu0 %v2137, 64
    %v2140 = vpop.permute.xlu0 %2139
    %v2142 = vmul.f32 %v2124, %v2140
    %2143 = vst.msk [vmem:[#allocation2 + $0x28] sm:$0xff] %vm457, %v2142
    %2144 = vst.msk [vmem:[#allocation2 + $0x10] sm:$0xff] %vm459, %v2142
    %v2145 = vld [vmem:[#allocation3 + $0x60] sm:$0xff]
    %v2146 = vld [vmem:[#allocation3 + $0x68] sm:$0xff]
    %v2147 = vld [vmem:[#allocation3 + $0x10] sm:$0xff]
    %v2148 = vld [vmem:[#allocation3 + $0x18] sm:$0xff]
    %v2149 = vsel %vm112, %v2145, %v2147
    %v2150 = vsel %vm113, %v2146, %v2148
    %v2152 = vsel %vm350, %v2142, 0
    %2154 = vmatprep.subr.mxu0 0.0
    %2155 = vmatpush1.msra.mxu0 0.0
    %2156 = vmatprep.subr.mxu0 0.0
    %2157 = vmatpush1.msra.mxu0 0.0
    %2158 = vmatprep.subr.mxu0 0.0
    %2159 = vmatpush1.msra.mxu0 0.0
    %2160 = vmatprep.subr.mxu0 0.0
    %2161 = vmatpush1.msra.mxu0 0.0
    %2162 = vmatprep.subr.mxu0 0.0
    %2163 = vmatpush1.msra.mxu0 0.0
    %2164 = vmatprep.subr.mxu0 0.0
    %2165 = vmatpush1.msra.mxu0 0.0
    %2166 = vmatprep.subr.mxu0 0.0
    %2167 = vmatpush1.msra.mxu0 0.0
    %2168 = vmatprep.subr.mxu0 0.0
    %2169 = vmatpush1.msra.mxu0 0.0
    %2170 = vmatprep.subr.mxu0 %v1463
    %2171 = vmatpush1.msra.mxu0 %v1462
    %2172 = vmatprep.subr.mxu0 %v1461
    %2173 = vmatpush1.msra.mxu0 %v1460
    %2174 = vmatprep.subr.mxu0 %v1459
    %2175 = vmatpush1.msra.mxu0 %v1458
    %2176 = vmatprep.subr.mxu0 %v1457
    %2177 = vmatpush1.msra.mxu0 %v1456
    %2178 = vmatprep.subr.mxu0 %v1455
    %2179 = vmatpush1.msra.mxu0 %v1454
    %2180 = vmatprep.subr.mxu0 %v1453
    %2181 = vmatpush1.msra.mxu0 %v1452
    %2182 = vmatprep.subr.mxu0 %v1451
    %2183 = vmatpush1.msra.mxu0 %v1450
    %2184 = vmatprep.subr.mxu0 %v1449
    %2185 = vmatpush1.msra.mxu0 %v1448
    %2186 = vmatprep.subr.mxu0 0.0
    %2187 = vmatpush2.msra.mxu0 0.0
    %2188 = vmatprep.subr.mxu0 0.0
    %2189 = vmatpush2.msra.mxu0 0.0
    %2190 = vmatprep.subr.mxu0 0.0
    %2191 = vmatpush2.msra.mxu0 0.0
    %2192 = vmatprep.subr.mxu0 0.0
    %2193 = vmatpush2.msra.mxu0 0.0
    %2194 = vmatprep.subr.mxu0 0.0
    %2195 = vmatpush2.msra.mxu0 0.0
    %2196 = vmatprep.subr.mxu0 0.0
    %2197 = vmatpush2.msra.mxu0 0.0
    %2198 = vmatprep.subr.mxu0 0.0
    %2199 = vmatpush2.msra.mxu0 0.0
    %2200 = vmatprep.subr.mxu0 0.0
    %2201 = vmatpush2.msra.mxu0 0.0
    %2202 = vmatprep.subr.mxu0 0.0
    %2203 = vmatpush2.msra.mxu0 0.0
    %2204 = vmatprep.subr.mxu0 0.0
    %2205 = vmatpush2.msra.mxu0 0.0
    %2206 = vmatprep.subr.mxu0 0.0
    %2207 = vmatpush2.msra.mxu0 0.0
    %2208 = vmatprep.subr.mxu0 0.0
    %2209 = vmatpush2.msra.mxu0 0.0
    %2210 = vmatprep.subr.mxu0 0.0
    %2211 = vmatpush2.msra.mxu0 0.0
    %2212 = vmatprep.subr.mxu0 0.0
    %2213 = vmatpush2.msra.mxu0 0.0
    %2214 = vmatprep.subr.mxu0 0.0
    %2215 = vmatpush2.msra.mxu0 0.0
    %2216 = vmatprep.subr.mxu0 0.0
    %2217 = vmatpush2.msra.mxu0 0.0
    %2218 = vmatprep.mubr.f32.mxu0 0.0
    %2219 = vmatmul.mubr.f32.gmra.mxu0 %v2152
    %v2220 = vpop.f32.mrf.mxu0
    %v2221 = vadd.f32 0.0, %v2220
    %v2222 = vpop.f32.mrf.mxu0
    %v2223 = vadd.f32 0.0, %v2222
    %2224 = vdwg.mxu0
    %v2225 = vadd.f32 %v2149, %v2221
    %v2226 = vadd.f32 %v2150, %v2223
    %v2227 = vxor.u32 %v2225, 2147483648
    %v2228 = vxor.u32 %v2226, 2147483648
    %v2229 = vmul.f32 %v2227, 1.442695
    %v2230 = vpow.pop %v2229
    %v2231 = vmul.f32 %v2228, 1.442695
    %v2232 = vpow.pop %v2231
    %v2233 = vadd.f32 %v2230, 1.0
    %v2234 = vadd.f32 %v2232, 1.0
    %v2235 = vrcp.pop %v2233
    %v2236 = vmul.f32 1.0, %v2235
    %v2237 = vrcp.pop %v2234
    %v2238 = vmul.f32 1.0, %v2237
    %v2239 = vtanh.pop %v2226
    %v2240 = vmul.f32 %v2236, %v2136
    %2242 = vrot.lane.b32.xlu0 %v2239, 64
    %v2243 = vpop.permute.xlu0 %2242
    %v2245 = vmul.f32 %v2236, %v2243
    %2247 = vrot.lane.b32.xlu0 %v2245, 64
    %v2248 = vpop.permute.xlu0 %2247
    %v2250 = vadd.f32 %v2240, %v2248
    %v2251 = vtanh.pop %v2250
    %2253 = vrot.lane.b32.xlu0 %v2251, 64
    %v2254 = vpop.permute.xlu0 %2253
    %v2256 = vmul.f32 %v2238, %v2254
    %2257 = vst.msk [vmem:[#allocation2 + $0x30] sm:$0xff] %vm457, %v2256
    %2258 = vst.msk [vmem:[#allocation2 + $0x8] sm:$0xff] %vm459, %v2256
    %v2259 = vld [vmem:[#allocation3 + $0x70] sm:$0xff]
    %v2260 = vld [vmem:[#allocation3 + $0x78] sm:$0xff]
    %v2261 = vld [vmem:[#allocation3] sm:$0xff]
    %v2262 = vld [vmem:[#allocation3 + $0x8] sm:$0xff]
    %v2263 = vsel %vm112, %v2259, %v2261
    %v2264 = vsel %vm113, %v2260, %v2262
    %v2266 = vsel %vm350, %v2256, 0
    %2268 = vmatprep.subr.mxu0 0.0
    %2269 = vmatpush1.msra.mxu0 0.0
    %2270 = vmatprep.subr.mxu0 0.0
    %2271 = vmatpush1.msra.mxu0 0.0
    %2272 = vmatprep.subr.mxu0 0.0
    %2273 = vmatpush1.msra.mxu0 0.0
    %2274 = vmatprep.subr.mxu0 0.0
    %2275 = vmatpush1.msra.mxu0 0.0
    %2276 = vmatprep.subr.mxu0 0.0
    %2277 = vmatpush1.msra.mxu0 0.0
    %2278 = vmatprep.subr.mxu0 0.0
    %2279 = vmatpush1.msra.mxu0 0.0
    %2280 = vmatprep.subr.mxu0 0.0
    %2281 = vmatpush1.msra.mxu0 0.0
    %2282 = vmatprep.subr.mxu0 0.0
    %2283 = vmatpush1.msra.mxu0 0.0
    %2284 = vmatprep.subr.mxu0 %v1463
    %2285 = vmatpush1.msra.mxu0 %v1462
    %2286 = vmatprep.subr.mxu0 %v1461
    %2287 = vmatpush1.msra.mxu0 %v1460
    %2288 = vmatprep.subr.mxu0 %v1459
    %2289 = vmatpush1.msra.mxu0 %v1458
    %2290 = vmatprep.subr.mxu0 %v1457
    %2291 = vmatpush1.msra.mxu0 %v1456
    %2292 = vmatprep.subr.mxu0 %v1455
    %2293 = vmatpush1.msra.mxu0 %v1454
    %2294 = vmatprep.subr.mxu0 %v1453
    %2295 = vmatpush1.msra.mxu0 %v1452
    %2296 = vmatprep.subr.mxu0 %v1451
    %2297 = vmatpush1.msra.mxu0 %v1450
    %2298 = vmatprep.subr.mxu0 %v1449
    %2299 = vmatpush1.msra.mxu0 %v1448
    %2300 = vmatprep.subr.mxu0 0.0
    %2301 = vmatpush2.msra.mxu0 0.0
    %2302 = vmatprep.subr.mxu0 0.0
    %2303 = vmatpush2.msra.mxu0 0.0
    %2304 = vmatprep.subr.mxu0 0.0
    %2305 = vmatpush2.msra.mxu0 0.0
    %2306 = vmatprep.subr.mxu0 0.0
    %2307 = vmatpush2.msra.mxu0 0.0
    %2308 = vmatprep.subr.mxu0 0.0
    %2309 = vmatpush2.msra.mxu0 0.0
    %2310 = vmatprep.subr.mxu0 0.0
    %2311 = vmatpush2.msra.mxu0 0.0
    %2312 = vmatprep.subr.mxu0 0.0
    %2313 = vmatpush2.msra.mxu0 0.0
    %2314 = vmatprep.subr.mxu0 0.0
    %2315 = vmatpush2.msra.mxu0 0.0
    %2316 = vmatprep.subr.mxu0 0.0
    %2317 = vmatpush2.msra.mxu0 0.0
    %2318 = vmatprep.subr.mxu0 0.0
    %2319 = vmatpush2.msra.mxu0 0.0
    %2320 = vmatprep.subr.mxu0 0.0
    %2321 = vmatpush2.msra.mxu0 0.0
    %2322 = vmatprep.subr.mxu0 0.0
    %2323 = vmatpush2.msra.mxu0 0.0
    %2324 = vmatprep.subr.mxu0 0.0
    %2325 = vmatpush2.msra.mxu0 0.0
    %2326 = vmatprep.subr.mxu0 0.0
    %2327 = vmatpush2.msra.mxu0 0.0
    %2328 = vmatprep.subr.mxu0 0.0
    %2329 = vmatpush2.msra.mxu0 0.0
    %2330 = vmatprep.subr.mxu0 0.0
    %2331 = vmatpush2.msra.mxu0 0.0
    %2332 = vmatprep.mubr.f32.mxu0 0.0
    %2333 = vmatmul.mubr.f32.gmra.mxu0 %v2266
    %v2334 = vpop.f32.mrf.mxu0
    %v2335 = vadd.f32 0.0, %v2334
    %v2336 = vpop.f32.mrf.mxu0
    %v2337 = vadd.f32 0.0, %v2336
    %2338 = vdwg.mxu0
    %v2339 = vadd.f32 %v2263, %v2335
    %v2340 = vadd.f32 %v2264, %v2337
    %v2341 = vxor.u32 %v2339, 2147483648
    %v2342 = vxor.u32 %v2340, 2147483648
    %v2343 = vmul.f32 %v2341, 1.442695
    %v2344 = vpow.pop %v2343
    %v2345 = vmul.f32 %v2342, 1.442695
    %v2346 = vpow.pop %v2345
    %v2347 = vadd.f32 %v2344, 1.0
    %v2348 = vadd.f32 %v2346, 1.0
    %v2349 = vrcp.pop %v2347
    %v2350 = vmul.f32 1.0, %v2349
    %v2351 = vrcp.pop %v2348
    %v2352 = vmul.f32 1.0, %v2351
    %v2353 = vtanh.pop %v2340
    %v2354 = vmul.f32 %v2350, %v2250
    %2356 = vrot.lane.b32.xlu0 %v2353, 64
    %v2357 = vpop.permute.xlu0 %2356
    %v2359 = vmul.f32 %v2350, %v2357
    %2361 = vrot.lane.b32.xlu0 %v2359, 64
    %v2362 = vpop.permute.xlu0 %2361
    %v2364 = vadd.f32 %v2354, %v2362
    %v2365 = vtanh.pop %v2364
    %2367 = vrot.lane.b32.xlu0 %v2365, 64
    %v2368 = vpop.permute.xlu0 %2367
    %v2370 = vmul.f32 %v2352, %v2368
    %2371 = vst.msk [vmem:[#allocation2 + $0x38] sm:$0xff] %vm457, %v2370
    %2372 = vst.msk [vmem:[#allocation2] sm:$0xff] %vm459, %v2370
    %v2373 = vld [vmem:[#allocation2] sm:$0xff]
    %v2374 = vld [vmem:[#allocation2 + $0x8] sm:$0xff]
    %v2375 = vld [vmem:[#allocation2 + $0x10] sm:$0xff]
    %v2376 = vld [vmem:[#allocation2 + $0x18] sm:$0xff]
    %v2377 = vld [vmem:[#allocation2 + $0x20] sm:$0xff]
    %v2378 = vld [vmem:[#allocation2 + $0x28] sm:$0xff]
    %v2379 = vld [vmem:[#allocation2 + $0x30] sm:$0xff]
    %v2380 = vld [vmem:[#allocation2 + $0x38] sm:$0xff]
    %v2381 = vld [vmem:[%s6] sm:$0xff]
    %v2382 = vld [vmem:[%s6 + $0x8] sm:$0xff]
    %v2383 = vld [vmem:[%s6 + $0x10] sm:$0xff]
    %v2384 = vld [vmem:[%s6 + $0x18] sm:$0xff]
    %v2385 = vld [vmem:[%s6 + $0x20] sm:$0xff]
    %v2386 = vld [vmem:[%s6 + $0x28] sm:$0xff]
    %v2387 = vld [vmem:[%s6 + $0x30] sm:$0xff]
    %v2388 = vld [vmem:[%s6 + $0x38] sm:$0xff]
    %v2389 = vld [vmem:[%s7] sm:$0x1]
    %v2391 = vlaneseq
    %v2392 = vshrl.u32 %v2391, 7
    %v2393 = vsub.s32 0, %v2392
    %v2394 = vrot.slane %v2389, %v2393
    %v2397 = vsel %vm350, %v2373, 0
    %v2400 = vsel %vm350, %v2374, 0
    %v2403 = vsel %vm350, %v2375, 0
    %v2406 = vsel %vm350, %v2376, 0
    %v2409 = vsel %vm350, %v2377, 0
    %v2412 = vsel %vm350, %v2378, 0
    %v2415 = vsel %vm350, %v2379, 0
    %v2418 = vsel %vm350, %v2380, 0
    %2420 = vmatprep.subr.mxu0 0.0
    %2421 = vmatpush1.msra.mxu0 0.0
    %2422 = vmatprep.subr.mxu0 0.0
    %2423 = vmatpush1.msra.mxu0 0.0
    %2424 = vmatprep.subr.mxu0 0.0
    %2425 = vmatpush1.msra.mxu0 0.0
    %2426 = vmatprep.subr.mxu0 0.0
    %2427 = vmatpush1.msra.mxu0 0.0
    %2428 = vmatprep.subr.mxu0 0.0
    %2429 = vmatpush1.msra.mxu0 0.0
    %2430 = vmatprep.subr.mxu0 0.0
    %2431 = vmatpush1.msra.mxu0 0.0
    %2432 = vmatprep.subr.mxu0 0.0
    %2433 = vmatpush1.msra.mxu0 0.0
    %2434 = vmatprep.subr.mxu0 0.0
    %2435 = vmatpush1.msra.mxu0 0.0
    %2436 = vmatprep.subr.mxu0 0.0
    %2437 = vmatpush1.msra.mxu0 %v2388
    %2438 = vmatprep.subr.mxu0 0.0
    %2439 = vmatpush1.msra.mxu0 %v2387
    %2440 = vmatprep.subr.mxu0 0.0
    %2441 = vmatpush1.msra.mxu0 %v2386
    %2442 = vmatprep.subr.mxu0 0.0
    %2443 = vmatpush1.msra.mxu0 %v2385
    %2444 = vmatprep.subr.mxu0 0.0
    %2445 = vmatpush1.msra.mxu0 %v2384
    %2446 = vmatprep.subr.mxu0 0.0
    %2447 = vmatpush1.msra.mxu0 %v2383
    %2448 = vmatprep.subr.mxu0 0.0
    %2449 = vmatpush1.msra.mxu0 %v2382
    %2450 = vmatprep.subr.mxu0 0.0
    %2451 = vmatpush1.msra.mxu0 %v2381
    %2452 = vmatprep.subr.mxu0 0.0
    %2453 = vmatpush2.msra.mxu0 0.0
    %2454 = vmatprep.subr.mxu0 0.0
    %2455 = vmatpush2.msra.mxu0 0.0
    %2456 = vmatprep.subr.mxu0 0.0
    %2457 = vmatpush2.msra.mxu0 0.0
    %2458 = vmatprep.subr.mxu0 0.0
    %2459 = vmatpush2.msra.mxu0 0.0
    %2460 = vmatprep.subr.mxu0 0.0
    %2461 = vmatpush2.msra.mxu0 0.0
    %2462 = vmatprep.subr.mxu0 0.0
    %2463 = vmatpush2.msra.mxu0 0.0
    %2464 = vmatprep.subr.mxu0 0.0
    %2465 = vmatpush2.msra.mxu0 0.0
    %2466 = vmatprep.subr.mxu0 0.0
    %2467 = vmatpush2.msra.mxu0 0.0
    %2468 = vmatprep.subr.mxu0 0.0
    %2469 = vmatpush2.msra.mxu0 0.0
    %2470 = vmatprep.subr.mxu0 0.0
    %2471 = vmatpush2.msra.mxu0 0.0
    %2472 = vmatprep.subr.mxu0 0.0
    %2473 = vmatpush2.msra.mxu0 0.0
    %2474 = vmatprep.subr.mxu0 0.0
    %2475 = vmatpush2.msra.mxu0 0.0
    %2476 = vmatprep.subr.mxu0 0.0
    %2477 = vmatpush2.msra.mxu0 0.0
    %2478 = vmatprep.subr.mxu0 0.0
    %2479 = vmatpush2.msra.mxu0 0.0
    %2480 = vmatprep.subr.mxu0 0.0
    %2481 = vmatpush2.msra.mxu0 0.0
    %2482 = vmatprep.subr.mxu0 0.0
    %2483 = vmatpush2.msra.mxu0 0.0
    %2484 = vmatprep.mubr.f32.mxu0 0.0
    %2485 = vmatmul.mubr.f32.gmra.mxu0 %v2397
    %v2486 = vpop.f32.mrf.mxu0
    %v2487 = vadd.f32 %v2394, %v2486
    %v2488 = vpop.f32.mrf.mxu0
    %2489 = vmatprep.mubr.f32.mxu0 0.0
    %2490 = vmatmul.mubr.f32.gmra.mxu0 %v2400
    %v2491 = vpop.f32.mrf.mxu0
    %v2492 = vadd.f32 %v2394, %v2491
    %v2493 = vpop.f32.mrf.mxu0
    %2494 = vmatprep.mubr.f32.mxu0 0.0
    %2495 = vmatmul.mubr.f32.gmra.mxu0 %v2403
    %v2496 = vpop.f32.mrf.mxu0
    %v2497 = vadd.f32 %v2394, %v2496
    %v2498 = vpop.f32.mrf.mxu0
    %2499 = vmatprep.mubr.f32.mxu0 0.0
    %2500 = vmatmul.mubr.f32.gmra.mxu0 %v2406
    %v2501 = vpop.f32.mrf.mxu0
    %v2502 = vadd.f32 %v2394, %v2501
    %v2503 = vpop.f32.mrf.mxu0
    %2504 = vmatprep.mubr.f32.mxu0 0.0
    %2505 = vmatmul.mubr.f32.gmra.mxu0 %v2409
    %v2506 = vpop.f32.mrf.mxu0
    %v2507 = vadd.f32 %v2394, %v2506
    %v2508 = vpop.f32.mrf.mxu0
    %2509 = vmatprep.mubr.f32.mxu0 0.0
    %2510 = vmatmul.mubr.f32.gmra.mxu0 %v2412
    %v2511 = vpop.f32.mrf.mxu0
    %v2512 = vadd.f32 %v2394, %v2511
    %v2513 = vpop.f32.mrf.mxu0
    %2514 = vmatprep.mubr.f32.mxu0 0.0
    %2515 = vmatmul.mubr.f32.gmra.mxu0 %v2415
    %v2516 = vpop.f32.mrf.mxu0
    %v2517 = vadd.f32 %v2394, %v2516
    %v2518 = vpop.f32.mrf.mxu0
    %2519 = vmatprep.mubr.f32.mxu0 0.0
    %2520 = vmatmul.mubr.f32.gmra.mxu0 %v2418
    %v2521 = vpop.f32.mrf.mxu0
    %v2522 = vadd.f32 %v2394, %v2521
    %v2523 = vpop.f32.mrf.mxu0
    %2524 = vdwg.mxu0
    %v2525 = vxor.u32 %v2487, 2147483648
    %v2526 = vxor.u32 %v2492, 2147483648
    %v2527 = vxor.u32 %v2497, 2147483648
    %v2528 = vxor.u32 %v2502, 2147483648
    %v2529 = vxor.u32 %v2507, 2147483648
    %v2530 = vxor.u32 %v2512, 2147483648
    %v2531 = vxor.u32 %v2517, 2147483648
    %v2532 = vxor.u32 %v2522, 2147483648
    %v2533 = vmul.f32 %v2525, 1.442695
    %v2534 = vpow.pop %v2533
    %v2535 = vmul.f32 %v2526, 1.442695
    %v2536 = vpow.pop %v2535
    %v2537 = vmul.f32 %v2527, 1.442695
    %v2538 = vpow.pop %v2537
    %v2539 = vmul.f32 %v2528, 1.442695
    %v2540 = vpow.pop %v2539
    %v2541 = vmul.f32 %v2529, 1.442695
    %v2542 = vpow.pop %v2541
    %v2543 = vmul.f32 %v2530, 1.442695
    %v2544 = vpow.pop %v2543
    %v2545 = vmul.f32 %v2531, 1.442695
    %v2546 = vpow.pop %v2545
    %v2547 = vmul.f32 %v2532, 1.442695
    %v2548 = vpow.pop %v2547
    %v2549 = vadd.f32 %v2534, 1.0
    %v2550 = vadd.f32 %v2536, 1.0
    %v2551 = vadd.f32 %v2538, 1.0
    %v2552 = vadd.f32 %v2540, 1.0
    %v2553 = vadd.f32 %v2542, 1.0
    %v2554 = vadd.f32 %v2544, 1.0
    %v2555 = vadd.f32 %v2546, 1.0
    %v2556 = vadd.f32 %v2548, 1.0
    %v2557 = vrcp.pop %v2549
    %v2558 = vmul.f32 1.0, %v2557
    %v2559 = vrcp.pop %v2550
    %v2560 = vmul.f32 1.0, %v2559
    %v2561 = vrcp.pop %v2551
    %v2562 = vmul.f32 1.0, %v2561
    %v2563 = vrcp.pop %v2552
    %v2564 = vmul.f32 1.0, %v2563
    %v2565 = vrcp.pop %v2553
    %v2566 = vmul.f32 1.0, %v2565
    %v2567 = vrcp.pop %v2554
    %v2568 = vmul.f32 1.0, %v2567
    %v2569 = vrcp.pop %v2555
    %v2570 = vmul.f32 1.0, %v2569
    %v2571 = vrcp.pop %v2556
    %v2572 = vmul.f32 1.0, %v2571
    %2573 = vst [vmem:[#allocation12] sm:$0xff] %v2558
    %2574 = vst [vmem:[#allocation12 + $0x8] sm:$0xff] %v2560
    %2575 = vst [vmem:[#allocation12 + $0x10] sm:$0xff] %v2562
    %2576 = vst [vmem:[#allocation12 + $0x18] sm:$0xff] %v2564
    %2577 = vst [vmem:[#allocation12 + $0x20] sm:$0xff] %v2566
    %2578 = vst [vmem:[#allocation12 + $0x28] sm:$0xff] %v2568
    %2579 = vst [vmem:[#allocation12 + $0x30] sm:$0xff] %v2570
    %2580 = vst [vmem:[#allocation12 + $0x38] sm:$0xff] %v2572
    // Predicated region
    $region50: #{tpu_custom_call.1} parent=1 // pred_check
      _
    $region51: #{tpu_custom_call.1} parent=1 // pred_check_branch
      %2582 = sbr.rel (0) target = $region53
    $region52: #{tpu_custom_call.1} parent=1 // pred_region
      %s2584 = ssub.s32 1024, 1024
      %2585 = vsyncadd [#allocation6], %s2584
      %s2586 = sshll.u32 [#allocation12], 4
      %s2587 = int_to_ptr.vmem [resolvable:$true] %s2586
      %2592 = dma.vmem_to_hbm [thread:$0]  %s2587, 1024, %s8, [#allocation6], 128, 128, 8
    $region53: #{tpu_custom_call.1} parent=1 // pred_fallthru
      _
    // Predicated region
    $region54: #{tpu_custom_call.1} parent=1 // pred_check
      _
    $region55: #{tpu_custom_call.1} parent=1 // pred_check_branch
      %2594 = sbr.rel (0) target = $region57
    $region56: #{tpu_custom_call.1} parent=1 // pred_region
      %2595 = dma.done [#allocation6], 1024
    $region57: #{tpu_custom_call.1} parent=1 // pred_fallthru
      _
    %2596 = vsyncpa [#allocation5], 1
    %2597 = vsyncpa [#allocation8], 1
    %2598 = vsyncpa [#allocation11], 1
    %2599 = vsyncpa [#allocation6], 1

</llo_original>
